<compile_context>
chip_gen: v7x
topology: tpu7x:2x2x1
jax: 0.10.0
libtpu: 0.0.40
codegen_flags: <defaults>
</compile_context>

<pallas_src>
import functools

import jax
import jax.numpy as jnp
from jax import lax
from jax.experimental import pallas as pl
from jax.experimental.pallas import tpu as pltpu


# ----------------------------- in-kernel helpers -----------------------------

def _softplus(x):
    # numerically stable log(1 + exp(x)) == F.softplus
    return jnp.maximum(x, 0.0) + jnp.log(1.0 + jnp.exp(-jnp.abs(x)))


def _softmax(x, axis):
    m = jnp.max(x, axis=axis, keepdims=True)
    e = jnp.exp(x - m)
    return e * pl.reciprocal(jnp.sum(e, axis=axis, keepdims=True), approx=True)


def _batchnorm_train(x, bias, eps):
    # nn.BatchNorm1d in training mode: biased batch stats, weight frozen at 1.
    mean = jnp.mean(x, axis=0, keepdims=True)
    var = jnp.mean((x - mean) ** 2, axis=0, keepdims=True)
    return (x - mean) * lax.rsqrt(var + eps) + bias


# --------------------------------- kernel ------------------------------------

def xtm_forward_kernel(
    # inputs
    x_ref, eps_ref,
    w11_ref, b11_ref, w12_ref, b12_ref,
    w21_ref, b21_ref, w22_ref, b22_ref,
    mu2_ref, inv_var2_ref, log_var2_ref,
    topic_ref, word_t_ref, word_sq_ref,
    mean_bn_b_ref, logvar_bn_b_ref, dec_bn_b_ref,
    # outputs
    out_ref,
    # scratch
    acc_e_ref, theta_ref, cost_ref, m_ref, l_ref, s1_ref, xs_ref, kl_ref,
    *, beta_temp, alpha_ecr, weight_ecr, sinkhorn_iters, bn_eps,
):
    p = pl.program_id(0)          # 0: encoder vocab reduction, 1: decode / losses
    v = pl.program_id(1)          # vocab tile index
    nv = pl.num_programs(1)

    B = x_ref.shape[0]
    TV = x_ref.shape[1]
    K = theta_ref.shape[1]
    V = cost_ref.shape[1]

    # ---------------- phase 0: accumulate bow @ W11 over vocab tiles ----------
    @pl.when(p == 0)
    def _phase0():
        @pl.when(v == 0)
        def _():
            acc_e_ref[...] = jnp.zeros_like(acc_e_ref)

        acc_e_ref[...] += jnp.dot(x_ref[...].astype(jnp.bfloat16), w11_ref[...],
                                  preferred_element_type=jnp.float32)

    # ---------------- phase 1: encoder tail + per-tile decode + losses --------
    @pl.when(p == 1)
    def _phase1():
        # finalize encoder / theta / KL once (first vocab tile of phase 1)
        @pl.when(v == 0)
        def _encode():
            e1 = _softplus(acc_e_ref[...] + b11_ref[...])
            e1 = _softplus(jnp.dot(e1.astype(jnp.bfloat16), w12_ref[...],
                                   preferred_element_type=jnp.float32) + b12_ref[...])
            # fc1_dropout / theta_dropout are identity (dropout = 0.0)
            e1b = e1.astype(jnp.bfloat16)
            mu = _batchnorm_train(
                jnp.dot(e1b, w21_ref[...], preferred_element_type=jnp.float32)
                + b21_ref[...], mean_bn_b_ref[...], bn_eps)
            logvar = _batchnorm_train(
                jnp.dot(e1b, w22_ref[...], preferred_element_type=jnp.float32)
                + b22_ref[...], logvar_bn_b_ref[...], bn_eps)

            # reparameterize (training): z = mu + eps * std
            z = mu + eps_ref[...] * jnp.exp(0.5 * logvar)
            theta_ref[...] = _softmax(z, axis=1)

            # KL against logistic-normal prior (log var2, 1/var2 precomputed)
            var = jnp.exp(logvar)
            diff = mu - mu2_ref[...]
            terms = (var * inv_var2_ref[...] + diff * diff * inv_var2_ref[...]
                     + log_var2_ref[...] - logvar)
            kld = 0.5 * (jnp.sum(terms, axis=1, keepdims=True) - float(K))   # (B,1)
            kl_ref[...] = jnp.sum(kld, axis=0, keepdims=True) * (1.0 / B)    # (1,1)

            # init online log-softmax recon accumulators
            m_ref[...] = jnp.full_like(m_ref, -jnp.inf)
            l_ref[...] = jnp.zeros_like(l_ref)
            s1_ref[...] = jnp.zeros_like(s1_ref)
            xs_ref[...] = jnp.zeros_like(xs_ref)

        # ---- per vocab tile: cost / beta columns, decoder logits, stats ------
        t = topic_ref[...]                                     # (K, D) f32
        t_sq = jnp.sum(t * t, axis=1, keepdims=True)           # (K, 1) f32
        cross = jnp.dot(t.astype(jnp.bfloat16), word_t_ref[...],
                        preferred_element_type=jnp.float32)    # (K, TV)
        cost = t_sq + word_sq_ref[...] - 2.0 * cross           # (K, TV)
        col0 = pl.multiple_of(v * TV, TV)
        cost_ref[:, pl.ds(col0, TV)] = cost                    # stash for Sinkhorn

        beta = _softmax(-cost * (1.0 / beta_temp), axis=0)     # softmax over topics

        logits = jnp.dot(theta_ref[...].astype(jnp.bfloat16), beta.astype(jnp.bfloat16),
                         preferred_element_type=jnp.float32)   # (B, TV)
        logits = _batchnorm_train(logits, dec_bn_b_ref[...], bn_eps)

        x = x_ref[...]
        tile_max = jnp.max(logits, axis=1, keepdims=True)      # (B, 1)
        m_new = jnp.maximum(m_ref[...], tile_max)
        l_ref[...] = (l_ref[...] * jnp.exp(m_ref[...] - m_new)
                      + jnp.sum(jnp.exp(logits - m_new), axis=1, keepdims=True))
        m_ref[...] = m_new
        s1_ref[...] += jnp.sum(x * logits, axis=1, keepdims=True)
        xs_ref[...] += jnp.sum(x, axis=1, keepdims=True)

        # ---- final tile: recon / TM losses and Sinkhorn ECR -------------------
        @pl.when(v == nv - 1)
        def _finalize():
            # fused log-softmax reconstruction loss:
            #   -sum_j x_ij * (logit_ij - lse_i) = xs_i * lse_i - s1_i
            lse = m_ref[...] + jnp.log(l_ref[...])                          # (B,1)
            per_doc = xs_ref[...] * lse - s1_ref[...]                       # (B,1)
            recon_loss = jnp.sum(per_doc, axis=0, keepdims=True) * (1.0 / B)
            loss_kl = kl_ref[...]
            loss_tm = recon_loss + loss_kl

            # ECR entropic-OT (Sinkhorn), transpose-free VPU/XLU formulation.
            # TODO(synk): reference ECR uses a data-dependent convergence check
            # (stopThr) and is fragile when exp(-cost*alpha) underflows; a fixed
            # iteration count (and no log-domain rewrite) is used here.
            cost_full = cost_ref[...]                                       # (K, V)
            kmat = jnp.exp(-cost_full * alpha_ecr)
            a_val = 1.0 / K
            b_val = 1.0 / V
            u0 = jnp.full((K, 1), a_val, jnp.float32)
            v0 = jnp.full((1, V), b_val, jnp.float32)

            def one_step(carry):
                u_c, v_r = carry
                v_r = b_val * pl.reciprocal(
                    jnp.sum(kmat * u_c, axis=0, keepdims=True) + 1e-16, approx=True)
                u_c = a_val * pl.reciprocal(
                    jnp.sum(kmat * v_r, axis=1, keepdims=True) + 1e-16, approx=True)
                return (u_c, v_r)

            n_unroll = 5
            n_outer = sinkhorn_iters // n_unroll
            n_rem = sinkhorn_iters - n_outer * n_unroll

            def outer_body(_, carry):
                for _i in range(n_unroll):
                    carry = one_step(carry)
                return carry

            carry = lax.fori_loop(0, n_outer, outer_body, (u0, v0))
            for _i in range(n_rem):
                carry = one_step(carry)
            u_c, v_r = carry

            transp_cost = (u_c * kmat) * (v_r * cost_full)                  # (K, V)
            loss_ecr = weight_ecr * jnp.sum(
                jnp.sum(transp_cost, axis=1, keepdims=True), axis=0, keepdims=True)

            # consolidated (1,4) output row: [loss, loss_TM, loss_ECR, loss_KL]
            loss_total = loss_tm + loss_ecr
            idx = lax.broadcasted_iota(jnp.int32, (1, 4), 1)
            row = (loss_total * (idx == 0).astype(jnp.float32)
                   + loss_tm * (idx == 1).astype(jnp.float32)
                   + loss_ecr * (idx == 2).astype(jnp.float32)
                   + loss_kl * (idx == 3).astype(jnp.float32))
            out_ref[...] = row


# ------------------------------- python wrapper -------------------------------

def init_params(key, vocab_size, en_units, num_topics, embed_size):
    ks = jax.random.split(key, 10)

    def linear(kw, kb, fan_in, fan_out):
        bound = 1.0 / float(fan_in) ** 0.5
        w = jax.random.uniform(kw, (fan_in, fan_out), jnp.float32, -bound, bound)
        b = jax.random.uniform(kb, (1, fan_out), jnp.float32, -bound, bound)
        return w, b

    w11, b11 = linear(ks[0], ks[1], vocab_size, en_units)
    w12, b12 = linear(ks[2], ks[3], en_units, en_units)
    w21, b21 = linear(ks[4], ks[5], en_units, num_topics)
    w22, b22 = linear(ks[6], ks[7], en_units, num_topics)

    we = jax.random.truncated_normal(ks[8], -2.0, 2.0, (vocab_size, embed_size), jnp.float32)
    we = we / jnp.maximum(jnp.linalg.norm(we, axis=1, keepdims=True), 1e-12)
    te = 0.1 * jax.random.truncated_normal(ks[9], -2.0, 2.0, (num_topics, embed_size), jnp.float32)
    te = te / jnp.maximum(jnp.linalg.norm(te, axis=1, keepdims=True), 1e-12)

    a = jnp.ones((1, num_topics), jnp.float32)
    mu2 = jnp.log(a) - jnp.mean(jnp.log(a), axis=1, keepdims=True)
    var2 = (1.0 / a) * (1.0 - 2.0 / num_topics) \
        + (1.0 / (num_topics * num_topics)) * jnp.sum(1.0 / a, axis=1, keepdims=True)

    return dict(
        w11=w11, b11=b11, w12=w12, b12=b12, w21=w21, b21=b21, w22=w22, b22=b22,
        mu2=mu2, var2=var2,
        word_embeddings=we, topic_embeddings=te,
        mean_bn_bias=jnp.zeros((1, num_topics), jnp.float32),
        logvar_bn_bias=jnp.zeros((1, num_topics), jnp.float32),
        dec_bn_bias=jnp.zeros((1, vocab_size), jnp.float32),
    )


def xtm_forward(x, eps_noise, params, *, beta_temp=0.2, alpha_ecr=20.0,
                weight_ecr=250.0, sinkhorn_iters=50, vocab_tile=512):
    x = x.astype(jnp.float32)
    B, V = x.shape
    K = eps_noise.shape[1]
    E = params['w11'].shape[1]
    D = params['topic_embeddings'].shape[1]

    if V % vocab_tile != 0:
        vocab_tile = V          # fall back to a single full-width tile
    tv = vocab_tile
    nv = V // tv

    bf16 = jnp.bfloat16
    # glue: bf16 weights for MXU operands, pre-transposed word embeddings,
    # f32 precomputed squared norms / KL constants.
    w11 = params['w11'].astype(bf16)
    w12 = params['w12'].astype(bf16)
    w21 = params['w21'].astype(bf16)
    w22 = params['w22'].astype(bf16)
    we_f32 = params['word_embeddings'].astype(jnp.float32)
    word_t = we_f32.T.astype(bf16)                                     # (D, V)
    word_sq = jnp.sum(we_f32 * we_f32, axis=1, keepdims=True).T        # (1, V) f32
    inv_var2 = 1.0 / params['var2']
    log_var2 = jnp.log(params['var2'])

    inputs = (
        x, eps_noise.astype(jnp.float32),
        w11, params['b11'], w12, params['b12'],
        w21, params['b21'], w22, params['b22'],
        params['mu2'], inv_var2, log_var2,
        params['topic_embeddings'].astype(jnp.float32), word_t, word_sq,
        params['mean_bn_bias'], params['logvar_bn_bias'], params['dec_bn_bias'],
    )

    def const2d(shape):
        return pl.BlockSpec(shape, lambda p, v: (0, 0))

    in_specs = [
        pl.BlockSpec((B, tv), lambda p, v: (0, v)),              # x (both phases)
        const2d((B, K)),                                         # eps
        pl.BlockSpec((tv, E), lambda p, v: (v * (1 - p), 0)),    # w11 (phase 0 only)
        const2d((1, E)),                                         # b11
        const2d((E, E)),                                         # w12
        const2d((1, E)),                                         # b12
        const2d((E, K)),                                         # w21
        const2d((1, K)),                                         # b21
        const2d((E, K)),                                         # w22
        const2d((1, K)),                                         # b22
        const2d((1, K)),                                         # mu2
        const2d((1, K)),                                         # 1/var2
        const2d((1, K)),                                         # log var2
        const2d((K, D)),                                         # topic embeddings
        pl.BlockSpec((D, tv), lambda p, v: (0, v * p)),          # word_t (phase 1 only)
        pl.BlockSpec((1, tv), lambda p, v: (0, v * p)),          # word squared norms
        const2d((1, K)),                                         # mean_bn bias
        const2d((1, K)),                                         # logvar_bn bias
        pl.BlockSpec((1, tv), lambda p, v: (0, v * p)),          # decoder_bn bias
    ]

    scratch_shapes = [
        pltpu.VMEM((B, E), jnp.float32),    # x @ W11 accumulator
        pltpu.VMEM((B, K), jnp.float32),    # theta
        pltpu.VMEM((K, V), jnp.float32),    # pairwise cost (consumed by Sinkhorn)
        pltpu.VMEM((B, 1), jnp.float32),    # recon: running max
        pltpu.VMEM((B, 1), jnp.float32),    # recon: running sum-exp
        pltpu.VMEM((B, 1), jnp.float32),    # recon: sum_j x*logit
        pltpu.VMEM((B, 1), jnp.float32),    # recon: sum_j x
        pltpu.VMEM((1, 1), jnp.float32),    # loss_KL carry
    ]

    # explicit VMEM budget from the actually-resident buffers (+ margin).
    tile_bytes = 2 * (B * tv * 4 + tv * E * 2 + D * tv * 2 + tv * 4 + tv * 4)
    resident_bytes = 2 * (B * K * 4 + E * E * 2 + 2 * E * K * 2 + 2 * E * 4
                          + 8 * K * 4 + K * D * 4 + 4 * 4)
    scratch_bytes = (B * E + B * K + K * V + 4 * B + 1) * 4
    vmem_budget = int(1.5 * (tile_bytes + resident_bytes + scratch_bytes))
    vmem_budget = max(16 << 20, min(vmem_budget, 100 << 20))

    kernel = functools.partial(
        xtm_forward_kernel,
        beta_temp=float(beta_temp), alpha_ecr=float(alpha_ecr),
        weight_ecr=float(weight_ecr), sinkhorn_iters=int(sinkhorn_iters),
        bn_eps=1e-5)

    grid_spec = pltpu.PrefetchScalarGridSpec(
        num_scalar_prefetch=0,
        grid=(2, nv),
        in_specs=in_specs,
        out_specs=pl.BlockSpec((1, 4), lambda p, v: (0, 0)),
        scratch_shapes=scratch_shapes,
    )

    out = pl.pallas_call(
        kernel,
        out_shape=jax.ShapeDtypeStruct((1, 4), jnp.float32),
        grid_spec=grid_spec,
        compiler_params=pltpu.CompilerParams(
            # both axes carry sequential reductions/accumulators -> "arbitrary";
            # TODO(synk): no megacore-parallel axis possible with this 2-phase
            # reduction structure (would need a 2-pass BN / split-V Sinkhorn).
            dimension_semantics=("arbitrary", "arbitrary"),
            vmem_limit_bytes=vmem_budget),
    )(*inputs)

    return {
        'loss': out[0, 0],
        'loss_TM': out[0, 1],
        'loss_ECR': out[0, 2],
        'loss_XGR': 0.0,
        'loss_KL': out[0, 3],
    }


if __name__ == "__main__":
    # small shapes: batch=8, vocab=512, en_units=128, num_topics=16, embed=32
    B, V, E, K, D = 8, 512, 128, 16, 32
    TV = 128   # vocab tile -> grid of (2 phases, 4 vocab tiles)

    key = jax.random.PRNGKey(0)
    k_data, k_eps, k_param = jax.random.split(key, 3)

    # bag-of-words counts (non-negative)
    x = jnp.floor(jax.random.uniform(k_data, (B, V), jnp.float32, 0.0, 5.0))
    # reparameterization noise (deterministic, supplied to the kernel)
    eps_noise = jax.random.normal(k_eps, (B, K), jnp.float32)

    params = init_params(k_param, V, E, K, D)

    rst = xtm_forward(x, eps_noise, params, beta_temp=0.2, alpha_ecr=20.0,
                      weight_ecr=250.0, sinkhorn_iters=50, vocab_tile=TV)
    jax.block_until_ready(rst['loss'])
    print("KERNEL_OK")
</pallas_src>

<mosaic_0001>
module attributes {stable_mosaic.version = 11 : i64} {
  func.func @xtm_forward_kernel(%arg0: i32, %arg1: i32, %arg2: memref<8x128xf32, #tpu.memory_space<vmem>>, %arg3: memref<8x16xf32, #tpu.memory_space<vmem>>, %arg4: memref<128x128xbf16, #tpu.memory_space<vmem>>, %arg5: memref<1x128xf32, #tpu.memory_space<vmem>>, %arg6: memref<128x128xbf16, #tpu.memory_space<vmem>>, %arg7: memref<1x128xf32, #tpu.memory_space<vmem>>, %arg8: memref<128x16xbf16, #tpu.memory_space<vmem>>, %arg9: memref<1x16xf32, #tpu.memory_space<vmem>>, %arg10: memref<128x16xbf16, #tpu.memory_space<vmem>>, %arg11: memref<1x16xf32, #tpu.memory_space<vmem>>, %arg12: memref<1x16xf32, #tpu.memory_space<vmem>>, %arg13: memref<1x16xf32, #tpu.memory_space<vmem>>, %arg14: memref<1x16xf32, #tpu.memory_space<vmem>>, %arg15: memref<16x32xf32, #tpu.memory_space<vmem>>, %arg16: memref<32x128xbf16, #tpu.memory_space<vmem>>, %arg17: memref<1x128xf32, #tpu.memory_space<vmem>>, %arg18: memref<1x16xf32, #tpu.memory_space<vmem>>, %arg19: memref<1x16xf32, #tpu.memory_space<vmem>>, %arg20: memref<1x128xf32, #tpu.memory_space<vmem>>, %arg21: memref<1x4xf32, #tpu.memory_space<vmem>>, %arg22: memref<8x128xf32, #tpu.memory_space<vmem>>, %arg23: memref<8x16xf32, #tpu.memory_space<vmem>>, %arg24: memref<16x512xf32, #tpu.memory_space<vmem>>, %arg25: memref<8x1xf32, #tpu.memory_space<vmem>>, %arg26: memref<8x1xf32, #tpu.memory_space<vmem>>, %arg27: memref<8x1xf32, #tpu.memory_space<vmem>>, %arg28: memref<8x1xf32, #tpu.memory_space<vmem>>, %arg29: memref<1x1xf32, #tpu.memory_space<vmem>>) attributes {dimension_semantics = [#tpu.dimension_semantics<arbitrary>, #tpu.dimension_semantics<arbitrary>], iteration_bounds = array<i64: 2, 4>, scalar_prefetch = 0 : i64, scratch_operands = 8 : i64, tpu.core_type = #tpu.core_type<tc>, window_params = [{transform_indices = @transform_0, window_bounds = array<i64: 8, 128>}, {pipeline_mode = #tpu.pipeline_mode<synchronous>, transform_indices = @transform_1, window_bounds = array<i64: 8, 16>}, {transform_indices = @transform_2, window_bounds = array<i64: 128, 128>}, {pipeline_mode = #tpu.pipeline_mode<synchronous>, transform_indices = @transform_3, window_bounds = array<i64: 1, 128>}, {pipeline_mode = #tpu.pipeline_mode<synchronous>, transform_indices = @transform_4, window_bounds = array<i64: 128, 128>}, {pipeline_mode = #tpu.pipeline_mode<synchronous>, transform_indices = @transform_5, window_bounds = array<i64: 1, 128>}, {pipeline_mode = #tpu.pipeline_mode<synchronous>, transform_indices = @transform_6, window_bounds = array<i64: 128, 16>}, {pipeline_mode = #tpu.pipeline_mode<synchronous>, transform_indices = @transform_7, window_bounds = array<i64: 1, 16>}, {pipeline_mode = #tpu.pipeline_mode<synchronous>, transform_indices = @transform_8, window_bounds = array<i64: 128, 16>}, {pipeline_mode = #tpu.pipeline_mode<synchronous>, transform_indices = @transform_9, window_bounds = array<i64: 1, 16>}, {pipeline_mode = #tpu.pipeline_mode<synchronous>, transform_indices = @transform_10, window_bounds = array<i64: 1, 16>}, {pipeline_mode = #tpu.pipeline_mode<synchronous>, transform_indices = @transform_11, window_bounds = array<i64: 1, 16>}, {pipeline_mode = #tpu.pipeline_mode<synchronous>, transform_indices = @transform_12, window_bounds = array<i64: 1, 16>}, {pipeline_mode = #tpu.pipeline_mode<synchronous>, transform_indices = @transform_13, window_bounds = array<i64: 16, 32>}, {transform_indices = @transform_14, window_bounds = array<i64: 32, 128>}, {transform_indices = @transform_15, window_bounds = array<i64: 1, 128>}, {pipeline_mode = #tpu.pipeline_mode<synchronous>, transform_indices = @transform_16, window_bounds = array<i64: 1, 16>}, {pipeline_mode = #tpu.pipeline_mode<synchronous>, transform_indices = @transform_17, window_bounds = array<i64: 1, 16>}, {transform_indices = @transform_18, window_bounds = array<i64: 1, 128>}, {pipeline_mode = #tpu.pipeline_mode<synchronous>, transform_indices = @transform_19, window_bounds = array<i64: 1, 4>}]} {
    %c0_i32 = arith.constant 0 : i32
    %0 = arith.cmpi eq, %arg0, %c0_i32 : i32
    %1 = arith.extui %0 : i1 to i32
    %c0_i32_0 = arith.constant 0 : i32
    %2 = arith.cmpi ne, %1, %c0_i32_0 : i32
    scf.if %2 {
      %c0_i32_2 = arith.constant 0 : i32
      %6 = arith.cmpi eq, %arg1, %c0_i32_2 : i32
      %7 = arith.extui %6 : i1 to i32
      %c0_i32_3 = arith.constant 0 : i32
      %8 = arith.cmpi ne, %7, %c0_i32_3 : i32
      scf.if %8 {
        %cst_11 = arith.constant 0.000000e+00 : f32
        %16 = vector.broadcast %cst_11 : f32 to vector<8x128xf32>
        %c0_12 = arith.constant 0 : index
        %c0_13 = arith.constant 0 : index
        %17 = vector.load %arg22[%c0_12, %c0_13] : memref<8x128xf32, #tpu.memory_space<vmem>>, vector<8x128xf32>
        tpu.vector_store %arg22[%c0_12, %c0_13], %16 {strides = array<i32>} : memref<8x128xf32, #tpu.memory_space<vmem>>, vector<8x128xf32>,
      } else {
      }
      %c0 = arith.constant 0 : index
      %c0_4 = arith.constant 0 : index
      %9 = vector.load %arg22[%c0, %c0_4] : memref<8x128xf32, #tpu.memory_space<vmem>>, vector<8x128xf32>
      %c0_5 = arith.constant 0 : index
      %c0_6 = arith.constant 0 : index
      %10 = vector.load %arg2[%c0_5, %c0_6] : memref<8x128xf32, #tpu.memory_space<vmem>>, vector<8x128xf32>
      %11 = arith.truncf %10 : vector<8x128xf32> to vector<8x128xbf16>
      %c0_7 = arith.constant 0 : index
      %c0_8 = arith.constant 0 : index
      %12 = vector.load %arg4[%c0_7, %c0_8] : memref<128x128xbf16, #tpu.memory_space<vmem>>, vector<128x128xbf16>
      %cst = arith.constant dense<0.000000e+00> : vector<8x128xf32>
      %13 = tpu.matmul %11, %12, %cst {dimension_numbers = #tpu.dot_dimension_numbers<[1], [0], [0], [1], [0, 0, 1, 1], [], []>} : vector<8x128xbf16>, vector<128x128xbf16>, vector<8x128xf32> -> vector<8x128xf32>
      %14 = arith.addf %9, %13 : vector<8x128xf32>
      %c0_9 = arith.constant 0 : index
      %c0_10 = arith.constant 0 : index
      %15 = vector.load %arg22[%c0_9, %c0_10] : memref<8x128xf32, #tpu.memory_space<vmem>>, vector<8x128xf32>
      tpu.vector_store %arg22[%c0_9, %c0_10], %14 {strides = array<i32>} : memref<8x128xf32, #tpu.memory_space<vmem>>, vector<8x128xf32>,
    } else {
    }
    %c1_i32 = arith.constant 1 : i32
    %3 = arith.cmpi eq, %arg0, %c1_i32 : i32
    %4 = arith.extui %3 : i1 to i32
    %c0_i32_1 = arith.constant 0 : i32
    %5 = arith.cmpi ne, %4, %c0_i32_1 : i32
    scf.if %5 {
      %c0_i32_2 = arith.constant 0 : i32
      %6 = arith.cmpi eq, %arg1, %c0_i32_2 : i32
      %7 = arith.extui %6 : i1 to i32
      %c0_i32_3 = arith.constant 0 : i32
      %8 = arith.cmpi ne, %7, %c0_i32_3 : i32
      scf.if %8 {
        %c0_51 = arith.constant 0 : index
        %c0_52 = arith.constant 0 : index
        %98 = vector.load %arg22[%c0_51, %c0_52] : memref<8x128xf32, #tpu.memory_space<vmem>>, vector<8x128xf32>
        %c0_53 = arith.constant 0 : index
        %c0_54 = arith.constant 0 : index
        %99 = vector.load %arg5[%c0_53, %c0_54] : memref<1x128xf32, #tpu.memory_space<vmem>>, vector<1x128xf32>
        %100 = vector.broadcast %99 : vector<1x128xf32> to vector<8x128xf32>
        %101 = arith.addf %98, %100 : vector<8x128xf32>
        %cst_55 = arith.constant 0.000000e+00 : f32
        %102 = vector.broadcast %cst_55 : f32 to vector<8x128xf32>
        %103 = arith.maximumf %101, %102 : vector<8x128xf32>
        %104 = math.absf %101 : vector<8x128xf32>
        %cst_56 = arith.constant 0.000000e+00 : f32
        %105 = vector.broadcast %cst_56 : f32 to vector<8x128xf32>
        %106 = arith.subf %105, %104 : vector<8x128xf32>
        %107 = math.exp %106 : vector<8x128xf32>
        %cst_57 = arith.constant 1.000000e+00 : f32
        %108 = vector.broadcast %cst_57 : f32 to vector<8x128xf32>
        %109 = arith.addf %108, %107 : vector<8x128xf32>
        %110 = math.log %109 : vector<8x128xf32>
        %111 = arith.addf %103, %110 : vector<8x128xf32>
        %112 = arith.truncf %111 : vector<8x128xf32> to vector<8x128xbf16>
        %c0_58 = arith.constant 0 : index
        %c0_59 = arith.constant 0 : index
        %113 = vector.load %arg6[%c0_58, %c0_59] : memref<128x128xbf16, #tpu.memory_space<vmem>>, vector<128x128xbf16>
        %cst_60 = arith.constant dense<0.000000e+00> : vector<8x128xf32>
        %114 = tpu.matmul %112, %113, %cst_60 {dimension_numbers = #tpu.dot_dimension_numbers<[1], [0], [0], [1], [0, 0, 1, 1], [], []>} : vector<8x128xbf16>, vector<128x128xbf16>, vector<8x128xf32> -> vector<8x128xf32>
        %c0_61 = arith.constant 0 : index
        %c0_62 = arith.constant 0 : index
        %115 = vector.load %arg7[%c0_61, %c0_62] : memref<1x128xf32, #tpu.memory_space<vmem>>, vector<1x128xf32>
        %116 = vector.broadcast %115 : vector<1x128xf32> to vector<8x128xf32>
        %117 = arith.addf %114, %116 : vector<8x128xf32>
        %cst_63 = arith.constant 0.000000e+00 : f32
        %118 = vector.broadcast %cst_63 : f32 to vector<8x128xf32>
        %119 = arith.maximumf %117, %118 : vector<8x128xf32>
        %120 = math.absf %117 : vector<8x128xf32>
        %cst_64 = arith.constant 0.000000e+00 : f32
        %121 = vector.broadcast %cst_64 : f32 to vector<8x128xf32>
        %122 = arith.subf %121, %120 : vector<8x128xf32>
        %123 = math.exp %122 : vector<8x128xf32>
        %cst_65 = arith.constant 1.000000e+00 : f32
        %124 = vector.broadcast %cst_65 : f32 to vector<8x128xf32>
        %125 = arith.addf %124, %123 : vector<8x128xf32>
        %126 = math.log %125 : vector<8x128xf32>
        %127 = arith.addf %119, %126 : vector<8x128xf32>
        %128 = arith.truncf %127 : vector<8x128xf32> to vector<8x128xbf16>
        %c0_66 = arith.constant 0 : index
        %c0_67 = arith.constant 0 : index
        %129 = vector.load %arg8[%c0_66, %c0_67] : memref<128x16xbf16, #tpu.memory_space<vmem>>, vector<128x16xbf16>
        %cst_68 = arith.constant dense<0.000000e+00> : vector<8x16xf32>
        %130 = tpu.matmul %128, %129, %cst_68 {dimension_numbers = #tpu.dot_dimension_numbers<[1], [0], [0], [1], [0, 0, 1, 1], [], []>} : vector<8x128xbf16>, vector<128x16xbf16>, vector<8x16xf32> -> vector<8x16xf32>
        %c0_69 = arith.constant 0 : index
        %c0_70 = arith.constant 0 : index
        %131 = vector.load %arg9[%c0_69, %c0_70] : memref<1x16xf32, #tpu.memory_space<vmem>>, vector<1x16xf32>
        %132 = vector.broadcast %131 : vector<1x16xf32> to vector<8x16xf32>
        %133 = arith.addf %130, %132 : vector<8x16xf32>
        %c0_71 = arith.constant 0 : index
        %c0_72 = arith.constant 0 : index
        %134 = vector.load %arg18[%c0_71, %c0_72] : memref<1x16xf32, #tpu.memory_space<vmem>>, vector<1x16xf32>
        %cst_73 = arith.constant dense<0.000000e+00> : vector<16xf32>
        %135 = vector.multi_reduction <add>, %133, %cst_73 [0] : vector<8x16xf32> to vector<16xf32>
        %136 = vector.shape_cast %135 : vector<16xf32> to vector<1x16xf32>
        %cst_74 = arith.constant 8.000000e+00 : f32
        %137 = vector.broadcast %cst_74 : f32 to vector<1x16xf32>
        %138 = arith.divf %136, %137 : vector<1x16xf32>
        %139 = vector.broadcast %138 : vector<1x16xf32> to vector<8x16xf32>
        %140 = arith.subf %133, %139 : vector<8x16xf32>
        %141 = arith.mulf %140, %140 : vector<8x16xf32>
        %cst_75 = arith.constant dense<0.000000e+00> : vector<16xf32>
        %142 = vector.multi_reduction <add>, %141, %cst_75 [0] : vector<8x16xf32> to vector<16xf32>
        %143 = vector.shape_cast %142 : vector<16xf32> to vector<1x16xf32>
        %cst_76 = arith.constant 8.000000e+00 : f32
        %144 = vector.broadcast %cst_76 : f32 to vector<1x16xf32>
        %145 = arith.divf %143, %144 : vector<1x16xf32>
        %146 = vector.broadcast %138 : vector<1x16xf32> to vector<8x16xf32>
        %147 = arith.subf %133, %146 : vector<8x16xf32>
        %cst_77 = arith.constant 9.99999974E-6 : f32
        %148 = vector.broadcast %cst_77 : f32 to vector<1x16xf32>
        %149 = arith.addf %145, %148 : vector<1x16xf32>
        %150 = math.rsqrt %149 : vector<1x16xf32>
        %151 = vector.broadcast %150 : vector<1x16xf32> to vector<8x16xf32>
        %152 = arith.mulf %147, %151 : vector<8x16xf32>
        %153 = vector.broadcast %134 : vector<1x16xf32> to vector<8x16xf32>
        %154 = arith.addf %152, %153 : vector<8x16xf32>
        %c0_78 = arith.constant 0 : index
        %c0_79 = arith.constant 0 : index
        %155 = vector.load %arg10[%c0_78, %c0_79] : memref<128x16xbf16, #tpu.memory_space<vmem>>, vector<128x16xbf16>
        %cst_80 = arith.constant dense<0.000000e+00> : vector<8x16xf32>
        %156 = tpu.matmul %128, %155, %cst_80 {dimension_numbers = #tpu.dot_dimension_numbers<[1], [0], [0], [1], [0, 0, 1, 1], [], []>} : vector<8x128xbf16>, vector<128x16xbf16>, vector<8x16xf32> -> vector<8x16xf32>
        %c0_81 = arith.constant 0 : index
        %c0_82 = arith.constant 0 : index
        %157 = vector.load %arg11[%c0_81, %c0_82] : memref<1x16xf32, #tpu.memory_space<vmem>>, vector<1x16xf32>
        %158 = vector.broadcast %157 : vector<1x16xf32> to vector<8x16xf32>
        %159 = arith.addf %156, %158 : vector<8x16xf32>
        %c0_83 = arith.constant 0 : index
        %c0_84 = arith.constant 0 : index
        %160 = vector.load %arg19[%c0_83, %c0_84] : memref<1x16xf32, #tpu.memory_space<vmem>>, vector<1x16xf32>
        %cst_85 = arith.constant dense<0.000000e+00> : vector<16xf32>
        %161 = vector.multi_reduction <add>, %159, %cst_85 [0] : vector<8x16xf32> to vector<16xf32>
        %162 = vector.shape_cast %161 : vector<16xf32> to vector<1x16xf32>
        %cst_86 = arith.constant 8.000000e+00 : f32
        %163 = vector.broadcast %cst_86 : f32 to vector<1x16xf32>
        %164 = arith.divf %162, %163 : vector<1x16xf32>
        %165 = vector.broadcast %164 : vector<1x16xf32> to vector<8x16xf32>
        %166 = arith.subf %159, %165 : vector<8x16xf32>
        %167 = arith.mulf %166, %166 : vector<8x16xf32>
        %cst_87 = arith.constant dense<0.000000e+00> : vector<16xf32>
        %168 = vector.multi_reduction <add>, %167, %cst_87 [0] : vector<8x16xf32> to vector<16xf32>
        %169 = vector.shape_cast %168 : vector<16xf32> to vector<1x16xf32>
        %cst_88 = arith.constant 8.000000e+00 : f32
        %170 = vector.broadcast %cst_88 : f32 to vector<1x16xf32>
        %171 = arith.divf %169, %170 : vector<1x16xf32>
        %172 = vector.broadcast %164 : vector<1x16xf32> to vector<8x16xf32>
        %173 = arith.subf %159, %172 : vector<8x16xf32>
        %cst_89 = arith.constant 9.99999974E-6 : f32
        %174 = vector.broadcast %cst_89 : f32 to vector<1x16xf32>
        %175 = arith.addf %171, %174 : vector<1x16xf32>
        %176 = math.rsqrt %175 : vector<1x16xf32>
        %177 = vector.broadcast %176 : vector<1x16xf32> to vector<8x16xf32>
        %178 = arith.mulf %173, %177 : vector<8x16xf32>
        %179 = vector.broadcast %160 : vector<1x16xf32> to vector<8x16xf32>
        %180 = arith.addf %178, %179 : vector<8x16xf32>
        %c0_90 = arith.constant 0 : index
        %c0_91 = arith.constant 0 : index
        %181 = vector.load %arg3[%c0_90, %c0_91] : memref<8x16xf32, #tpu.memory_space<vmem>>, vector<8x16xf32>
        %cst_92 = arith.constant 5.000000e-01 : f32
        %182 = vector.broadcast %cst_92 : f32 to vector<8x16xf32>
        %183 = arith.mulf %182, %180 : vector<8x16xf32>
        %184 = math.exp %183 : vector<8x16xf32>
        %185 = arith.mulf %181, %184 : vector<8x16xf32>
        %186 = arith.addf %154, %185 : vector<8x16xf32>
        %cst_93 = arith.constant dense<0xFF800000> : vector<8xf32>
        %187 = vector.multi_reduction <maximumf>, %186, %cst_93 [1] : vector<8x16xf32> to vector<8xf32>
        %188 = vector.shape_cast %187 : vector<8xf32> to vector<8x1xf32>
        %189 = vector.broadcast %188 : vector<8x1xf32> to vector<8x16xf32>
        %190 = arith.subf %186, %189 : vector<8x16xf32>
        %191 = math.exp %190 : vector<8x16xf32>
        %cst_94 = arith.constant dense<0.000000e+00> : vector<8xf32>
        %192 = vector.multi_reduction <add>, %191, %cst_94 [1] : vector<8x16xf32> to vector<8xf32>
        %193 = vector.shape_cast %192 : vector<8xf32> to vector<8x1xf32>
        %194 = tpu.reciprocal %193 {approx = true} : vector<8x1xf32> -> vector<8x1xf32>
        %195 = vector.broadcast %194 : vector<8x1xf32> to vector<8x16xf32>
        %196 = arith.mulf %191, %195 : vector<8x16xf32>
        %c0_95 = arith.constant 0 : index
        %c0_96 = arith.constant 0 : index
        %197 = vector.load %arg23[%c0_95, %c0_96] : memref<8x16xf32, #tpu.memory_space<vmem>>, vector<8x16xf32>
        tpu.vector_store %arg23[%c0_95, %c0_96], %196 {strides = array<i32>} : memref<8x16xf32, #tpu.memory_space<vmem>>, vector<8x16xf32>,
        %198 = math.exp %180 : vector<8x16xf32>
        %c0_97 = arith.constant 0 : index
        %c0_98 = arith.constant 0 : index
        %199 = vector.load %arg12[%c0_97, %c0_98] : memref<1x16xf32, #tpu.memory_space<vmem>>, vector<1x16xf32>
        %200 = vector.broadcast %199 : vector<1x16xf32> to vector<8x16xf32>
        %201 = arith.subf %154, %200 : vector<8x16xf32>
        %c0_99 = arith.constant 0 : index
        %c0_100 = arith.constant 0 : index
        %202 = vector.load %arg13[%c0_99, %c0_100] : memref<1x16xf32, #tpu.memory_space<vmem>>, vector<1x16xf32>
        %203 = vector.broadcast %202 : vector<1x16xf32> to vector<8x16xf32>
        %204 = arith.mulf %198, %203 : vector<8x16xf32>
        %205 = arith.mulf %201, %201 : vector<8x16xf32>
        %c0_101 = arith.constant 0 : index
        %c0_102 = arith.constant 0 : index
        %206 = vector.load %arg13[%c0_101, %c0_102] : memref<1x16xf32, #tpu.memory_space<vmem>>, vector<1x16xf32>
        %207 = vector.broadcast %206 : vector<1x16xf32> to vector<8x16xf32>
        %208 = arith.mulf %205, %207 : vector<8x16xf32>
        %209 = arith.addf %204, %208 : vector<8x16xf32>
        %c0_103 = arith.constant 0 : index
        %c0_104 = arith.constant 0 : index
        %210 = vector.load %arg14[%c0_103, %c0_104] : memref<1x16xf32, #tpu.memory_space<vmem>>, vector<1x16xf32>
        %211 = vector.broadcast %210 : vector<1x16xf32> to vector<8x16xf32>
        %212 = arith.addf %209, %211 : vector<8x16xf32>
        %213 = arith.subf %212, %180 : vector<8x16xf32>
        %cst_105 = arith.constant dense<0.000000e+00> : vector<8xf32>
        %214 = vector.multi_reduction <add>, %213, %cst_105 [1] : vector<8x16xf32> to vector<8xf32>
        %215 = vector.shape_cast %214 : vector<8xf32> to vector<8x1xf32>
        %cst_106 = arith.constant 1.600000e+01 : f32
        %216 = vector.broadcast %cst_106 : f32 to vector<8x1xf32>
        %217 = arith.subf %215, %216 : vector<8x1xf32>
        %cst_107 = arith.constant 5.000000e-01 : f32
        %218 = vector.broadcast %cst_107 : f32 to vector<8x1xf32>
        %219 = arith.mulf %218, %217 : vector<8x1xf32>
        %cst_108 = arith.constant dense<0.000000e+00> : vector<1xf32>
        %220 = vector.multi_reduction <add>, %219, %cst_108 [0] : vector<8x1xf32> to vector<1xf32>
        %221 = vector.shape_cast %220 : vector<1xf32> to vector<1x1xf32>
        %cst_109 = arith.constant 1.250000e-01 : f32
        %222 = vector.broadcast %cst_109 : f32 to vector<1x1xf32>
        %223 = arith.mulf %221, %222 : vector<1x1xf32>
        %c0_110 = arith.constant 0 : index
        %c0_111 = arith.constant 0 : index
        %224 = vector.load %arg29[%c0_110, %c0_111] : memref<1x1xf32, #tpu.memory_space<vmem>>, vector<1x1xf32>
        tpu.vector_store %arg29[%c0_110, %c0_111], %223 {strides = array<i32>} : memref<1x1xf32, #tpu.memory_space<vmem>>, vector<1x1xf32>,
        %cst_112 = arith.constant 0xFF800000 : f32
        %225 = vector.broadcast %cst_112 : f32 to vector<8x1xf32>
        %c0_113 = arith.constant 0 : index
        %c0_114 = arith.constant 0 : index
        %226 = vector.load %arg25[%c0_113, %c0_114] : memref<8x1xf32, #tpu.memory_space<vmem>>, vector<8x1xf32>
        tpu.vector_store %arg25[%c0_113, %c0_114], %225 {strides = array<i32>} : memref<8x1xf32, #tpu.memory_space<vmem>>, vector<8x1xf32>,
        %cst_115 = arith.constant 0.000000e+00 : f32
        %227 = vector.broadcast %cst_115 : f32 to vector<8x1xf32>
        %c0_116 = arith.constant 0 : index
        %c0_117 = arith.constant 0 : index
        %228 = vector.load %arg26[%c0_116, %c0_117] : memref<8x1xf32, #tpu.memory_space<vmem>>, vector<8x1xf32>
        tpu.vector_store %arg26[%c0_116, %c0_117], %227 {strides = array<i32>} : memref<8x1xf32, #tpu.memory_space<vmem>>, vector<8x1xf32>,
        %cst_118 = arith.constant 0.000000e+00 : f32
        %229 = vector.broadcast %cst_118 : f32 to vector<8x1xf32>
        %c0_119 = arith.constant 0 : index
        %c0_120 = arith.constant 0 : index
        %230 = vector.load %arg27[%c0_119, %c0_120] : memref<8x1xf32, #tpu.memory_space<vmem>>, vector<8x1xf32>
        tpu.vector_store %arg27[%c0_119, %c0_120], %229 {strides = array<i32>} : memref<8x1xf32, #tpu.memory_space<vmem>>, vector<8x1xf32>,
        %cst_121 = arith.constant 0.000000e+00 : f32
        %231 = vector.broadcast %cst_121 : f32 to vector<8x1xf32>
        %c0_122 = arith.constant 0 : index
        %c0_123 = arith.constant 0 : index
        %232 = vector.load %arg28[%c0_122, %c0_123] : memref<8x1xf32, #tpu.memory_space<vmem>>, vector<8x1xf32>
        tpu.vector_store %arg28[%c0_122, %c0_123], %231 {strides = array<i32>} : memref<8x1xf32, #tpu.memory_space<vmem>>, vector<8x1xf32>,
      } else {
      }
      %c0 = arith.constant 0 : index
      %c0_4 = arith.constant 0 : index
      %9 = vector.load %arg15[%c0, %c0_4] : memref<16x32xf32, #tpu.memory_space<vmem>>, vector<16x32xf32>
      %10 = arith.mulf %9, %9 : vector<16x32xf32>
      %cst = arith.constant dense<0.000000e+00> : vector<16xf32>
      %11 = vector.multi_reduction <add>, %10, %cst [1] : vector<16x32xf32> to vector<16xf32>
      %12 = vector.shape_cast %11 : vector<16xf32> to vector<16x1xf32>
      %13 = arith.truncf %9 : vector<16x32xf32> to vector<16x32xbf16>
      %c0_5 = arith.constant 0 : index
      %c0_6 = arith.constant 0 : index
      %14 = vector.load %arg16[%c0_5, %c0_6] : memref<32x128xbf16, #tpu.memory_space<vmem>>, vector<32x128xbf16>
      %cst_7 = arith.constant dense<0.000000e+00> : vector<16x128xf32>
      %15 = tpu.matmul %13, %14, %cst_7 {dimension_numbers = #tpu.dot_dimension_numbers<[1], [0], [0], [1], [0, 0, 1, 1], [], []>} : vector<16x32xbf16>, vector<32x128xbf16>, vector<16x128xf32> -> vector<16x128xf32>
      %c0_8 = arith.constant 0 : index
      %c0_9 = arith.constant 0 : index
      %16 = vector.load %arg17[%c0_8, %c0_9] : memref<1x128xf32, #tpu.memory_space<vmem>>, vector<1x128xf32>
      %17 = vector.broadcast %12 : vector<16x1xf32> to vector<16x128xf32>
      %18 = vector.broadcast %16 : vector<1x128xf32> to vector<16x128xf32>
      %19 = arith.addf %17, %18 : vector<16x128xf32>
      %cst_10 = arith.constant 2.000000e+00 : f32
      %20 = vector.broadcast %cst_10 : f32 to vector<16x128xf32>
      %21 = arith.mulf %20, %15 : vector<16x128xf32>
      %22 = arith.subf %19, %21 : vector<16x128xf32>
      %c128_i32 = arith.constant 128 : i32
      %23 = arith.muli %arg1, %c128_i32 : i32
      %24 = tpu.assume_multiple %23, 128 : i32
      %c0_11 = arith.constant 0 : index
      %25 = arith.index_cast %24 : i32 to index
      %26 = vector.load %arg24[%c0_11, %25] : memref<16x512xf32, #tpu.memory_space<vmem>>, vector<16x128xf32>
      tpu.vector_store %arg24[%c0_11, %25], %22 {strides = array<i32>} : memref<16x512xf32, #tpu.memory_space<vmem>>, vector<16x128xf32>,
      %cst_12 = arith.constant 0.000000e+00 : f32
      %27 = vector.broadcast %cst_12 : f32 to vector<16x128xf32>
      %28 = arith.subf %27, %22 : vector<16x128xf32>
      %cst_13 = arith.constant 5.000000e+00 : f32
      %29 = vector.broadcast %cst_13 : f32 to vector<16x128xf32>
      %30 = arith.mulf %28, %29 : vector<16x128xf32>
      %cst_14 = arith.constant dense<0xFF800000> : vector<128xf32>
      %31 = vector.multi_reduction <maximumf>, %30, %cst_14 [0] : vector<16x128xf32> to vector<128xf32>
      %32 = vector.shape_cast %31 : vector<128xf32> to vector<1x128xf32>
      %33 = vector.broadcast %32 : vector<1x128xf32> to vector<16x128xf32>
      %34 = arith.subf %30, %33 : vector<16x128xf32>
      %35 = math.exp %34 : vector<16x128xf32>
      %cst_15 = arith.constant dense<0.000000e+00> : vector<128xf32>
      %36 = vector.multi_reduction <add>, %35, %cst_15 [0] : vector<16x128xf32> to vector<128xf32>
      %37 = vector.shape_cast %36 : vector<128xf32> to vector<1x128xf32>
      %38 = tpu.reciprocal %37 {approx = true} : vector<1x128xf32> -> vector<1x128xf32>
      %39 = vector.broadcast %38 : vector<1x128xf32> to vector<16x128xf32>
      %40 = arith.mulf %35, %39 : vector<16x128xf32>
      %c0_16 = arith.constant 0 : index
      %c0_17 = arith.constant 0 : index
      %41 = vector.load %arg23[%c0_16, %c0_17] : memref<8x16xf32, #tpu.memory_space<vmem>>, vector<8x16xf32>
      %42 = arith.truncf %41 : vector<8x16xf32> to vector<8x16xbf16>
      %43 = arith.truncf %40 : vector<16x128xf32> to vector<16x128xbf16>
      %cst_18 = arith.constant dense<0.000000e+00> : vector<8x128xf32>
      %44 = tpu.matmul %42, %43, %cst_18 {dimension_numbers = #tpu.dot_dimension_numbers<[1], [0], [0], [1], [0, 0, 1, 1], [], []>} : vector<8x16xbf16>, vector<16x128xbf16>, vector<8x128xf32> -> vector<8x128xf32>
      %c0_19 = arith.constant 0 : index
      %c0_20 = arith.constant 0 : index
      %45 = vector.load %arg20[%c0_19, %c0_20] : memref<1x128xf32, #tpu.memory_space<vmem>>, vector<1x128xf32>
      %cst_21 = arith.constant dense<0.000000e+00> : vector<128xf32>
      %46 = vector.multi_reduction <add>, %44, %cst_21 [0] : vector<8x128xf32> to vector<128xf32>
      %47 = vector.shape_cast %46 : vector<128xf32> to vector<1x128xf32>
      %cst_22 = arith.constant 8.000000e+00 : f32
      %48 = vector.broadcast %cst_22 : f32 to vector<1x128xf32>
      %49 = arith.divf %47, %48 : vector<1x128xf32>
      %50 = vector.broadcast %49 : vector<1x128xf32> to vector<8x128xf32>
      %51 = arith.subf %44, %50 : vector<8x128xf32>
      %52 = arith.mulf %51, %51 : vector<8x128xf32>
      %cst_23 = arith.constant dense<0.000000e+00> : vector<128xf32>
      %53 = vector.multi_reduction <add>, %52, %cst_23 [0] : vector<8x128xf32> to vector<128xf32>
      %54 = vector.shape_cast %53 : vector<128xf32> to vector<1x128xf32>
      %cst_24 = arith.constant 8.000000e+00 : f32
      %55 = vector.broadcast %cst_24 : f32 to vector<1x128xf32>
      %56 = arith.divf %54, %55 : vector<1x128xf32>
      %57 = vector.broadcast %49 : vector<1x128xf32> to vector<8x128xf32>
      %58 = arith.subf %44, %57 : vector<8x128xf32>
      %cst_25 = arith.constant 9.99999974E-6 : f32
      %59 = vector.broadcast %cst_25 : f32 to vector<1x128xf32>
      %60 = arith.addf %56, %59 : vector<1x128xf32>
      %61 = math.rsqrt %60 : vector<1x128xf32>
      %62 = vector.broadcast %61 : vector<1x128xf32> to vector<8x128xf32>
      %63 = arith.mulf %58, %62 : vector<8x128xf32>
      %64 = vector.broadcast %45 : vector<1x128xf32> to vector<8x128xf32>
      %65 = arith.addf %63, %64 : vector<8x128xf32>
      %c0_26 = arith.constant 0 : index
      %c0_27 = arith.constant 0 : index
      %66 = vector.load %arg2[%c0_26, %c0_27] : memref<8x128xf32, #tpu.memory_space<vmem>>, vector<8x128xf32>
      %cst_28 = arith.constant dense<0xFF800000> : vector<8xf32>
      %67 = vector.multi_reduction <maximumf>, %65, %cst_28 [1] : vector<8x128xf32> to vector<8xf32>
      %68 = vector.shape_cast %67 : vector<8xf32> to vector<8x1xf32>
      %c0_29 = arith.constant 0 : index
      %c0_30 = arith.constant 0 : index
      %69 = vector.load %arg25[%c0_29, %c0_30] : memref<8x1xf32, #tpu.memory_space<vmem>>, vector<8x1xf32>
      %70 = arith.maximumf %69, %68 : vector<8x1xf32>
      %c0_31 = arith.constant 0 : index
      %c0_32 = arith.constant 0 : index
      %71 = vector.load %arg26[%c0_31, %c0_32] : memref<8x1xf32, #tpu.memory_space<vmem>>, vector<8x1xf32>
      %c0_33 = arith.constant 0 : index
      %c0_34 = arith.constant 0 : index
      %72 = vector.load %arg25[%c0_33, %c0_34] : memref<8x1xf32, #tpu.memory_space<vmem>>, vector<8x1xf32>
      %73 = arith.subf %72, %70 : vector<8x1xf32>
      %74 = math.exp %73 : vector<8x1xf32>
      %75 = arith.mulf %71, %74 : vector<8x1xf32>
      %76 = vector.broadcast %70 : vector<8x1xf32> to vector<8x128xf32>
      %77 = arith.subf %65, %76 : vector<8x128xf32>
      %78 = math.exp %77 : vector<8x128xf32>
      %cst_35 = arith.constant dense<0.000000e+00> : vector<8xf32>
      %79 = vector.multi_reduction <add>, %78, %cst_35 [1] : vector<8x128xf32> to vector<8xf32>
      %80 = vector.shape_cast %79 : vector<8xf32> to vector<8x1xf32>
      %81 = arith.addf %75, %80 : vector<8x1xf32>
      %c0_36 = arith.constant 0 : index
      %c0_37 = arith.constant 0 : index
      %82 = vector.load %arg26[%c0_36, %c0_37] : memref<8x1xf32, #tpu.memory_space<vmem>>, vector<8x1xf32>
      tpu.vector_store %arg26[%c0_36, %c0_37], %81 {strides = array<i32>} : memref<8x1xf32, #tpu.memory_space<vmem>>, vector<8x1xf32>,
      %c0_38 = arith.constant 0 : index
      %c0_39 = arith.constant 0 : index
      %83 = vector.load %arg25[%c0_38, %c0_39] : memref<8x1xf32, #tpu.memory_space<vmem>>, vector<8x1xf32>
      tpu.vector_store %arg25[%c0_38, %c0_39], %70 {strides = array<i32>} : memref<8x1xf32, #tpu.memory_space<vmem>>, vector<8x1xf32>,
      %c0_40 = arith.constant 0 : index
      %c0_41 = arith.constant 0 : index
      %84 = vector.load %arg27[%c0_40, %c0_41] : memref<8x1xf32, #tpu.memory_space<vmem>>, vector<8x1xf32>
      %85 = arith.mulf %66, %65 : vector<8x128xf32>
      %cst_42 = arith.constant dense<0.000000e+00> : vector<8xf32>
      %86 = vector.multi_reduction <add>, %85, %cst_42 [1] : vector<8x128xf32> to vector<8xf32>
      %87 = vector.shape_cast %86 : vector<8xf32> to vector<8x1xf32>
      %88 = arith.addf %84, %87 : vector<8x1xf32>
      %c0_43 = arith.constant 0 : index
      %c0_44 = arith.constant 0 : index
      %89 = vector.load %arg27[%c0_43, %c0_44] : memref<8x1xf32, #tpu.memory_space<vmem>>, vector<8x1xf32>
      tpu.vector_store %arg27[%c0_43, %c0_44], %88 {strides = array<i32>} : memref<8x1xf32, #tpu.memory_space<vmem>>, vector<8x1xf32>,
      %c0_45 = arith.constant 0 : index
      %c0_46 = arith.constant 0 : index
      %90 = vector.load %arg28[%c0_45, %c0_46] : memref<8x1xf32, #tpu.memory_space<vmem>>, vector<8x1xf32>
      %cst_47 = arith.constant dense<0.000000e+00> : vector<8xf32>
      %91 = vector.multi_reduction <add>, %66, %cst_47 [1] : vector<8x128xf32> to vector<8xf32>
      %92 = vector.shape_cast %91 : vector<8xf32> to vector<8x1xf32>
      %93 = arith.addf %90, %92 : vector<8x1xf32>
      %c0_48 = arith.constant 0 : index
      %c0_49 = arith.constant 0 : index
      %94 = vector.load %arg28[%c0_48, %c0_49] : memref<8x1xf32, #tpu.memory_space<vmem>>, vector<8x1xf32>
      tpu.vector_store %arg28[%c0_48, %c0_49], %93 {strides = array<i32>} : memref<8x1xf32, #tpu.memory_space<vmem>>, vector<8x1xf32>,
      %c3_i32 = arith.constant 3 : i32
      %95 = arith.cmpi eq, %arg1, %c3_i32 : i32
      %96 = arith.extui %95 : i1 to i32
      %c0_i32_50 = arith.constant 0 : i32
      %97 = arith.cmpi ne, %96, %c0_i32_50 : i32
      scf.if %97 {
        %c0_51 = arith.constant 0 : index
        %c0_52 = arith.constant 0 : index
        %98 = vector.load %arg25[%c0_51, %c0_52] : memref<8x1xf32, #tpu.memory_space<vmem>>, vector<8x1xf32>
        %c0_53 = arith.constant 0 : index
        %c0_54 = arith.constant 0 : index
        %99 = vector.load %arg26[%c0_53, %c0_54] : memref<8x1xf32, #tpu.memory_space<vmem>>, vector<8x1xf32>
        %100 = math.log %99 : vector<8x1xf32>
        %101 = arith.addf %98, %100 : vector<8x1xf32>
        %c0_55 = arith.constant 0 : index
        %c0_56 = arith.constant 0 : index
        %102 = vector.load %arg28[%c0_55, %c0_56] : memref<8x1xf32, #tpu.memory_space<vmem>>, vector<8x1xf32>
        %103 = arith.mulf %102, %101 : vector<8x1xf32>
        %c0_57 = arith.constant 0 : index
        %c0_58 = arith.constant 0 : index
        %104 = vector.load %arg27[%c0_57, %c0_58] : memref<8x1xf32, #tpu.memory_space<vmem>>, vector<8x1xf32>
        %105 = arith.subf %103, %104 : vector<8x1xf32>
        %cst_59 = arith.constant dense<0.000000e+00> : vector<1xf32>
        %106 = vector.multi_reduction <add>, %105, %cst_59 [0] : vector<8x1xf32> to vector<1xf32>
        %107 = vector.shape_cast %106 : vector<1xf32> to vector<1x1xf32>
        %cst_60 = arith.constant 1.250000e-01 : f32
        %108 = vector.broadcast %cst_60 : f32 to vector<1x1xf32>
        %109 = arith.mulf %107, %108 : vector<1x1xf32>
        %c0_61 = arith.constant 0 : index
        %c0_62 = arith.constant 0 : index
        %110 = vector.load %arg29[%c0_61, %c0_62] : memref<1x1xf32, #tpu.memory_space<vmem>>, vector<1x1xf32>
        %111 = arith.addf %109, %110 : vector<1x1xf32>
        %c0_63 = arith.constant 0 : index
        %c0_64 = arith.constant 0 : index
        %112 = vector.load %arg24[%c0_63, %c0_64] : memref<16x512xf32, #tpu.memory_space<vmem>>, vector<16x512xf32>
        %cst_65 = arith.constant 0.000000e+00 : f32
        %113 = vector.broadcast %cst_65 : f32 to vector<16x512xf32>
        %114 = arith.subf %113, %112 : vector<16x512xf32>
        %cst_66 = arith.constant 2.000000e+01 : f32
        %115 = vector.broadcast %cst_66 : f32 to vector<16x512xf32>
        %116 = arith.mulf %114, %115 : vector<16x512xf32>
        %117 = math.exp %116 : vector<16x512xf32>
        %cst_67 = arith.constant 6.250000e-02 : f32
        %118 = vector.broadcast %cst_67 : f32 to vector<16x1xf32>
        %cst_68 = arith.constant 0.001953125 : f32
        %119 = vector.broadcast %cst_68 : f32 to vector<1x512xf32>
        %c0_i32_69 = arith.constant 0 : i32
        %c10_i32 = arith.constant 10 : i32
        %120 = arith.addi %c0_i32_69, %c10_i32 : i32
        %c1_i32_70 = arith.constant 1 : i32
        %121:2 = scf.for %arg30 = %c0_i32_69 to %120 step %c1_i32_70 iter_args(%arg31 = %118, %arg32 = %119) -> (vector<16x1xf32>, vector<1x512xf32>)  : i32 {
          %163 = vector.broadcast %arg31 : vector<16x1xf32> to vector<16x512xf32>
          %164 = arith.mulf %117, %163 : vector<16x512xf32>
          %cst_79 = arith.constant dense<0.000000e+00> : vector<512xf32>
          %165 = vector.multi_reduction <add>, %164, %cst_79 [0] : vector<16x512xf32> to vector<512xf32>
          %166 = vector.shape_cast %165 : vector<512xf32> to vector<1x512xf32>
          %cst_80 = arith.constant 1.000000e-16 : f32
          %167 = vector.broadcast %cst_80 : f32 to vector<1x512xf32>
          %168 = arith.addf %166, %167 : vector<1x512xf32>
          %169 = tpu.reciprocal %168 {approx = true} : vector<1x512xf32> -> vector<1x512xf32>
          %cst_81 = arith.constant 0.001953125 : f32
          %170 = vector.broadcast %cst_81 : f32 to vector<1x512xf32>
          %171 = arith.mulf %170, %169 : vector<1x512xf32>
          %172 = vector.broadcast %171 : vector<1x512xf32> to vector<16x512xf32>
          %173 = arith.mulf %117, %172 : vector<16x512xf32>
          %cst_82 = arith.constant dense<0.000000e+00> : vector<16xf32>
          %174 = vector.multi_reduction <add>, %173, %cst_82 [1] : vector<16x512xf32> to vector<16xf32>
          %175 = vector.shape_cast %174 : vector<16xf32> to vector<16x1xf32>
          %cst_83 = arith.constant 1.000000e-16 : f32
          %176 = vector.broadcast %cst_83 : f32 to vector<16x1xf32>
          %177 = arith.addf %175, %176 : vector<16x1xf32>
          %178 = tpu.reciprocal %177 {approx = true} : vector<16x1xf32> -> vector<16x1xf32>
          %cst_84 = arith.constant 6.250000e-02 : f32
          %179 = vector.broadcast %cst_84 : f32 to vector<16x1xf32>
          %180 = arith.mulf %179, %178 : vector<16x1xf32>
          %181 = vector.broadcast %180 : vector<16x1xf32> to vector<16x512xf32>
          %182 = arith.mulf %117, %181 : vector<16x512xf32>
          %cst_85 = arith.constant dense<0.000000e+00> : vector<512xf32>
          %183 = vector.multi_reduction <add>, %182, %cst_85 [0] : vector<16x512xf32> to vector<512xf32>
          %184 = vector.shape_cast %183 : vector<512xf32> to vector<1x512xf32>
          %cst_86 = arith.constant 1.000000e-16 : f32
          %185 = vector.broadcast %cst_86 : f32 to vector<1x512xf32>
          %186 = arith.addf %184, %185 : vector<1x512xf32>
          %187 = tpu.reciprocal %186 {approx = true} : vector<1x512xf32> -> vector<1x512xf32>
          %cst_87 = arith.constant 0.001953125 : f32
          %188 = vector.broadcast %cst_87 : f32 to vector<1x512xf32>
          %189 = arith.mulf %188, %187 : vector<1x512xf32>
          %190 = vector.broadcast %189 : vector<1x512xf32> to vector<16x512xf32>
          %191 = arith.mulf %117, %190 : vector<16x512xf32>
          %cst_88 = arith.constant dense<0.000000e+00> : vector<16xf32>
          %192 = vector.multi_reduction <add>, %191, %cst_88 [1] : vector<16x512xf32> to vector<16xf32>
          %193 = vector.shape_cast %192 : vector<16xf32> to vector<16x1xf32>
          %cst_89 = arith.constant 1.000000e-16 : f32
          %194 = vector.broadcast %cst_89 : f32 to vector<16x1xf32>
          %195 = arith.addf %193, %194 : vector<16x1xf32>
          %196 = tpu.reciprocal %195 {approx = true} : vector<16x1xf32> -> vector<16x1xf32>
          %cst_90 = arith.constant 6.250000e-02 : f32
          %197 = vector.broadcast %cst_90 : f32 to vector<16x1xf32>
          %198 = arith.mulf %197, %196 : vector<16x1xf32>
          %199 = vector.broadcast %198 : vector<16x1xf32> to vector<16x512xf32>
          %200 = arith.mulf %117, %199 : vector<16x512xf32>
          %cst_91 = arith.constant dense<0.000000e+00> : vector<512xf32>
          %201 = vector.multi_reduction <add>, %200, %cst_91 [0] : vector<16x512xf32> to vector<512xf32>
          %202 = vector.shape_cast %201 : vector<512xf32> to vector<1x512xf32>
          %cst_92 = arith.constant 1.000000e-16 : f32
          %203 = vector.broadcast %cst_92 : f32 to vector<1x512xf32>
          %204 = arith.addf %202, %203 : vector<1x512xf32>
          %205 = tpu.reciprocal %204 {approx = true} : vector<1x512xf32> -> vector<1x512xf32>
          %cst_93 = arith.constant 0.001953125 : f32
          %206 = vector.broadcast %cst_93 : f32 to vector<1x512xf32>
          %207 = arith.mulf %206, %205 : vector<1x512xf32>
          %208 = vector.broadcast %207 : vector<1x512xf32> to vector<16x512xf32>
          %209 = arith.mulf %117, %208 : vector<16x512xf32>
          %cst_94 = arith.constant dense<0.000000e+00> : vector<16xf32>
          %210 = vector.multi_reduction <add>, %209, %cst_94 [1] : vector<16x512xf32> to vector<16xf32>
          %211 = vector.shape_cast %210 : vector<16xf32> to vector<16x1xf32>
          %cst_95 = arith.constant 1.000000e-16 : f32
          %212 = vector.broadcast %cst_95 : f32 to vector<16x1xf32>
          %213 = arith.addf %211, %212 : vector<16x1xf32>
          %214 = tpu.reciprocal %213 {approx = true} : vector<16x1xf32> -> vector<16x1xf32>
          %cst_96 = arith.constant 6.250000e-02 : f32
          %215 = vector.broadcast %cst_96 : f32 to vector<16x1xf32>
          %216 = arith.mulf %215, %214 : vector<16x1xf32>
          %217 = vector.broadcast %216 : vector<16x1xf32> to vector<16x512xf32>
          %218 = arith.mulf %117, %217 : vector<16x512xf32>
          %cst_97 = arith.constant dense<0.000000e+00> : vector<512xf32>
          %219 = vector.multi_reduction <add>, %218, %cst_97 [0] : vector<16x512xf32> to vector<512xf32>
          %220 = vector.shape_cast %219 : vector<512xf32> to vector<1x512xf32>
          %cst_98 = arith.constant 1.000000e-16 : f32
          %221 = vector.broadcast %cst_98 : f32 to vector<1x512xf32>
          %222 = arith.addf %220, %221 : vector<1x512xf32>
          %223 = tpu.reciprocal %222 {approx = true} : vector<1x512xf32> -> vector<1x512xf32>
          %cst_99 = arith.constant 0.001953125 : f32
          %224 = vector.broadcast %cst_99 : f32 to vector<1x512xf32>
          %225 = arith.mulf %224, %223 : vector<1x512xf32>
          %226 = vector.broadcast %225 : vector<1x512xf32> to vector<16x512xf32>
          %227 = arith.mulf %117, %226 : vector<16x512xf32>
          %cst_100 = arith.constant dense<0.000000e+00> : vector<16xf32>
          %228 = vector.multi_reduction <add>, %227, %cst_100 [1] : vector<16x512xf32> to vector<16xf32>
          %229 = vector.shape_cast %228 : vector<16xf32> to vector<16x1xf32>
          %cst_101 = arith.constant 1.000000e-16 : f32
          %230 = vector.broadcast %cst_101 : f32 to vector<16x1xf32>
          %231 = arith.addf %229, %230 : vector<16x1xf32>
          %232 = tpu.reciprocal %231 {approx = true} : vector<16x1xf32> -> vector<16x1xf32>
          %cst_102 = arith.constant 6.250000e-02 : f32
          %233 = vector.broadcast %cst_102 : f32 to vector<16x1xf32>
          %234 = arith.mulf %233, %232 : vector<16x1xf32>
          %235 = vector.broadcast %234 : vector<16x1xf32> to vector<16x512xf32>
          %236 = arith.mulf %117, %235 : vector<16x512xf32>
          %cst_103 = arith.constant dense<0.000000e+00> : vector<512xf32>
          %237 = vector.multi_reduction <add>, %236, %cst_103 [0] : vector<16x512xf32> to vector<512xf32>
          %238 = vector.shape_cast %237 : vector<512xf32> to vector<1x512xf32>
          %cst_104 = arith.constant 1.000000e-16 : f32
          %239 = vector.broadcast %cst_104 : f32 to vector<1x512xf32>
          %240 = arith.addf %238, %239 : vector<1x512xf32>
          %241 = tpu.reciprocal %240 {approx = true} : vector<1x512xf32> -> vector<1x512xf32>
          %cst_105 = arith.constant 0.001953125 : f32
          %242 = vector.broadcast %cst_105 : f32 to vector<1x512xf32>
          %243 = arith.mulf %242, %241 : vector<1x512xf32>
          %244 = vector.broadcast %243 : vector<1x512xf32> to vector<16x512xf32>
          %245 = arith.mulf %117, %244 : vector<16x512xf32>
          %cst_106 = arith.constant dense<0.000000e+00> : vector<16xf32>
          %246 = vector.multi_reduction <add>, %245, %cst_106 [1] : vector<16x512xf32> to vector<16xf32>
          %247 = vector.shape_cast %246 : vector<16xf32> to vector<16x1xf32>
          %cst_107 = arith.constant 1.000000e-16 : f32
          %248 = vector.broadcast %cst_107 : f32 to vector<16x1xf32>
          %249 = arith.addf %247, %248 : vector<16x1xf32>
          %250 = tpu.reciprocal %249 {approx = true} : vector<16x1xf32> -> vector<16x1xf32>
          %cst_108 = arith.constant 6.250000e-02 : f32
          %251 = vector.broadcast %cst_108 : f32 to vector<16x1xf32>
          %252 = arith.mulf %251, %250 : vector<16x1xf32>
          scf.yield %252, %243 : vector<16x1xf32>, vector<1x512xf32>
        }
        %122 = vector.broadcast %121#0 : vector<16x1xf32> to vector<16x512xf32>
        %123 = arith.mulf %122, %117 : vector<16x512xf32>
        %124 = vector.broadcast %121#1 : vector<1x512xf32> to vector<16x512xf32>
        %125 = arith.mulf %124, %112 : vector<16x512xf32>
        %126 = arith.mulf %123, %125 : vector<16x512xf32>
        %cst_71 = arith.constant dense<0.000000e+00> : vector<16xf32>
        %127 = vector.multi_reduction <add>, %126, %cst_71 [1] : vector<16x512xf32> to vector<16xf32>
        %128 = vector.shape_cast %127 : vector<16xf32> to vector<16x1xf32>
        %cst_72 = arith.constant dense<0.000000e+00> : vector<1xf32>
        %129 = vector.multi_reduction <add>, %128, %cst_72 [0] : vector<16x1xf32> to vector<1xf32>
        %130 = vector.shape_cast %129 : vector<1xf32> to vector<1x1xf32>
        %cst_73 = arith.constant 2.500000e+02 : f32
        %131 = vector.broadcast %cst_73 : f32 to vector<1x1xf32>
        %132 = arith.mulf %131, %130 : vector<1x1xf32>
        %133 = arith.addf %111, %132 : vector<1x1xf32>
        %134 = tpu.iota {dimensions = array<i32: 1>} : vector<1x4xi32>
        %c0_i32_74 = arith.constant 0 : i32
        %135 = vector.broadcast %c0_i32_74 : i32 to vector<1x4xi32>
        %136 = arith.cmpi eq, %134, %135 : vector<1x4xi32>
        %137 = arith.extui %136 : vector<1x4xi1> to vector<1x4xi32>
        %138 = arith.sitofp %137 : vector<1x4xi32> to vector<1x4xf32>
        %139 = vector.broadcast %133 : vector<1x1xf32> to vector<1x4xf32>
        %140 = arith.mulf %139, %138 : vector<1x4xf32>
        %c1_i32_75 = arith.constant 1 : i32
        %141 = vector.broadcast %c1_i32_75 : i32 to vector<1x4xi32>
        %142 = arith.cmpi eq, %134, %141 : vector<1x4xi32>
        %143 = arith.extui %142 : vector<1x4xi1> to vector<1x4xi32>
        %144 = arith.sitofp %143 : vector<1x4xi32> to vector<1x4xf32>
        %145 = vector.broadcast %111 : vector<1x1xf32> to vector<1x4xf32>
        %146 = arith.mulf %145, %144 : vector<1x4xf32>
        %147 = arith.addf %140, %146 : vector<1x4xf32>
        %c2_i32 = arith.constant 2 : i32
        %148 = vector.broadcast %c2_i32 : i32 to vector<1x4xi32>
        %149 = arith.cmpi eq, %134, %148 : vector<1x4xi32>
        %150 = arith.extui %149 : vector<1x4xi1> to vector<1x4xi32>
        %151 = arith.sitofp %150 : vector<1x4xi32> to vector<1x4xf32>
        %152 = vector.broadcast %132 : vector<1x1xf32> to vector<1x4xf32>
        %153 = arith.mulf %152, %151 : vector<1x4xf32>
        %154 = arith.addf %147, %153 : vector<1x4xf32>
        %c3_i32_76 = arith.constant 3 : i32
        %155 = vector.broadcast %c3_i32_76 : i32 to vector<1x4xi32>
        %156 = arith.cmpi eq, %134, %155 : vector<1x4xi32>
        %157 = arith.extui %156 : vector<1x4xi1> to vector<1x4xi32>
        %158 = arith.sitofp %157 : vector<1x4xi32> to vector<1x4xf32>
        %159 = vector.broadcast %110 : vector<1x1xf32> to vector<1x4xf32>
        %160 = arith.mulf %159, %158 : vector<1x4xf32>
        %161 = arith.addf %154, %160 : vector<1x4xf32>
        %c0_77 = arith.constant 0 : index
        %c0_78 = arith.constant 0 : index
        %162 = vector.load %arg21[%c0_77, %c0_78] : memref<1x4xf32, #tpu.memory_space<vmem>>, vector<1x4xf32>
        tpu.vector_store %arg21[%c0_77, %c0_78], %161 {strides = array<i32>} : memref<1x4xf32, #tpu.memory_space<vmem>>, vector<1x4xf32>,
      } else {
      }
    } else {
    }
    return
  }
  func.func @transform_0(%arg0: i32, %arg1: i32) -> (i32, i32) {
    %c0_i32 = arith.constant 0 : i32
    %c0_i32_0 = arith.constant 0 : i32
    return %c0_i32, %arg1 : i32, i32
  }
  func.func @transform_1(%arg0: i32, %arg1: i32) -> (i32, i32) {
    %c0_i32 = arith.constant 0 : i32
    %c0_i32_0 = arith.constant 0 : i32
    %c0_i32_1 = arith.constant 0 : i32
    return %c0_i32, %c0_i32_0 : i32, i32
  }
  func.func @transform_2(%arg0: i32, %arg1: i32) -> (i32, i32) {
    %c1_i32 = arith.constant 1 : i32
    %0 = arith.subi %c1_i32, %arg0 : i32
    %1 = arith.muli %arg1, %0 : i32
    %c0_i32 = arith.constant 0 : i32
    %c0_i32_0 = arith.constant 0 : i32
    return %1, %c0_i32 : i32, i32
  }
  func.func @transform_3(%arg0: i32, %arg1: i32) -> (i32, i32) {
    %c0_i32 = arith.constant 0 : i32
    %c0_i32_0 = arith.constant 0 : i32
    %c0_i32_1 = arith.constant 0 : i32
    return %c0_i32, %c0_i32_0 : i32, i32
  }
  func.func @transform_4(%arg0: i32, %arg1: i32) -> (i32, i32) {
    %c0_i32 = arith.constant 0 : i32
    %c0_i32_0 = arith.constant 0 : i32
    %c0_i32_1 = arith.constant 0 : i32
    return %c0_i32, %c0_i32_0 : i32, i32
  }
  func.func @transform_5(%arg0: i32, %arg1: i32) -> (i32, i32) {
    %c0_i32 = arith.constant 0 : i32
    %c0_i32_0 = arith.constant 0 : i32
    %c0_i32_1 = arith.constant 0 : i32
    return %c0_i32, %c0_i32_0 : i32, i32
  }
  func.func @transform_6(%arg0: i32, %arg1: i32) -> (i32, i32) {
    %c0_i32 = arith.constant 0 : i32
    %c0_i32_0 = arith.constant 0 : i32
    %c0_i32_1 = arith.constant 0 : i32
    return %c0_i32, %c0_i32_0 : i32, i32
  }
  func.func @transform_7(%arg0: i32, %arg1: i32) -> (i32, i32) {
    %c0_i32 = arith.constant 0 : i32
    %c0_i32_0 = arith.constant 0 : i32
    %c0_i32_1 = arith.constant 0 : i32
    return %c0_i32, %c0_i32_0 : i32, i32
  }
  func.func @transform_8(%arg0: i32, %arg1: i32) -> (i32, i32) {
    %c0_i32 = arith.constant 0 : i32
    %c0_i32_0 = arith.constant 0 : i32
    %c0_i32_1 = arith.constant 0 : i32
    return %c0_i32, %c0_i32_0 : i32, i32
  }
  func.func @transform_9(%arg0: i32, %arg1: i32) -> (i32, i32) {
    %c0_i32 = arith.constant 0 : i32
    %c0_i32_0 = arith.constant 0 : i32
    %c0_i32_1 = arith.constant 0 : i32
    return %c0_i32, %c0_i32_0 : i32, i32
  }
  func.func @transform_10(%arg0: i32, %arg1: i32) -> (i32, i32) {
    %c0_i32 = arith.constant 0 : i32
    %c0_i32_0 = arith.constant 0 : i32
    %c0_i32_1 = arith.constant 0 : i32
    return %c0_i32, %c0_i32_0 : i32, i32
  }
  func.func @transform_11(%arg0: i32, %arg1: i32) -> (i32, i32) {
    %c0_i32 = arith.constant 0 : i32
    %c0_i32_0 = arith.constant 0 : i32
    %c0_i32_1 = arith.constant 0 : i32
    return %c0_i32, %c0_i32_0 : i32, i32
  }
  func.func @transform_12(%arg0: i32, %arg1: i32) -> (i32, i32) {
    %c0_i32 = arith.constant 0 : i32
    %c0_i32_0 = arith.constant 0 : i32
    %c0_i32_1 = arith.constant 0 : i32
    return %c0_i32, %c0_i32_0 : i32, i32
  }
  func.func @transform_13(%arg0: i32, %arg1: i32) -> (i32, i32) {
    %c0_i32 = arith.constant 0 : i32
    %c0_i32_0 = arith.constant 0 : i32
    %c0_i32_1 = arith.constant 0 : i32
    return %c0_i32, %c0_i32_0 : i32, i32
  }
  func.func @transform_14(%arg0: i32, %arg1: i32) -> (i32, i32) {
    %0 = arith.muli %arg1, %arg0 : i32
    %c0_i32 = arith.constant 0 : i32
    %c0_i32_0 = arith.constant 0 : i32
    return %c0_i32, %0 : i32, i32
  }
  func.func @transform_15(%arg0: i32, %arg1: i32) -> (i32, i32) {
    %0 = arith.muli %arg1, %arg0 : i32
    %c0_i32 = arith.constant 0 : i32
    %c0_i32_0 = arith.constant 0 : i32
    return %c0_i32, %0 : i32, i32
  }
  func.func @transform_16(%arg0: i32, %arg1: i32) -> (i32, i32) {
    %c0_i32 = arith.constant 0 : i32
    %c0_i32_0 = arith.constant 0 : i32
    %c0_i32_1 = arith.constant 0 : i32
    return %c0_i32, %c0_i32_0 : i32, i32
  }
  func.func @transform_17(%arg0: i32, %arg1: i32) -> (i32, i32) {
    %c0_i32 = arith.constant 0 : i32
    %c0_i32_0 = arith.constant 0 : i32
    %c0_i32_1 = arith.constant 0 : i32
    return %c0_i32, %c0_i32_0 : i32, i32
  }
  func.func @transform_18(%arg0: i32, %arg1: i32) -> (i32, i32) {
    %0 = arith.muli %arg1, %arg0 : i32
    %c0_i32 = arith.constant 0 : i32
    %c0_i32_0 = arith.constant 0 : i32
    return %c0_i32, %0 : i32, i32
  }
  func.func @transform_19(%arg0: i32, %arg1: i32) -> (i32, i32) {
    %c0_i32 = arith.constant 0 : i32
    %c0_i32_0 = arith.constant 0 : i32
    %c0_i32_1 = arith.constant 0 : i32
    return %c0_i32, %c0_i32_0 : i32, i32
  }
}

</mosaic_0001>

<llo_original>
// kernel: tpu_custom_call.1
$region0: #{tpu_custom_call.1}
  #allocation0 [shape = 'u32[]', space=smem, size = 0x4, offset = 0x4, fixed_abs, tag = 'smem constant byte address 0x4 - core index']
  #allocation1 [shape = 'u32[144,128]{1,0:T(1,128)}', space=vmem, size = 0x12000, scoped, tag = 'internal scratch']
  #allocation2 [shape = 'f32[8,128]{1,0:T(8,128)}', space=vmem, size = 0x1000, scoped, tag = 'scratch operand']
  #allocation3 [shape = 'f32[8,16]{1,0:T(8,128)}', space=vmem, size = 0x1000, scoped, tag = 'scratch operand']
  #allocation4 [shape = 'f32[16,512]{1,0:T(8,128)}', space=vmem, size = 0x8000, scoped, tag = 'scratch operand']
  #allocation5 [shape = 'f32[8,1]{1,0:T(8,128)}', space=vmem, size = 0x1000, scoped, tag = 'scratch operand']
  #allocation6 [shape = 'f32[8,1]{1,0:T(8,128)}', space=vmem, size = 0x1000, scoped, tag = 'scratch operand']
  #allocation7 [shape = 'f32[8,1]{1,0:T(8,128)}', space=vmem, size = 0x1000, scoped, tag = 'scratch operand']
  #allocation8 [shape = 'f32[8,1]{1,0:T(8,128)}', space=vmem, size = 0x1000, scoped, tag = 'scratch operand']
  #allocation9 [shape = 'f32[1,1]{1,0:T(1,128)}', space=vmem, size = 0x200, scoped, tag = 'scratch operand']
  %s0 = inlined_call_operand.hbm [shape: f32[8,512], index: 0, kind: input, shape index: {}]
  %s1 = inlined_call_operand.hbm [shape: f32[8,16], index: 1, kind: input, shape index: {}]
  %s2 = inlined_call_operand.hbm [shape: bf16[512,128], index: 2, kind: input, shape index: {}]
  %s3 = inlined_call_operand.vmem [shape: f32[1,128], index: 3, kind: input, shape index: {}]
  %s4 = inlined_call_operand.vmem [shape: bf16[128,128], index: 4, kind: input, shape index: {}]
  %s5 = inlined_call_operand.vmem [shape: f32[1,128], index: 5, kind: input, shape index: {}]
  %s6 = inlined_call_operand.vmem [shape: bf16[128,16], index: 6, kind: input, shape index: {}]
  %s7 = inlined_call_operand.hbm [shape: f32[1,16], index: 7, kind: input, shape index: {}]
  %s8 = inlined_call_operand.vmem [shape: bf16[128,16], index: 8, kind: input, shape index: {}]
  %s9 = inlined_call_operand.vmem [shape: f32[1,16], index: 9, kind: input, shape index: {}]
  %s10 = inlined_call_operand.vmem [shape: f32[1,16], index: 10, kind: input, shape index: {}]
  %s11 = inlined_call_operand.vmem [shape: f32[1,16], index: 11, kind: input, shape index: {}]
  %s12 = inlined_call_operand.vmem [shape: f32[1,16], index: 12, kind: input, shape index: {}]
  %s13 = inlined_call_operand.vmem [shape: f32[16,32], index: 13, kind: input, shape index: {}]
  %s14 = inlined_call_operand.vmem [shape: bf16[32,512], index: 14, kind: input, shape index: {}]
  %s15 = inlined_call_operand.vmem [shape: f32[1,512], index: 15, kind: input, shape index: {}]
  %s16 = inlined_call_operand.vmem [shape: f32[1,16], index: 16, kind: input, shape index: {}]
  %s17 = inlined_call_operand.vmem [shape: f32[1,16], index: 17, kind: input, shape index: {}]
  %s18 = inlined_call_operand.vmem [shape: f32[1,512], index: 18, kind: input, shape index: {}]
  %s19 = inlined_call_operand.hbm [shape: f32[1,4], index: 19, kind: output, shape index: {}]
  %s20 = sld [smem:[#allocation0]]
  $region193: #{tpu_custom_call.1} parent=0
    _
  %s22 = ssub.s32 1, %s20
  %s23 = scalar_select 0, %s22, %s20
  $region1: #{tpu_custom_call.1} parent=0
    #allocation10 [shape = 'u8[8192]{0}', space=vmem, size = 0x2000, scoped, tag = 'input window, operand 0']
    #allocation11 [shape = 's32[2]{0}', space=sflag, size = 0x8, scoped, tag = 'scoped memory for tpu_custom_call.1']
    #allocation12 [shape = 's32[2]{0}', space=sflag, size = 0x8, scoped, tag = 'scoped memory for tpu_custom_call.1']
    #allocation13 [shape = 'u8[4096]{0}', space=vmem, size = 0x1000, scoped, tag = 'input window, operand 1, single buffered']
    #allocation14 [shape = 's32[1]{0}', space=sflag, size = 0x4, scoped, tag = 'scoped memory for tpu_custom_call.1']
    #allocation15 [shape = 'u8[65536]{0}', space=vmem, size = 0x10000, scoped, tag = 'input window, operand 2']
    #allocation16 [shape = 'u8[512]{0}', space=vmem, size = 0x400, scoped, tag = 'input window, operand 7, single buffered']
    #allocation17 [shape = 'u8[16384]{0}', space=vmem, size = 0x4000, scoped, tag = 'input window, operand 14']
    #allocation18 [shape = 'u8[512]{0}', space=vmem, size = 0x400, scoped, tag = 'output window, operand 0, single buffered']
    %24 = vsyncpa [#allocation11], 0
    %s25 = scalar_lea.sflag [#allocation11], 1
    %26 = vsyncpa %s25, 0
    %27 = vsyncpa [#allocation14], 0
    %28 = vsyncpa [#allocation12], 0
    loop: start=0, step=1, limit=10
    $region2: #{tpu_custom_call.1} parent=1 // loop_pre_header
      _
    $region3: #{tpu_custom_call.1} parent=1 // loop_header
      %s30 = sphi 0, %s34
      %p31 = scmp.ge.s32.totalorder %s30, 10
      %s37 = sphi 0, %s49
      %s38 = sphi 0, %s45
      %s39 = sphi 0, %s37
      %s40 = sphi 0, %s38
      %s41 = sphi 0, %s39
      %s42 = sphi 0, %s40
      %s52 = sphi 0, %s54
      %s55 = sphi 0, %s52
      %s56 = sphi 0, %s55
      %s72 = sphi 0, %s56
      %s76 = sphi 0, %s76
      %s78 = sphi 0, %s76
      %s79 = sphi 0, %s78
      %s93 = sphi 0, %s79
      %s103 = sphi 0, %s105
      %s106 = sphi 0, %s103
      %s107 = sphi 0, %s106
      %s123 = sphi 0, %s107
      %s127 = sphi 0, %s127
      %s129 = sphi 0, %s127
      %s130 = sphi 0, %s129
      %s144 = sphi 0, %s130
      %s148 = sphi 0, %s148
      %s150 = sphi 0, %s148
      %s151 = sphi 0, %s150
      %s165 = sphi 0, %s151
      %s169 = sphi 0, %s169
      %s171 = sphi 0, %s169
      %s172 = sphi 0, %s171
      %s186 = sphi 0, %s172
      %s190 = sphi 0, %s190
      %s192 = sphi 0, %s190
      %s193 = sphi 0, %s192
      %s207 = sphi 0, %s193
      %s211 = sphi 0, %s211
      %s213 = sphi 0, %s211
      %s214 = sphi 0, %s213
      %s228 = sphi 0, %s214
      %s232 = sphi 0, %s232
      %s234 = sphi 0, %s232
      %s235 = sphi 0, %s234
      %s249 = sphi 0, %s235
      %s253 = sphi 0, %s253
      %s255 = sphi 0, %s253
      %s256 = sphi 0, %s255
      %s270 = sphi 0, %s256
      %s274 = sphi 0, %s274
      %s276 = sphi 0, %s274
      %s277 = sphi 0, %s276
      %s291 = sphi 0, %s277
      %s295 = sphi 0, %s295
      %s297 = sphi 0, %s295
      %s298 = sphi 0, %s297
      %s312 = sphi 0, %s298
      %s316 = sphi 0, %s316
      %s318 = sphi 0, %s316
      %s319 = sphi 0, %s318
      %s333 = sphi 0, %s319
      %s337 = sphi 0, %s337
      %s339 = sphi 0, %s337
      %s340 = sphi 0, %s339
      %s354 = sphi 0, %s340
      %s362 = sphi 0, %s364
      %s365 = sphi 0, %s362
      %s366 = sphi 0, %s365
      %s382 = sphi 0, %s366
      %s390 = sphi 0, %s392
      %s393 = sphi 0, %s390
      %s394 = sphi 0, %s393
      %s410 = sphi 0, %s394
      %s414 = sphi 0, %s414
      %s416 = sphi 0, %s414
      %s417 = sphi 0, %s416
      %s431 = sphi 0, %s417
      %s435 = sphi 0, %s435
      %s437 = sphi 0, %s435
      %s438 = sphi 0, %s437
      %s452 = sphi 0, %s438
      %s460 = sphi 0, %s462
      %s463 = sphi 0, %s460
      %s464 = sphi 0, %s463
      %s480 = sphi 0, %s464
      %s484 = sphi 0, %s484
      %s486 = sphi 0, %s484
      %s487 = sphi 0, %s486
      %s501 = sphi 0, %s487
    $region4: #{tpu_custom_call.1} parent=1 // loop_header_branch
      %33 = sbr.rel (%p31) target = $region8
    $region5: #{tpu_custom_call.1} parent=1 // loop_body
      %s35 = ssub.s32 %s30, 1
      %s36 = ssub.s32 %s30, 2
      %s43 = sadd.s32 1, %s38
      %p44 = scmp.ge.s32.totalorder %s43, 4
      %s45 = scalar_select %p44, 0, %s43
      %s46 = sadd.s32 1, %s37
      %s47 = scalar_select %p44, %s46, %s37
      %p48 = scmp.ge.s32.totalorder %s47, 2
      %s49 = scalar_select %p48, 0, %s47
      %s50 = ssub.s32 %s38, %s45
      %p51 = scmp.eq.s32.totalorder %s50, 0
      %s53 = sadd.s32 %s52, 1
      %s54 = scalar_select %p51, %s52, %s53
      %p57 = pneg %p51
      %p58 = scmp.eq.s32.totalorder %s30, 7
      %p59 = por %p57, %p58
      %p60 = scmp.ne.s32.totalorder %s52, %s55
      %p61 = scmp.eq.s32.totalorder %s30, 0
      %p62 = por %p60, %p61
      %p63 = scmp.ne.s32.totalorder %s52, %s55
      %p64 = scmp.eq.s32.totalorder %s35, 7
      %p65 = por %p63, %p64
      %p66 = scmp.ne.s32.totalorder %s55, %s56
      %p67 = scmp.eq.s32.totalorder %s35, 0
      %p68 = por %p66, %p67
      %p69 = scmp.ne.s32.totalorder %s55, %s56
      %p70 = scmp.eq.s32.totalorder %s36, 7
      %p71 = por %p69, %p70
      %p73 = scmp.ne.s32.totalorder %s56, %s72
      %p74 = scmp.eq.s32.totalorder %s36, 0
      %p75 = por %p73, %p74
      %s77 = sadd.s32 %s76, 1
      %p80 = scmp.eq.s32.totalorder %s30, 7
      %p81 = scmp.ne.s32.totalorder %s76, %s78
      %p82 = scmp.eq.s32.totalorder %s30, 0
      %p83 = por %p81, %p82
      %p84 = scmp.ne.s32.totalorder %s76, %s78
      %p85 = scmp.eq.s32.totalorder %s35, 7
      %p86 = por %p84, %p85
      %p87 = scmp.ne.s32.totalorder %s78, %s79
      %p88 = scmp.eq.s32.totalorder %s35, 0
      %p89 = por %p87, %p88
      %p90 = scmp.ne.s32.totalorder %s78, %s79
      %p91 = scmp.eq.s32.totalorder %s36, 7
      %p92 = por %p90, %p91
      %p94 = scmp.ne.s32.totalorder %s79, %s93
      %p95 = scmp.eq.s32.totalorder %s36, 0
      %p96 = por %p94, %p95
      %s97 = ssub.s32 1, %s37
      %s98 = smul.u32 %s38, %s97
      %s99 = ssub.s32 1, %s49
      %s100 = smul.u32 %s45, %s99
      %s101 = ssub.s32 %s98, %s100
      %p102 = scmp.eq.s32.totalorder %s101, 0
      %s104 = sadd.s32 %s103, 1
      %s105 = scalar_select %p102, %s103, %s104
      %p108 = pneg %p102
      %p109 = scmp.eq.s32.totalorder %s30, 7
      %p110 = por %p108, %p109
      %p111 = scmp.ne.s32.totalorder %s103, %s106
      %p112 = scmp.eq.s32.totalorder %s30, 0
      %p113 = por %p111, %p112
      %p114 = scmp.ne.s32.totalorder %s103, %s106
      %p115 = scmp.eq.s32.totalorder %s35, 7
      %p116 = por %p114, %p115
      %p117 = scmp.ne.s32.totalorder %s106, %s107
      %p118 = scmp.eq.s32.totalorder %s35, 0
      %p119 = por %p117, %p118
      %p120 = scmp.ne.s32.totalorder %s106, %s107
      %p121 = scmp.eq.s32.totalorder %s36, 7
      %p122 = por %p120, %p121
      %p124 = scmp.ne.s32.totalorder %s107, %s123
      %p125 = scmp.eq.s32.totalorder %s36, 0
      %p126 = por %p124, %p125
      %s128 = sadd.s32 %s127, 1
      %p131 = scmp.eq.s32.totalorder %s30, 7
      %p132 = scmp.ne.s32.totalorder %s127, %s129
      %p133 = scmp.eq.s32.totalorder %s30, 0
      %p134 = por %p132, %p133
      %p135 = scmp.ne.s32.totalorder %s127, %s129
      %p136 = scmp.eq.s32.totalorder %s35, 7
      %p137 = por %p135, %p136
      %p138 = scmp.ne.s32.totalorder %s129, %s130
      %p139 = scmp.eq.s32.totalorder %s35, 0
      %p140 = por %p138, %p139
      %p141 = scmp.ne.s32.totalorder %s129, %s130
      %p142 = scmp.eq.s32.totalorder %s36, 7
      %p143 = por %p141, %p142
      %p145 = scmp.ne.s32.totalorder %s130, %s144
      %p146 = scmp.eq.s32.totalorder %s36, 0
      %p147 = por %p145, %p146
      %s149 = sadd.s32 %s148, 1
      %p152 = scmp.eq.s32.totalorder %s30, 7
      %p153 = scmp.ne.s32.totalorder %s148, %s150
      %p154 = scmp.eq.s32.totalorder %s30, 0
      %p155 = por %p153, %p154
      %p156 = scmp.ne.s32.totalorder %s148, %s150
      %p157 = scmp.eq.s32.totalorder %s35, 7
      %p158 = por %p156, %p157
      %p159 = scmp.ne.s32.totalorder %s150, %s151
      %p160 = scmp.eq.s32.totalorder %s35, 0
      %p161 = por %p159, %p160
      %p162 = scmp.ne.s32.totalorder %s150, %s151
      %p163 = scmp.eq.s32.totalorder %s36, 7
      %p164 = por %p162, %p163
      %p166 = scmp.ne.s32.totalorder %s151, %s165
      %p167 = scmp.eq.s32.totalorder %s36, 0
      %p168 = por %p166, %p167
      %s170 = sadd.s32 %s169, 1
      %p173 = scmp.eq.s32.totalorder %s30, 7
      %p174 = scmp.ne.s32.totalorder %s169, %s171
      %p175 = scmp.eq.s32.totalorder %s30, 0
      %p176 = por %p174, %p175
      %p177 = scmp.ne.s32.totalorder %s169, %s171
      %p178 = scmp.eq.s32.totalorder %s35, 7
      %p179 = por %p177, %p178
      %p180 = scmp.ne.s32.totalorder %s171, %s172
      %p181 = scmp.eq.s32.totalorder %s35, 0
      %p182 = por %p180, %p181
      %p183 = scmp.ne.s32.totalorder %s171, %s172
      %p184 = scmp.eq.s32.totalorder %s36, 7
      %p185 = por %p183, %p184
      %p187 = scmp.ne.s32.totalorder %s172, %s186
      %p188 = scmp.eq.s32.totalorder %s36, 0
      %p189 = por %p187, %p188
      %s191 = sadd.s32 %s190, 1
      %p194 = scmp.eq.s32.totalorder %s30, 7
      %p195 = scmp.ne.s32.totalorder %s190, %s192
      %p196 = scmp.eq.s32.totalorder %s30, 0
      %p197 = por %p195, %p196
      %p198 = scmp.ne.s32.totalorder %s190, %s192
      %p199 = scmp.eq.s32.totalorder %s35, 7
      %p200 = por %p198, %p199
      %p201 = scmp.ne.s32.totalorder %s192, %s193
      %p202 = scmp.eq.s32.totalorder %s35, 0
      %p203 = por %p201, %p202
      %p204 = scmp.ne.s32.totalorder %s192, %s193
      %p205 = scmp.eq.s32.totalorder %s36, 7
      %p206 = por %p204, %p205
      %p208 = scmp.ne.s32.totalorder %s193, %s207
      %p209 = scmp.eq.s32.totalorder %s36, 0
      %p210 = por %p208, %p209
      %s212 = sadd.s32 %s211, 1
      %p215 = scmp.eq.s32.totalorder %s30, 7
      %p216 = scmp.ne.s32.totalorder %s211, %s213
      %p217 = scmp.eq.s32.totalorder %s30, 0
      %p218 = por %p216, %p217
      %p219 = scmp.ne.s32.totalorder %s211, %s213
      %p220 = scmp.eq.s32.totalorder %s35, 7
      %p221 = por %p219, %p220
      %p222 = scmp.ne.s32.totalorder %s213, %s214
      %p223 = scmp.eq.s32.totalorder %s35, 0
      %p224 = por %p222, %p223
      %p225 = scmp.ne.s32.totalorder %s213, %s214
      %p226 = scmp.eq.s32.totalorder %s36, 7
      %p227 = por %p225, %p226
      %p229 = scmp.ne.s32.totalorder %s214, %s228
      %p230 = scmp.eq.s32.totalorder %s36, 0
      %p231 = por %p229, %p230
      %s233 = sadd.s32 %s232, 1
      %p236 = scmp.eq.s32.totalorder %s30, 7
      %p237 = scmp.ne.s32.totalorder %s232, %s234
      %p238 = scmp.eq.s32.totalorder %s30, 0
      %p239 = por %p237, %p238
      %p240 = scmp.ne.s32.totalorder %s232, %s234
      %p241 = scmp.eq.s32.totalorder %s35, 7
      %p242 = por %p240, %p241
      %p243 = scmp.ne.s32.totalorder %s234, %s235
      %p244 = scmp.eq.s32.totalorder %s35, 0
      %p245 = por %p243, %p244
      %p246 = scmp.ne.s32.totalorder %s234, %s235
      %p247 = scmp.eq.s32.totalorder %s36, 7
      %p248 = por %p246, %p247
      %p250 = scmp.ne.s32.totalorder %s235, %s249
      %p251 = scmp.eq.s32.totalorder %s36, 0
      %p252 = por %p250, %p251
      %s254 = sadd.s32 %s253, 1
      %p257 = scmp.eq.s32.totalorder %s30, 7
      %p258 = scmp.ne.s32.totalorder %s253, %s255
      %p259 = scmp.eq.s32.totalorder %s30, 0
      %p260 = por %p258, %p259
      %p261 = scmp.ne.s32.totalorder %s253, %s255
      %p262 = scmp.eq.s32.totalorder %s35, 7
      %p263 = por %p261, %p262
      %p264 = scmp.ne.s32.totalorder %s255, %s256
      %p265 = scmp.eq.s32.totalorder %s35, 0
      %p266 = por %p264, %p265
      %p267 = scmp.ne.s32.totalorder %s255, %s256
      %p268 = scmp.eq.s32.totalorder %s36, 7
      %p269 = por %p267, %p268
      %p271 = scmp.ne.s32.totalorder %s256, %s270
      %p272 = scmp.eq.s32.totalorder %s36, 0
      %p273 = por %p271, %p272
      %s275 = sadd.s32 %s274, 1
      %p278 = scmp.eq.s32.totalorder %s30, 7
      %p279 = scmp.ne.s32.totalorder %s274, %s276
      %p280 = scmp.eq.s32.totalorder %s30, 0
      %p281 = por %p279, %p280
      %p282 = scmp.ne.s32.totalorder %s274, %s276
      %p283 = scmp.eq.s32.totalorder %s35, 7
      %p284 = por %p282, %p283
      %p285 = scmp.ne.s32.totalorder %s276, %s277
      %p286 = scmp.eq.s32.totalorder %s35, 0
      %p287 = por %p285, %p286
      %p288 = scmp.ne.s32.totalorder %s276, %s277
      %p289 = scmp.eq.s32.totalorder %s36, 7
      %p290 = por %p288, %p289
      %p292 = scmp.ne.s32.totalorder %s277, %s291
      %p293 = scmp.eq.s32.totalorder %s36, 0
      %p294 = por %p292, %p293
      %s296 = sadd.s32 %s295, 1
      %p299 = scmp.eq.s32.totalorder %s30, 7
      %p300 = scmp.ne.s32.totalorder %s295, %s297
      %p301 = scmp.eq.s32.totalorder %s30, 0
      %p302 = por %p300, %p301
      %p303 = scmp.ne.s32.totalorder %s295, %s297
      %p304 = scmp.eq.s32.totalorder %s35, 7
      %p305 = por %p303, %p304
      %p306 = scmp.ne.s32.totalorder %s297, %s298
      %p307 = scmp.eq.s32.totalorder %s35, 0
      %p308 = por %p306, %p307
      %p309 = scmp.ne.s32.totalorder %s297, %s298
      %p310 = scmp.eq.s32.totalorder %s36, 7
      %p311 = por %p309, %p310
      %p313 = scmp.ne.s32.totalorder %s298, %s312
      %p314 = scmp.eq.s32.totalorder %s36, 0
      %p315 = por %p313, %p314
      %s317 = sadd.s32 %s316, 1
      %p320 = scmp.eq.s32.totalorder %s30, 7
      %p321 = scmp.ne.s32.totalorder %s316, %s318
      %p322 = scmp.eq.s32.totalorder %s30, 0
      %p323 = por %p321, %p322
      %p324 = scmp.ne.s32.totalorder %s316, %s318
      %p325 = scmp.eq.s32.totalorder %s35, 7
      %p326 = por %p324, %p325
      %p327 = scmp.ne.s32.totalorder %s318, %s319
      %p328 = scmp.eq.s32.totalorder %s35, 0
      %p329 = por %p327, %p328
      %p330 = scmp.ne.s32.totalorder %s318, %s319
      %p331 = scmp.eq.s32.totalorder %s36, 7
      %p332 = por %p330, %p331
      %p334 = scmp.ne.s32.totalorder %s319, %s333
      %p335 = scmp.eq.s32.totalorder %s36, 0
      %p336 = por %p334, %p335
      %s338 = sadd.s32 %s337, 1
      %p341 = scmp.eq.s32.totalorder %s30, 7
      %p342 = scmp.ne.s32.totalorder %s337, %s339
      %p343 = scmp.eq.s32.totalorder %s30, 0
      %p344 = por %p342, %p343
      %p345 = scmp.ne.s32.totalorder %s337, %s339
      %p346 = scmp.eq.s32.totalorder %s35, 7
      %p347 = por %p345, %p346
      %p348 = scmp.ne.s32.totalorder %s339, %s340
      %p349 = scmp.eq.s32.totalorder %s35, 0
      %p350 = por %p348, %p349
      %p351 = scmp.ne.s32.totalorder %s339, %s340
      %p352 = scmp.eq.s32.totalorder %s36, 7
      %p353 = por %p351, %p352
      %p355 = scmp.ne.s32.totalorder %s340, %s354
      %p356 = scmp.eq.s32.totalorder %s36, 0
      %p357 = por %p355, %p356
      %s358 = smul.u32 %s38, %s37
      %s359 = smul.u32 %s45, %s49
      %s360 = ssub.s32 %s358, %s359
      %p361 = scmp.eq.s32.totalorder %s360, 0
      %s363 = sadd.s32 %s362, 1
      %s364 = scalar_select %p361, %s362, %s363
      %p367 = pneg %p361
      %p368 = scmp.eq.s32.totalorder %s30, 7
      %p369 = por %p367, %p368
      %p370 = scmp.ne.s32.totalorder %s362, %s365
      %p371 = scmp.eq.s32.totalorder %s30, 0
      %p372 = por %p370, %p371
      %p373 = scmp.ne.s32.totalorder %s362, %s365
      %p374 = scmp.eq.s32.totalorder %s35, 7
      %p375 = por %p373, %p374
      %p376 = scmp.ne.s32.totalorder %s365, %s366
      %p377 = scmp.eq.s32.totalorder %s35, 0
      %p378 = por %p376, %p377
      %p379 = scmp.ne.s32.totalorder %s365, %s366
      %p380 = scmp.eq.s32.totalorder %s36, 7
      %p381 = por %p379, %p380
      %p383 = scmp.ne.s32.totalorder %s366, %s382
      %p384 = scmp.eq.s32.totalorder %s36, 0
      %p385 = por %p383, %p384
      %s386 = smul.u32 %s38, %s37
      %s387 = smul.u32 %s45, %s49
      %s388 = ssub.s32 %s386, %s387
      %p389 = scmp.eq.s32.totalorder %s388, 0
      %s391 = sadd.s32 %s390, 1
      %s392 = scalar_select %p389, %s390, %s391
      %p395 = pneg %p389
      %p396 = scmp.eq.s32.totalorder %s30, 7
      %p397 = por %p395, %p396
      %p398 = scmp.ne.s32.totalorder %s390, %s393
      %p399 = scmp.eq.s32.totalorder %s30, 0
      %p400 = por %p398, %p399
      %p401 = scmp.ne.s32.totalorder %s390, %s393
      %p402 = scmp.eq.s32.totalorder %s35, 7
      %p403 = por %p401, %p402
      %p404 = scmp.ne.s32.totalorder %s393, %s394
      %p405 = scmp.eq.s32.totalorder %s35, 0
      %p406 = por %p404, %p405
      %p407 = scmp.ne.s32.totalorder %s393, %s394
      %p408 = scmp.eq.s32.totalorder %s36, 7
      %p409 = por %p407, %p408
      %p411 = scmp.ne.s32.totalorder %s394, %s410
      %p412 = scmp.eq.s32.totalorder %s36, 0
      %p413 = por %p411, %p412
      %s415 = sadd.s32 %s414, 1
      %p418 = scmp.eq.s32.totalorder %s30, 7
      %p419 = scmp.ne.s32.totalorder %s414, %s416
      %p420 = scmp.eq.s32.totalorder %s30, 0
      %p421 = por %p419, %p420
      %p422 = scmp.ne.s32.totalorder %s414, %s416
      %p423 = scmp.eq.s32.totalorder %s35, 7
      %p424 = por %p422, %p423
      %p425 = scmp.ne.s32.totalorder %s416, %s417
      %p426 = scmp.eq.s32.totalorder %s35, 0
      %p427 = por %p425, %p426
      %p428 = scmp.ne.s32.totalorder %s416, %s417
      %p429 = scmp.eq.s32.totalorder %s36, 7
      %p430 = por %p428, %p429
      %p432 = scmp.ne.s32.totalorder %s417, %s431
      %p433 = scmp.eq.s32.totalorder %s36, 0
      %p434 = por %p432, %p433
      %s436 = sadd.s32 %s435, 1
      %p439 = scmp.eq.s32.totalorder %s30, 7
      %p440 = scmp.ne.s32.totalorder %s435, %s437
      %p441 = scmp.eq.s32.totalorder %s30, 0
      %p442 = por %p440, %p441
      %p443 = scmp.ne.s32.totalorder %s435, %s437
      %p444 = scmp.eq.s32.totalorder %s35, 7
      %p445 = por %p443, %p444
      %p446 = scmp.ne.s32.totalorder %s437, %s438
      %p447 = scmp.eq.s32.totalorder %s35, 0
      %p448 = por %p446, %p447
      %p449 = scmp.ne.s32.totalorder %s437, %s438
      %p450 = scmp.eq.s32.totalorder %s36, 7
      %p451 = por %p449, %p450
      %p453 = scmp.ne.s32.totalorder %s438, %s452
      %p454 = scmp.eq.s32.totalorder %s36, 0
      %p455 = por %p453, %p454
      %s456 = smul.u32 %s38, %s37
      %s457 = smul.u32 %s45, %s49
      %s458 = ssub.s32 %s456, %s457
      %p459 = scmp.eq.s32.totalorder %s458, 0
      %s461 = sadd.s32 %s460, 1
      %s462 = scalar_select %p459, %s460, %s461
      %p465 = pneg %p459
      %p466 = scmp.eq.s32.totalorder %s30, 7
      %p467 = por %p465, %p466
      %p468 = scmp.ne.s32.totalorder %s460, %s463
      %p469 = scmp.eq.s32.totalorder %s30, 0
      %p470 = por %p468, %p469
      %p471 = scmp.ne.s32.totalorder %s460, %s463
      %p472 = scmp.eq.s32.totalorder %s35, 7
      %p473 = por %p471, %p472
      %p474 = scmp.ne.s32.totalorder %s463, %s464
      %p475 = scmp.eq.s32.totalorder %s35, 0
      %p476 = por %p474, %p475
      %p477 = scmp.ne.s32.totalorder %s463, %s464
      %p478 = scmp.eq.s32.totalorder %s36, 7
      %p479 = por %p477, %p478
      %p481 = scmp.ne.s32.totalorder %s464, %s480
      %p482 = scmp.eq.s32.totalorder %s36, 0
      %p483 = por %p481, %p482
      %s485 = sadd.s32 %s484, 1
      %p488 = scmp.eq.s32.totalorder %s30, 7
      %p489 = scmp.ne.s32.totalorder %s484, %s486
      %p490 = scmp.eq.s32.totalorder %s30, 0
      %p491 = por %p489, %p490
      %p492 = scmp.ne.s32.totalorder %s484, %s486
      %p493 = scmp.eq.s32.totalorder %s35, 7
      %p494 = por %p492, %p493
      %p495 = scmp.ne.s32.totalorder %s486, %s487
      %p496 = scmp.eq.s32.totalorder %s35, 0
      %p497 = por %p495, %p496
      %p498 = scmp.ne.s32.totalorder %s486, %s487
      %p499 = scmp.eq.s32.totalorder %s36, 7
      %p500 = por %p498, %p499
      %p502 = scmp.ne.s32.totalorder %s487, %s501
      %p503 = scmp.eq.s32.totalorder %s36, 0
      %p504 = por %p502, %p503
      %p505 = scmp.le.s32.totalorder 1, %s30
      %p506 = scmp.lt.s32.totalorder %s30, 9
      %p507 = pnand %p505, %p506
      %p508 = pneg %p507
      // Predicated region
      $region9: #{tpu_custom_call.1} parent=5 // pred_check
        _
      $region10: #{tpu_custom_call.1} parent=5 // pred_check_branch
        %510 = sbr.rel (%p507) target = $region12
      $region11: #{tpu_custom_call.1} parent=5 // pred_region
        %s511 = ssub.s32 %s30, 1
        // Predicated region
        $region13: #{tpu_custom_call.1} parent=11 // pred_check
          %p512 = pneg %p89
        $region14: #{tpu_custom_call.1} parent=11 // pred_check_branch
          %514 = sbr.rel (%p512) target = $region16
        $region15: #{tpu_custom_call.1} parent=11 // pred_region
          %s516 = ssub.s32 128, 128
          %517 = vsyncadd [#allocation14], %s516
          %s519 = sshll.u32 [#allocation13], 4
          %s520 = int_to_ptr.vmem [resolvable:$true] %s519
          %522 = dma.hbm_to_vmem [thread:$0]  %s1, 128, %s520, [#allocation14]
        $region16: #{tpu_custom_call.1} parent=11 // pred_fallthru
          _
        // Predicated region
        $region17: #{tpu_custom_call.1} parent=11 // pred_check
          %p523 = pneg %p140
        $region18: #{tpu_custom_call.1} parent=11 // pred_check_branch
          %525 = sbr.rel (%p523) target = $region20
        $region19: #{tpu_custom_call.1} parent=11 // pred_region
          _
        $region20: #{tpu_custom_call.1} parent=11 // pred_fallthru
          _
        // Predicated region
        $region21: #{tpu_custom_call.1} parent=11 // pred_check
          %p526 = pneg %p161
        $region22: #{tpu_custom_call.1} parent=11 // pred_check_branch
          %528 = sbr.rel (%p526) target = $region24
        $region23: #{tpu_custom_call.1} parent=11 // pred_region
          _
        $region24: #{tpu_custom_call.1} parent=11 // pred_fallthru
          _
        // Predicated region
        $region25: #{tpu_custom_call.1} parent=11 // pred_check
          %p529 = pneg %p182
        $region26: #{tpu_custom_call.1} parent=11 // pred_check_branch
          %531 = sbr.rel (%p529) target = $region28
        $region27: #{tpu_custom_call.1} parent=11 // pred_region
          _
        $region28: #{tpu_custom_call.1} parent=11 // pred_fallthru
          _
        // Predicated region
        $region29: #{tpu_custom_call.1} parent=11 // pred_check
          %p532 = pneg %p203
        $region30: #{tpu_custom_call.1} parent=11 // pred_check_branch
          %534 = sbr.rel (%p532) target = $region32
        $region31: #{tpu_custom_call.1} parent=11 // pred_region
          _
        $region32: #{tpu_custom_call.1} parent=11 // pred_fallthru
          _
        // Predicated region
        $region33: #{tpu_custom_call.1} parent=11 // pred_check
          %p535 = pneg %p224
        $region34: #{tpu_custom_call.1} parent=11 // pred_check_branch
          %537 = sbr.rel (%p535) target = $region36
        $region35: #{tpu_custom_call.1} parent=11 // pred_region
          %s539 = ssub.s32 16, 16
          %540 = vsyncadd [#allocation14], %s539
          %s542 = sshll.u32 [#allocation16], 4
          %s543 = int_to_ptr.vmem [resolvable:$true] %s542
          %545 = dma.hbm_to_vmem [thread:$0]  %s7, 16, %s543, [#allocation14]
        $region36: #{tpu_custom_call.1} parent=11 // pred_fallthru
          _
        // Predicated region
        $region37: #{tpu_custom_call.1} parent=11 // pred_check
          %p546 = pneg %p245
        $region38: #{tpu_custom_call.1} parent=11 // pred_check_branch
          %548 = sbr.rel (%p546) target = $region40
        $region39: #{tpu_custom_call.1} parent=11 // pred_region
          _
        $region40: #{tpu_custom_call.1} parent=11 // pred_fallthru
          _
        // Predicated region
        $region41: #{tpu_custom_call.1} parent=11 // pred_check
          %p549 = pneg %p266
        $region42: #{tpu_custom_call.1} parent=11 // pred_check_branch
          %551 = sbr.rel (%p549) target = $region44
        $region43: #{tpu_custom_call.1} parent=11 // pred_region
          _
        $region44: #{tpu_custom_call.1} parent=11 // pred_fallthru
          _
        // Predicated region
        $region45: #{tpu_custom_call.1} parent=11 // pred_check
          %p552 = pneg %p287
        $region46: #{tpu_custom_call.1} parent=11 // pred_check_branch
          %554 = sbr.rel (%p552) target = $region48
        $region47: #{tpu_custom_call.1} parent=11 // pred_region
          _
        $region48: #{tpu_custom_call.1} parent=11 // pred_fallthru
          _
        // Predicated region
        $region49: #{tpu_custom_call.1} parent=11 // pred_check
          %p555 = pneg %p308
        $region50: #{tpu_custom_call.1} parent=11 // pred_check_branch
          %557 = sbr.rel (%p555) target = $region52
        $region51: #{tpu_custom_call.1} parent=11 // pred_region
          _
        $region52: #{tpu_custom_call.1} parent=11 // pred_fallthru
          _
        // Predicated region
        $region53: #{tpu_custom_call.1} parent=11 // pred_check
          %p558 = pneg %p329
        $region54: #{tpu_custom_call.1} parent=11 // pred_check_branch
          %560 = sbr.rel (%p558) target = $region56
        $region55: #{tpu_custom_call.1} parent=11 // pred_region
          _
        $region56: #{tpu_custom_call.1} parent=11 // pred_fallthru
          _
        // Predicated region
        $region57: #{tpu_custom_call.1} parent=11 // pred_check
          %p561 = pneg %p350
        $region58: #{tpu_custom_call.1} parent=11 // pred_check_branch
          %563 = sbr.rel (%p561) target = $region60
        $region59: #{tpu_custom_call.1} parent=11 // pred_region
          _
        $region60: #{tpu_custom_call.1} parent=11 // pred_fallthru
          _
        // Predicated region
        $region61: #{tpu_custom_call.1} parent=11 // pred_check
          %p564 = pneg %p427
        $region62: #{tpu_custom_call.1} parent=11 // pred_check_branch
          %566 = sbr.rel (%p564) target = $region64
        $region63: #{tpu_custom_call.1} parent=11 // pred_region
          _
        $region64: #{tpu_custom_call.1} parent=11 // pred_fallthru
          _
        // Predicated region
        $region65: #{tpu_custom_call.1} parent=11 // pred_check
          %p567 = pneg %p448
        $region66: #{tpu_custom_call.1} parent=11 // pred_check_branch
          %569 = sbr.rel (%p567) target = $region68
        $region67: #{tpu_custom_call.1} parent=11 // pred_region
          _
        $region68: #{tpu_custom_call.1} parent=11 // pred_fallthru
          _
      $region12: #{tpu_custom_call.1} parent=5 // pred_fallthru
        _
      %p570 = scmp.lt.s32.totalorder %s30, 8
      // Predicated region
      $region69: #{tpu_custom_call.1} parent=5 // pred_check
        %p571 = pneg %p570
      $region70: #{tpu_custom_call.1} parent=5 // pred_check_branch
        %573 = sbr.rel (%p571) target = $region72
      $region71: #{tpu_custom_call.1} parent=5 // pred_region
        // Predicated region
        $region73: #{tpu_custom_call.1} parent=71 // pred_check
          %p574 = pneg %p62
        $region74: #{tpu_custom_call.1} parent=71 // pred_check_branch
          %576 = sbr.rel (%p574) target = $region76
        $region75: #{tpu_custom_call.1} parent=71 // pred_region
          %s577 = sand.u32 %s30, 1
          %s578 = scalar_lea.sflag [#allocation11], %s577
          %s579 = sand.u32 %s52, 1
          %s580 = smul.addr %s579, 8
          %s581 = scalar_lea.vmem [#allocation10], %s580
          %s583 = ssub.s32 128, 128
          %584 = vsyncadd %s578, %s583
          %s585 = smul.addr %s38, 128
          %s586 = scalar_lea.hbm %s0, %s585
          %s588 = sshll.u32 %s581, 4
          %s589 = int_to_ptr.vmem [resolvable:$true] %s588
          %591 = dma.hbm_to_vmem [thread:$0]  %s586, 128, %s589, %s578
        $region76: #{tpu_custom_call.1} parent=71 // pred_fallthru
          _
        // Predicated region
        $region77: #{tpu_custom_call.1} parent=71 // pred_check
          %p592 = pneg %p113
        $region78: #{tpu_custom_call.1} parent=71 // pred_check_branch
          %594 = sbr.rel (%p592) target = $region80
        $region79: #{tpu_custom_call.1} parent=71 // pred_region
          %s595 = sand.u32 %s30, 1
          %s596 = scalar_lea.sflag [#allocation11], %s595
          %s597 = sand.u32 %s103, 1
          %s598 = smul.addr %s597, 64
          %s599 = scalar_lea.vmem [#allocation15], %s598
          %s600 = ssub.s32 1, %s37
          %s601 = smul.u32 %s38, %s600
          %s602 = smul.u32 16, %s601
          %s604 = ssub.s32 1024, 1024
          %605 = vsyncadd %s596, %s604
          %s606 = smul.addr %s602, 64
          %s607 = scalar_lea.hbm %s2, %s606
          %s608 = sshll.u32 %s599, 4
          %s609 = int_to_ptr.vmem [resolvable:$true] %s608
          %614 = dma.hbm_to_vmem [thread:$0]  %s607, 1024, %s609, %s596, 64, 64, 4
        $region80: #{tpu_custom_call.1} parent=71 // pred_fallthru
          _
        // Predicated region
        $region81: #{tpu_custom_call.1} parent=71 // pred_check
          %p615 = pneg %p372
        $region82: #{tpu_custom_call.1} parent=71 // pred_check_branch
          %617 = sbr.rel (%p615) target = $region84
        $region83: #{tpu_custom_call.1} parent=71 // pred_region
          %s618 = sand.u32 %s362, 1
          %s619 = sand.u32 %s362, 1
          %s620 = smul.addr %s619, 16
          %s621 = scalar_lea.vmem [#allocation17], %s620
          %s622 = smul.u32 %s38, %s37
          %s623 = smul.addr %s622, 4
          %s624 = scalar_lea.vmem %s14, %s623
          // Predicated region
          $region85: #{tpu_custom_call.1} parent=83 // pred_check
            _
          $region86: #{tpu_custom_call.1} parent=83 // pred_check_branch
            %626 = sbr.rel (0) target = $region88
          $region87: #{tpu_custom_call.1} parent=83 // pred_region
            // Predicated region
            $region89: #{tpu_custom_call.1} parent=87 // pred_check
              _
            $region90: #{tpu_custom_call.1} parent=87 // pred_check_branch
              %628 = sbr.rel target = $region92
            $region91: #{tpu_custom_call.1} parent=87 // pred_region
              // Predicated region
              $region104: #{tpu_custom_call.1} parent=91 // pred_check
                _
              $region105: #{tpu_custom_call.1} parent=91 // pred_check_branch
                %649 = sbr.rel (0) target = $region107
              $region106: #{tpu_custom_call.1} parent=91 // pred_region
                loop: start=0, step=1, limit=1
                $region108: #{tpu_custom_call.1} parent=106 // loop_pre_header
                  _
                $region109: #{tpu_custom_call.1} parent=106 // loop_header
                  %s651 = sphi 0, %s655
                  %p652 = scmp.ge.s32.totalorder %s651, 1
                  %s656 = sphi %s624, %s624
                  %s657 = sphi %s621, %s621
                $region110: #{tpu_custom_call.1} parent=106 // loop_header_branch
                  %654 = sbr.rel (%p652) target = $region114
                $region111: #{tpu_custom_call.1} parent=106 // loop_body
                  _
                $region112: #{tpu_custom_call.1} parent=106 // loop_footer
                  %s655 = sadd.s32 1, %s651
                $region113: #{tpu_custom_call.1} parent=106 // loop_footer_branch
                  %650 = sbr.rel target = $region109
                $region114: #{tpu_custom_call.1} parent=106 // loop_exit
                  _
                loop: start=0, step=1, limit=1
                $region115: #{tpu_custom_call.1} parent=106 // loop_pre_header
                  _
                $region116: #{tpu_custom_call.1} parent=106 // loop_header
                  %s660 = sphi 0, %s664
                  %p661 = scmp.ge.s32.totalorder %s660, 1
                  %s665 = sphi %s624, %s624
                  %s666 = sphi %s621, %s621
                $region117: #{tpu_custom_call.1} parent=106 // loop_header_branch
                  %663 = sbr.rel (%p661) target = $region121
                $region118: #{tpu_custom_call.1} parent=106 // loop_body
                  %v667 = vld [vmem:[%s665] sm:$0xf]
                  %668 = vst [vmem:[%s666] sm:$0xf] %v667
                  %v669 = vld [vmem:[%s665 + $0x10] sm:$0xf]
                  %670 = vst [vmem:[%s666 + $0x4] sm:$0xf] %v669
                  %v671 = vld [vmem:[%s665 + $0x20] sm:$0xf]
                  %672 = vst [vmem:[%s666 + $0x8] sm:$0xf] %v671
                  %v673 = vld [vmem:[%s665 + $0x30] sm:$0xf]
                  %674 = vst [vmem:[%s666 + $0xc] sm:$0xf] %v673
                $region119: #{tpu_custom_call.1} parent=106 // loop_footer
                  %s664 = sadd.s32 1, %s660
                $region120: #{tpu_custom_call.1} parent=106 // loop_footer_branch
                  %659 = sbr.rel target = $region116
                $region121: #{tpu_custom_call.1} parent=106 // loop_exit
                  _
              $region107: #{tpu_custom_call.1} parent=91 // pred_fallthru
                _
            $region92: #{tpu_custom_call.1} parent=87 // pred_fallthru
              _
            // Predicated region
            $region93: #{tpu_custom_call.1} parent=87 // pred_check
              _
            $region94: #{tpu_custom_call.1} parent=87 // pred_check_branch
              %630 = sbr.rel (0) target = $region96
            $region95: #{tpu_custom_call.1} parent=87 // pred_region
              loop: start=0, step=1, limit=1
              $region97: #{tpu_custom_call.1} parent=95 // loop_pre_header
                _
              $region98: #{tpu_custom_call.1} parent=95 // loop_header
                %s633 = sphi 0, %s637
                %p634 = scmp.ge.s32.totalorder %s633, 1
                %s638 = sphi %s624, %s624
                %s639 = sphi %s621, %s621
              $region99: #{tpu_custom_call.1} parent=95 // loop_header_branch
                %636 = sbr.rel (%p634) target = $region103
              $region100: #{tpu_custom_call.1} parent=95 // loop_body
                %v640 = vld [vmem:[%s638] sm:$0xf]
                %641 = vst [vmem:[%s639] sm:$0xf] %v640
                %v642 = vld [vmem:[%s638 + $0x10] sm:$0xf]
                %643 = vst [vmem:[%s639 + $0x4] sm:$0xf] %v642
                %v644 = vld [vmem:[%s638 + $0x20] sm:$0xf]
                %645 = vst [vmem:[%s639 + $0x8] sm:$0xf] %v644
                %v646 = vld [vmem:[%s638 + $0x30] sm:$0xf]
                %647 = vst [vmem:[%s639 + $0xc] sm:$0xf] %v646
              $region101: #{tpu_custom_call.1} parent=95 // loop_footer
                %s637 = sadd.s32 1, %s633
              $region102: #{tpu_custom_call.1} parent=95 // loop_footer_branch
                %632 = sbr.rel target = $region98
              $region103: #{tpu_custom_call.1} parent=95 // loop_exit
                _
            $region96: #{tpu_custom_call.1} parent=87 // pred_fallthru
              _
          $region88: #{tpu_custom_call.1} parent=83 // pred_fallthru
            _
          %675 = vnop
        $region84: #{tpu_custom_call.1} parent=71 // pred_fallthru
          _
        // Predicated region
        $region122: #{tpu_custom_call.1} parent=71 // pred_check
          %p676 = pneg %p400
        $region123: #{tpu_custom_call.1} parent=71 // pred_check_branch
          %678 = sbr.rel (%p676) target = $region125
        $region124: #{tpu_custom_call.1} parent=71 // pred_region
          %s679 = smul.u32 %s38, %s37
          %p680 = scmp.lt.s32.totalorder %s679, 3
          %s681 = scalar_select %p680, %s679, 3
          %s682 = scalar_lea.vmem %s15, %s681
          %s683 = smul.u32 %s38, %s37
        $region125: #{tpu_custom_call.1} parent=71 // pred_fallthru
          _
        // Predicated region
        $region126: #{tpu_custom_call.1} parent=71 // pred_check
          %p684 = pneg %p470
        $region127: #{tpu_custom_call.1} parent=71 // pred_check_branch
          %686 = sbr.rel (%p684) target = $region129
        $region128: #{tpu_custom_call.1} parent=71 // pred_region
          %s687 = smul.u32 %s38, %s37
          %p688 = scmp.lt.s32.totalorder %s687, 3
          %s689 = scalar_select %p688, %s687, 3
          %s690 = scalar_lea.vmem %s18, %s689
          %s691 = smul.u32 %s38, %s37
        $region129: #{tpu_custom_call.1} parent=71 // pred_fallthru
          _
      $region72: #{tpu_custom_call.1} parent=5 // pred_fallthru
        _
      %p692 = scmp.le.s32.totalorder 1, %s30
      %p693 = scmp.lt.s32.totalorder %s30, 9
      %p694 = pnand %p692, %p693
      %p695 = pneg %p694
      // Predicated region
      $region130: #{tpu_custom_call.1} parent=5 // pred_check
        _
      $region131: #{tpu_custom_call.1} parent=5 // pred_check_branch
        %697 = sbr.rel (%p694) target = $region133
      $region132: #{tpu_custom_call.1} parent=5 // pred_region
        %s698 = ssub.s32 %s30, 1
        %s699 = sand.u32 %s35, 1
        %s700 = scalar_lea.sflag [#allocation11], %s699
        %s701 = sand.u32 %s55, 1
        %s702 = smul.addr %s701, 8
        %s703 = scalar_lea.vmem [#allocation10], %s702
        // Predicated region
        $region134: #{tpu_custom_call.1} parent=132 // pred_check
          %p704 = pneg %p68
        $region135: #{tpu_custom_call.1} parent=132 // pred_check_branch
          %706 = sbr.rel (%p704) target = $region137
        $region136: #{tpu_custom_call.1} parent=132 // pred_region
          %707 = dma.done %s700, 128
        $region137: #{tpu_custom_call.1} parent=132 // pred_fallthru
          _
        // Predicated region
        $region138: #{tpu_custom_call.1} parent=132 // pred_check
          %p708 = pneg %p89
        $region139: #{tpu_custom_call.1} parent=132 // pred_check_branch
          %710 = sbr.rel (%p708) target = $region141
        $region140: #{tpu_custom_call.1} parent=132 // pred_region
          %711 = dma.done [#allocation14], 128
        $region141: #{tpu_custom_call.1} parent=132 // pred_fallthru
          _
        %s712 = sand.u32 %s35, 1
        %s713 = scalar_lea.sflag [#allocation11], %s712
        %s714 = sand.u32 %s106, 1
        %s715 = smul.addr %s714, 64
        %s716 = scalar_lea.vmem [#allocation15], %s715
        // Predicated region
        $region142: #{tpu_custom_call.1} parent=132 // pred_check
          %p717 = pneg %p119
        $region143: #{tpu_custom_call.1} parent=132 // pred_check_branch
          %719 = sbr.rel (%p717) target = $region145
        $region144: #{tpu_custom_call.1} parent=132 // pred_region
          %720 = dma.done %s713, 1024
        $region145: #{tpu_custom_call.1} parent=132 // pred_fallthru
          _
        // Predicated region
        $region146: #{tpu_custom_call.1} parent=132 // pred_check
          %p721 = pneg %p224
        $region147: #{tpu_custom_call.1} parent=132 // pred_check_branch
          %723 = sbr.rel (%p721) target = $region149
        $region148: #{tpu_custom_call.1} parent=132 // pred_region
          %724 = dma.done [#allocation14], 16
        $region149: #{tpu_custom_call.1} parent=132 // pred_fallthru
          _
        %s725 = sand.u32 %s365, 1
        %s726 = sand.u32 %s365, 1
        %s727 = smul.addr %s726, 16
        %s728 = scalar_lea.vmem [#allocation17], %s727
        // Predicated region
        $region150: #{tpu_custom_call.1} parent=132 // pred_check
          %p729 = pneg %p378
        $region151: #{tpu_custom_call.1} parent=132 // pred_check_branch
          %731 = sbr.rel (%p729) target = $region153
        $region152: #{tpu_custom_call.1} parent=132 // pred_region
          _
        $region153: #{tpu_custom_call.1} parent=132 // pred_fallthru
          _
        %s732 = sand.u32 %s35, 1
        %s733 = scalar_lea.sflag [#allocation11], %s732
        %s734 = sand.u32 %s55, 1
        %s735 = smul.addr %s734, 8
        %s736 = scalar_lea.vmem [#allocation10], %s735
        %p737 = pneg %p68
        %p738 = pneg %p65
        %p739 = pneg %p89
        %p740 = pneg %p86
        %s741 = sand.u32 %s35, 1
        %s742 = scalar_lea.sflag [#allocation11], %s741
        %s743 = sand.u32 %s106, 1
        %s744 = smul.addr %s743, 64
        %s745 = scalar_lea.vmem [#allocation15], %s744
        %p746 = pneg %p119
        %p747 = pneg %p116
        %p748 = pneg %p140
        %p749 = pneg %p137
        %p750 = pneg %p161
        %p751 = pneg %p158
        %p752 = pneg %p182
        %p753 = pneg %p179
        %p754 = pneg %p203
        %p755 = pneg %p200
        %p756 = pneg %p224
        %p757 = pneg %p221
        %p758 = pneg %p245
        %p759 = pneg %p242
        %p760 = pneg %p266
        %p761 = pneg %p263
        %p762 = pneg %p287
        %p763 = pneg %p284
        %p764 = pneg %p308
        %p765 = pneg %p305
        %p766 = pneg %p329
        %p767 = pneg %p326
        %p768 = pneg %p350
        %p769 = pneg %p347
        %s770 = sand.u32 %s365, 1
        %s771 = sand.u32 %s365, 1
        %s772 = smul.addr %s771, 16
        %s773 = scalar_lea.vmem [#allocation17], %s772
        %p774 = pneg %p378
        %p775 = pneg %p375
        %s776 = smul.u32 %s40, %s39
        %p777 = scmp.lt.s32.totalorder %s776, 3
        %s778 = scalar_select %p777, %s776, 3
        %s779 = scalar_lea.vmem %s15, %s778
        %p780 = pneg %p406
        %p781 = pneg %p403
        %p782 = pneg %p427
        %p783 = pneg %p424
        %p784 = pneg %p448
        %p785 = pneg %p445
        %s786 = smul.u32 %s40, %s39
        %p787 = scmp.lt.s32.totalorder %s786, 3
        %s788 = scalar_select %p787, %s786, 3
        %s789 = scalar_lea.vmem %s18, %s788
        %p790 = pneg %p476
        %p791 = pneg %p473
        %p792 = pneg %p497
        %p793 = pneg %p494
        %s794 = ssub.s32 1, %s39
        %s795 = smul.u32 %s40, %s794
        %s796 = smul.u32 16, %s795
        %s797 = smul.u32 %s40, %s39
        %s798 = smul.u32 %s40, %s39
        %p799 = scmp.lt.s32.totalorder %s798, 3
        %s800 = scalar_select %p799, %s798, 3
        %s801 = scalar_lea.vmem %s15, %s800
        %s802 = smul.u32 %s40, %s39
        %s803 = smul.u32 %s40, %s39
        %p804 = scmp.lt.s32.totalorder %s803, 3
        %s805 = scalar_select %p804, %s803, 3
        %s806 = scalar_lea.vmem %s18, %s805
        %s807 = smul.u32 %s40, %s39
        %p809 = scmp.eq.s32.totalorder %s39, 0
        // Predicated region
        $region154: #{tpu_custom_call.1} parent=132 // pred_check
          %p810 = pneg %p809
        $region155: #{tpu_custom_call.1} parent=132 // pred_check_branch
          %812 = sbr.rel (%p810) target = $region157
        $region156: #{tpu_custom_call.1} parent=132 // pred_region
          %p813 = scmp.eq.s32.totalorder %s40, 0
          // Predicated region
          $region158: #{tpu_custom_call.1} parent=156 // pred_check
            %p814 = pneg %p813
          $region159: #{tpu_custom_call.1} parent=156 // pred_check_branch
            %816 = sbr.rel (%p814) target = $region161
          $region160: #{tpu_custom_call.1} parent=156 // pred_region
            %817 = vst [vmem:[#allocation2] sm:$0xff] 0.0
          $region161: #{tpu_custom_call.1} parent=156 // pred_fallthru
            _
          %v818 = vld [vmem:[#allocation2] sm:$0xff]
          %v819 = vld [vmem:[%s703] sm:$0xff]
          %v820 = vpack.c.bf16 %v819, %v819
          %v821 = vld [vmem:[%s716] sm:$0xf]
          %v822 = vld [vmem:[%s716 + $0x4] sm:$0xf]
          %v823 = vld [vmem:[%s716 + $0x8] sm:$0xf]
          %v824 = vld [vmem:[%s716 + $0xc] sm:$0xf]
          %v825 = vld [vmem:[%s716 + $0x10] sm:$0xf]
          %v826 = vld [vmem:[%s716 + $0x14] sm:$0xf]
          %v827 = vld [vmem:[%s716 + $0x18] sm:$0xf]
          %v828 = vld [vmem:[%s716 + $0x1c] sm:$0xf]
          %v829 = vld [vmem:[%s716 + $0x20] sm:$0xf]
          %v830 = vld [vmem:[%s716 + $0x24] sm:$0xf]
          %v831 = vld [vmem:[%s716 + $0x28] sm:$0xf]
          %v832 = vld [vmem:[%s716 + $0x2c] sm:$0xf]
          %v833 = vld [vmem:[%s716 + $0x30] sm:$0xf]
          %v834 = vld [vmem:[%s716 + $0x34] sm:$0xf]
          %v835 = vld [vmem:[%s716 + $0x38] sm:$0xf]
          %v836 = vld [vmem:[%s716 + $0x3c] sm:$0xf]
          %v853 = vunpack.c.l.b16 %v821
          %v854 = vunpack.c.l.b16 %v822
          %v855 = vunpack.c.l.b16 %v823
          %v856 = vunpack.c.l.b16 %v824
          %v857 = vunpack.c.l.b16 %v825
          %v858 = vunpack.c.l.b16 %v826
          %v859 = vunpack.c.l.b16 %v827
          %v860 = vunpack.c.l.b16 %v828
          %v861 = vunpack.c.l.b16 %v829
          %v862 = vunpack.c.l.b16 %v830
          %v863 = vunpack.c.l.b16 %v831
          %v864 = vunpack.c.l.b16 %v832
          %v865 = vunpack.c.l.b16 %v833
          %v866 = vunpack.c.l.b16 %v834
          %v867 = vunpack.c.l.b16 %v835
          %v868 = vunpack.c.l.b16 %v836
          %v869 = vpack.c.b16 %v854, %v853
          %v870 = vpack.c.b16 %v856, %v855
          %v871 = vpack.c.b16 %v858, %v857
          %v872 = vpack.c.b16 %v860, %v859
          %v873 = vpack.c.b16 %v862, %v861
          %v874 = vpack.c.b16 %v864, %v863
          %v875 = vpack.c.b16 %v866, %v865
          %v876 = vpack.c.b16 %v868, %v867
          %885 = vmatprep.subr.bf16.mxu0 0
          %886 = vmatpush1.bf16.msra.mxu0 %v869
          %887 = vmatprep.subr.bf16.mxu0 0
          %888 = vmatpush1.bf16.msra.mxu0 %v870
          %889 = vmatprep.subr.bf16.mxu0 0
          %890 = vmatpush1.bf16.msra.mxu0 %v871
          %891 = vmatprep.subr.bf16.mxu0 0
          %892 = vmatpush1.bf16.msra.mxu0 %v872
          %893 = vmatprep.subr.bf16.mxu0 0
          %894 = vmatpush1.bf16.msra.mxu0 %v873
          %895 = vmatprep.subr.bf16.mxu0 0
          %896 = vmatpush1.bf16.msra.mxu0 %v874
          %897 = vmatprep.subr.bf16.mxu0 0
          %898 = vmatpush1.bf16.msra.mxu0 %v875
          %899 = vmatprep.subr.bf16.mxu0 0
          %900 = vmatpush1.bf16.msra.mxu0 %v876
          %901 = vmatprep.subr.bf16.mxu0 0
          %902 = vmatpush1.bf16.msra.mxu0 0
          %903 = vmatprep.subr.bf16.mxu0 0
          %904 = vmatpush1.bf16.msra.mxu0 0
          %905 = vmatprep.subr.bf16.mxu0 0
          %906 = vmatpush1.bf16.msra.mxu0 0
          %907 = vmatprep.subr.bf16.mxu0 0
          %908 = vmatpush1.bf16.msra.mxu0 0
          %909 = vmatprep.subr.bf16.mxu0 0
          %910 = vmatpush1.bf16.msra.mxu0 0
          %911 = vmatprep.subr.bf16.mxu0 0
          %912 = vmatpush1.bf16.msra.mxu0 0
          %913 = vmatprep.subr.bf16.mxu0 0
          %914 = vmatpush1.bf16.msra.mxu0 0
          %915 = vmatprep.subr.bf16.mxu0 0
          %916 = vmatpush1.bf16.msra.mxu0 0
          %917 = vmatprep.mubr.bf16.mxu0 0
          %918 = vmatmul.mubr.bf16.gmra.mrb[0].mxu0 %v820
          %v919 = vpop.f32.mrb[0].mxu0
          %v920 = vadd.f32 0.0, %v919
          %v921 = vpop.f32.mrb[0].mxu0
          %v922 = vpop.f32.mrb[0].mxu0
          %v923 = vpop.f32.mrb[0].mxu0
          %924 = vdwg.mxu0
          %v925 = vadd.f32 %v818, %v920
          %926 = vst [vmem:[#allocation2] sm:$0xff] %v925
        $region157: #{tpu_custom_call.1} parent=132 // pred_fallthru
          _
        %p927 = scmp.eq.s32.totalorder %s39, 1
        // Predicated region
        $region162: #{tpu_custom_call.1} parent=132 // pred_check
          %p928 = pneg %p927
        $region163: #{tpu_custom_call.1} parent=132 // pred_check_branch
          %930 = sbr.rel (%p928) target = $region165
        $region164: #{tpu_custom_call.1} parent=132 // pred_region
          %p931 = scmp.eq.s32.totalorder %s40, 0
          // Predicated region
          $region166: #{tpu_custom_call.1} parent=164 // pred_check
            %p932 = pneg %p931
          $region167: #{tpu_custom_call.1} parent=164 // pred_check_branch
            %934 = sbr.rel (%p932) target = $region169
          $region168: #{tpu_custom_call.1} parent=164 // pred_region
            %v935 = vld [vmem:[#allocation2] sm:$0xff]
            %v936 = vld [vmem:[%s3] sm:$0x1]
            %v938 = vlaneseq
            %v939 = vshrl.u32 %v938, 7
            %v940 = vsub.s32 0, %v939
            %v941 = vrot.slane %v936, %v940
            %v943 = vadd.f32 %v935, %v941
            %v944 = vmax.f32 %v943, 0.0
            %v945 = vand.u32 2147483647, %v943
            %v946 = vsub.f32 0.0, %v945
            %v947 = vmul.f32 %v946, 1.442695
            %v948 = vpow.pop %v947
            %v949 = vadd.f32 %v948, 1.0
            %v950 = vlog2.pop %v949
            %v951 = vmul.f32 %v950, 0.6931472
            %v952 = vadd.f32 %v944, %v951
            %v953 = vpack.c.bf16 %v952, %v952
            %v954 = vld [vmem:[%s4] sm:$0xf]
            %v955 = vld [vmem:[%s4 + $0x4] sm:$0xf]
            %v956 = vld [vmem:[%s4 + $0x8] sm:$0xf]
            %v957 = vld [vmem:[%s4 + $0xc] sm:$0xf]
            %v958 = vld [vmem:[%s4 + $0x10] sm:$0xf]
            %v959 = vld [vmem:[%s4 + $0x14] sm:$0xf]
            %v960 = vld [vmem:[%s4 + $0x18] sm:$0xf]
            %v961 = vld [vmem:[%s4 + $0x1c] sm:$0xf]
            %v962 = vld [vmem:[%s4 + $0x20] sm:$0xf]
            %v963 = vld [vmem:[%s4 + $0x24] sm:$0xf]
            %v964 = vld [vmem:[%s4 + $0x28] sm:$0xf]
            %v965 = vld [vmem:[%s4 + $0x2c] sm:$0xf]
            %v966 = vld [vmem:[%s4 + $0x30] sm:$0xf]
            %v967 = vld [vmem:[%s4 + $0x34] sm:$0xf]
            %v968 = vld [vmem:[%s4 + $0x38] sm:$0xf]
            %v969 = vld [vmem:[%s4 + $0x3c] sm:$0xf]
            %v970 = vld [vmem:[%s5] sm:$0x1]
            %v972 = vlaneseq
            %v973 = vshrl.u32 %v972, 7
            %v974 = vsub.s32 0, %v973
            %v975 = vrot.slane %v970, %v974
            %v993 = vunpack.c.l.b16 %v954
            %v994 = vunpack.c.l.b16 %v955
            %v995 = vunpack.c.l.b16 %v956
            %v996 = vunpack.c.l.b16 %v957
            %v997 = vunpack.c.l.b16 %v958
            %v998 = vunpack.c.l.b16 %v959
            %v999 = vunpack.c.l.b16 %v960
            %v1000 = vunpack.c.l.b16 %v961
            %v1001 = vunpack.c.l.b16 %v962
            %v1002 = vunpack.c.l.b16 %v963
            %v1003 = vunpack.c.l.b16 %v964
            %v1004 = vunpack.c.l.b16 %v965
            %v1005 = vunpack.c.l.b16 %v966
            %v1006 = vunpack.c.l.b16 %v967
            %v1007 = vunpack.c.l.b16 %v968
            %v1008 = vunpack.c.l.b16 %v969
            %v1009 = vpack.c.b16 %v994, %v993
            %v1010 = vpack.c.b16 %v996, %v995
            %v1011 = vpack.c.b16 %v998, %v997
            %v1012 = vpack.c.b16 %v1000, %v999
            %v1013 = vpack.c.b16 %v1002, %v1001
            %v1014 = vpack.c.b16 %v1004, %v1003
            %v1015 = vpack.c.b16 %v1006, %v1005
            %v1016 = vpack.c.b16 %v1008, %v1007
            %1025 = vmatprep.subr.bf16.mxu0 0
            %1026 = vmatpush1.bf16.msra.mxu0 %v1009
            %1027 = vmatprep.subr.bf16.mxu0 0
            %1028 = vmatpush1.bf16.msra.mxu0 %v1010
            %1029 = vmatprep.subr.bf16.mxu0 0
            %1030 = vmatpush1.bf16.msra.mxu0 %v1011
            %1031 = vmatprep.subr.bf16.mxu0 0
            %1032 = vmatpush1.bf16.msra.mxu0 %v1012
            %1033 = vmatprep.subr.bf16.mxu0 0
            %1034 = vmatpush1.bf16.msra.mxu0 %v1013
            %1035 = vmatprep.subr.bf16.mxu0 0
            %1036 = vmatpush1.bf16.msra.mxu0 %v1014
            %1037 = vmatprep.subr.bf16.mxu0 0
            %1038 = vmatpush1.bf16.msra.mxu0 %v1015
            %1039 = vmatprep.subr.bf16.mxu0 0
            %1040 = vmatpush1.bf16.msra.mxu0 %v1016
            %1041 = vmatprep.subr.bf16.mxu0 0
            %1042 = vmatpush1.bf16.msra.mxu0 0
            %1043 = vmatprep.subr.bf16.mxu0 0
            %1044 = vmatpush1.bf16.msra.mxu0 0
            %1045 = vmatprep.subr.bf16.mxu0 0
            %1046 = vmatpush1.bf16.msra.mxu0 0
            %1047 = vmatprep.subr.bf16.mxu0 0
            %1048 = vmatpush1.bf16.msra.mxu0 0
            %1049 = vmatprep.subr.bf16.mxu0 0
            %1050 = vmatpush1.bf16.msra.mxu0 0
            %1051 = vmatprep.subr.bf16.mxu0 0
            %1052 = vmatpush1.bf16.msra.mxu0 0
            %1053 = vmatprep.subr.bf16.mxu0 0
            %1054 = vmatpush1.bf16.msra.mxu0 0
            %1055 = vmatprep.subr.bf16.mxu0 0
            %1056 = vmatpush1.bf16.msra.mxu0 0
            %1057 = vmatprep.mubr.bf16.mxu0 0
            %1058 = vmatmul.mubr.bf16.gmra.mrb[0].mxu0 %v953
            %v1059 = vpop.f32.mrb[0].mxu0
            %v1060 = vadd.f32 %v975, %v1059
            %v1061 = vpop.f32.mrb[0].mxu0
            %v1062 = vpop.f32.mrb[0].mxu0
            %v1063 = vpop.f32.mrb[0].mxu0
            %1064 = vdwg.mxu0
            %v1065 = vmax.f32 %v1060, 0.0
            %v1066 = vand.u32 2147483647, %v1060
            %v1067 = vsub.f32 0.0, %v1066
            %v1068 = vmul.f32 %v1067, 1.442695
            %v1069 = vpow.pop %v1068
            %v1070 = vadd.f32 %v1069, 1.0
            %v1071 = vlog2.pop %v1070
            %v1072 = vmul.f32 %v1071, 0.6931472
            %v1073 = vadd.f32 %v1065, %v1072
            %v1074 = vpack.c.bf16 %v1073, %v1073
            %v1075 = vld [vmem:[%s6] sm:$0xf]
            %v1076 = vld [vmem:[%s6 + $0x4] sm:$0xf]
            %v1077 = vld [vmem:[%s6 + $0x8] sm:$0xf]
            %v1078 = vld [vmem:[%s6 + $0xc] sm:$0xf]
            %v1079 = vld [vmem:[%s6 + $0x10] sm:$0xf]
            %v1080 = vld [vmem:[%s6 + $0x14] sm:$0xf]
            %v1081 = vld [vmem:[%s6 + $0x18] sm:$0xf]
            %v1082 = vld [vmem:[%s6 + $0x1c] sm:$0xf]
            %v1083 = vld [vmem:[%s6 + $0x20] sm:$0xf]
            %v1084 = vld [vmem:[%s6 + $0x24] sm:$0xf]
            %v1085 = vld [vmem:[%s6 + $0x28] sm:$0xf]
            %v1086 = vld [vmem:[%s6 + $0x2c] sm:$0xf]
            %v1087 = vld [vmem:[%s6 + $0x30] sm:$0xf]
            %v1088 = vld [vmem:[%s6 + $0x34] sm:$0xf]
            %v1089 = vld [vmem:[%s6 + $0x38] sm:$0xf]
            %v1090 = vld [vmem:[%s6 + $0x3c] sm:$0xf]
            %v1091 = vld [vmem:[#allocation16] sm:$0x1]
            %v1093 = vlaneseq
            %v1094 = vshrl.u32 %v1093, 7
            %v1095 = vsub.s32 0, %v1094
            %v1096 = vrot.slane %v1091, %v1095
            %v1114 = vunpack.c.l.b16 %v1075
            %v1115 = vunpack.c.l.b16 %v1076
            %v1116 = vunpack.c.l.b16 %v1077
            %v1117 = vunpack.c.l.b16 %v1078
            %v1118 = vunpack.c.l.b16 %v1079
            %v1119 = vunpack.c.l.b16 %v1080
            %v1120 = vunpack.c.l.b16 %v1081
            %v1121 = vunpack.c.l.b16 %v1082
            %v1122 = vunpack.c.l.b16 %v1083
            %v1123 = vunpack.c.l.b16 %v1084
            %v1124 = vunpack.c.l.b16 %v1085
            %v1125 = vunpack.c.l.b16 %v1086
            %v1126 = vunpack.c.l.b16 %v1087
            %v1127 = vunpack.c.l.b16 %v1088
            %v1128 = vunpack.c.l.b16 %v1089
            %v1129 = vunpack.c.l.b16 %v1090
            %v1130 = vpack.c.b16 %v1115, %v1114
            %v1131 = vpack.c.b16 %v1117, %v1116
            %v1132 = vpack.c.b16 %v1119, %v1118
            %v1133 = vpack.c.b16 %v1121, %v1120
            %v1134 = vpack.c.b16 %v1123, %v1122
            %v1135 = vpack.c.b16 %v1125, %v1124
            %v1136 = vpack.c.b16 %v1127, %v1126
            %v1137 = vpack.c.b16 %v1129, %v1128
            %1146 = vmatprep.subr.bf16.mxu0 0
            %1147 = vmatpush1.bf16.msra.mxu0 %v1130
            %1148 = vmatprep.subr.bf16.mxu0 0
            %1149 = vmatpush1.bf16.msra.mxu0 %v1131
            %1150 = vmatprep.subr.bf16.mxu0 0
            %1151 = vmatpush1.bf16.msra.mxu0 %v1132
            %1152 = vmatprep.subr.bf16.mxu0 0
            %1153 = vmatpush1.bf16.msra.mxu0 %v1133
            %1154 = vmatprep.subr.bf16.mxu0 0
            %1155 = vmatpush1.bf16.msra.mxu0 %v1134
            %1156 = vmatprep.subr.bf16.mxu0 0
            %1157 = vmatpush1.bf16.msra.mxu0 %v1135
            %1158 = vmatprep.subr.bf16.mxu0 0
            %1159 = vmatpush1.bf16.msra.mxu0 %v1136
            %1160 = vmatprep.subr.bf16.mxu0 0
            %1161 = vmatpush1.bf16.msra.mxu0 %v1137
            %1162 = vmatprep.subr.bf16.mxu0 0
            %1163 = vmatpush1.bf16.msra.mxu0 0
            %1164 = vmatprep.subr.bf16.mxu0 0
            %1165 = vmatpush1.bf16.msra.mxu0 0
            %1166 = vmatprep.subr.bf16.mxu0 0
            %1167 = vmatpush1.bf16.msra.mxu0 0
            %1168 = vmatprep.subr.bf16.mxu0 0
            %1169 = vmatpush1.bf16.msra.mxu0 0
            %1170 = vmatprep.subr.bf16.mxu0 0
            %1171 = vmatpush1.bf16.msra.mxu0 0
            %1172 = vmatprep.subr.bf16.mxu0 0
            %1173 = vmatpush1.bf16.msra.mxu0 0
            %1174 = vmatprep.subr.bf16.mxu0 0
            %1175 = vmatpush1.bf16.msra.mxu0 0
            %1176 = vmatprep.subr.bf16.mxu0 0
            %1177 = vmatpush1.bf16.msra.mxu0 0
            %1178 = vmatprep.mubr.bf16.mxu0 0
            %1179 = vmatmul.mubr.bf16.gmra.mrb[0].mxu0 %v1074
            %v1180 = vpop.f32.mrb[0].mxu0
            %v1181 = vadd.f32 %v1096, %v1180
            %v1182 = vpop.f32.mrb[0].mxu0
            %v1183 = vpop.f32.mrb[0].mxu0
            %v1184 = vpop.f32.mrb[0].mxu0
            %1185 = vdwg.mxu0
            %v1186 = vld [vmem:[%s16] sm:$0x1]
            %vm1187 = vcmask 130048
            %v1188 = vsel %vm1187, %v1181, 0.0
            %v1189 = vrot.slane %v1188, 4
            %v1190 = vadd.f32 %v1188, %v1189
            %v1191 = vrot.slane %v1190, 2
            %v1192 = vadd.f32 %v1190, %v1191
            %v1193 = vrot.slane %v1192, 1
            %v1194 = vadd.f32 %v1192, %v1193
            %v1195 = vrcp.pop 8.0
            %v1196 = vmul.f32 %v1194, %v1195
            %v1197 = vsub.f32 %v1181, %v1196
            %v1198 = vmul.f32 %v1197, %v1197
            %v1199 = vsel %vm1187, %v1198, 0.0
            %v1200 = vrot.slane %v1199, 4
            %v1201 = vadd.f32 %v1199, %v1200
            %v1202 = vrot.slane %v1201, 2
            %v1203 = vadd.f32 %v1201, %v1202
            %v1204 = vrot.slane %v1203, 1
            %v1205 = vadd.f32 %v1203, %v1204
            %v1206 = vmul.f32 %v1205, %v1195
            %v1207 = vadd.f32 %v1206, 1e-05
            %v1208 = vrsqrt.pop %v1207
            %v1209 = vmul.f32 %v1197, %v1208
            %v1211 = vlaneseq
            %v1212 = vshrl.u32 %v1211, 7
            %v1213 = vsub.s32 0, %v1212
            %v1214 = vrot.slane %v1186, %v1213
            %v1216 = vadd.f32 %v1209, %v1214
            %v1217 = vld [vmem:[%s8] sm:$0xf]
            %v1218 = vld [vmem:[%s8 + $0x4] sm:$0xf]
            %v1219 = vld [vmem:[%s8 + $0x8] sm:$0xf]
            %v1220 = vld [vmem:[%s8 + $0xc] sm:$0xf]
            %v1221 = vld [vmem:[%s8 + $0x10] sm:$0xf]
            %v1222 = vld [vmem:[%s8 + $0x14] sm:$0xf]
            %v1223 = vld [vmem:[%s8 + $0x18] sm:$0xf]
            %v1224 = vld [vmem:[%s8 + $0x1c] sm:$0xf]
            %v1225 = vld [vmem:[%s8 + $0x20] sm:$0xf]
            %v1226 = vld [vmem:[%s8 + $0x24] sm:$0xf]
            %v1227 = vld [vmem:[%s8 + $0x28] sm:$0xf]
            %v1228 = vld [vmem:[%s8 + $0x2c] sm:$0xf]
            %v1229 = vld [vmem:[%s8 + $0x30] sm:$0xf]
            %v1230 = vld [vmem:[%s8 + $0x34] sm:$0xf]
            %v1231 = vld [vmem:[%s8 + $0x38] sm:$0xf]
            %v1232 = vld [vmem:[%s8 + $0x3c] sm:$0xf]
            %v1233 = vld [vmem:[%s9] sm:$0x1]
            %v1235 = vlaneseq
            %v1236 = vshrl.u32 %v1235, 7
            %v1237 = vsub.s32 0, %v1236
            %v1238 = vrot.slane %v1233, %v1237
            %v1256 = vunpack.c.l.b16 %v1217
            %v1257 = vunpack.c.l.b16 %v1218
            %v1258 = vunpack.c.l.b16 %v1219
            %v1259 = vunpack.c.l.b16 %v1220
            %v1260 = vunpack.c.l.b16 %v1221
            %v1261 = vunpack.c.l.b16 %v1222
            %v1262 = vunpack.c.l.b16 %v1223
            %v1263 = vunpack.c.l.b16 %v1224
            %v1264 = vunpack.c.l.b16 %v1225
            %v1265 = vunpack.c.l.b16 %v1226
            %v1266 = vunpack.c.l.b16 %v1227
            %v1267 = vunpack.c.l.b16 %v1228
            %v1268 = vunpack.c.l.b16 %v1229
            %v1269 = vunpack.c.l.b16 %v1230
            %v1270 = vunpack.c.l.b16 %v1231
            %v1271 = vunpack.c.l.b16 %v1232
            %v1272 = vpack.c.b16 %v1257, %v1256
            %v1273 = vpack.c.b16 %v1259, %v1258
            %v1274 = vpack.c.b16 %v1261, %v1260
            %v1275 = vpack.c.b16 %v1263, %v1262
            %v1276 = vpack.c.b16 %v1265, %v1264
            %v1277 = vpack.c.b16 %v1267, %v1266
            %v1278 = vpack.c.b16 %v1269, %v1268
            %v1279 = vpack.c.b16 %v1271, %v1270
            %1288 = vmatprep.subr.bf16.mxu0 0
            %1289 = vmatpush1.bf16.msra.mxu0 %v1272
            %1290 = vmatprep.subr.bf16.mxu0 0
            %1291 = vmatpush1.bf16.msra.mxu0 %v1273
            %1292 = vmatprep.subr.bf16.mxu0 0
            %1293 = vmatpush1.bf16.msra.mxu0 %v1274
            %1294 = vmatprep.subr.bf16.mxu0 0
            %1295 = vmatpush1.bf16.msra.mxu0 %v1275
            %1296 = vmatprep.subr.bf16.mxu0 0
            %1297 = vmatpush1.bf16.msra.mxu0 %v1276
            %1298 = vmatprep.subr.bf16.mxu0 0
            %1299 = vmatpush1.bf16.msra.mxu0 %v1277
            %1300 = vmatprep.subr.bf16.mxu0 0
            %1301 = vmatpush1.bf16.msra.mxu0 %v1278
            %1302 = vmatprep.subr.bf16.mxu0 0
            %1303 = vmatpush1.bf16.msra.mxu0 %v1279
            %1304 = vmatprep.subr.bf16.mxu0 0
            %1305 = vmatpush1.bf16.msra.mxu0 0
            %1306 = vmatprep.subr.bf16.mxu0 0
            %1307 = vmatpush1.bf16.msra.mxu0 0
            %1308 = vmatprep.subr.bf16.mxu0 0
            %1309 = vmatpush1.bf16.msra.mxu0 0
            %1310 = vmatprep.subr.bf16.mxu0 0
            %1311 = vmatpush1.bf16.msra.mxu0 0
            %1312 = vmatprep.subr.bf16.mxu0 0
            %1313 = vmatpush1.bf16.msra.mxu0 0
            %1314 = vmatprep.subr.bf16.mxu0 0
            %1315 = vmatpush1.bf16.msra.mxu0 0
            %1316 = vmatprep.subr.bf16.mxu0 0
            %1317 = vmatpush1.bf16.msra.mxu0 0
            %1318 = vmatprep.subr.bf16.mxu0 0
            %1319 = vmatpush1.bf16.msra.mxu0 0
            %1320 = vmatprep.mubr.bf16.mxu0 0
            %1321 = vmatmul.mubr.bf16.gmra.mrb[0].mxu0 %v1074
            %v1322 = vpop.f32.mrb[0].mxu0
            %v1323 = vadd.f32 %v1238, %v1322
            %v1324 = vpop.f32.mrb[0].mxu0
            %v1325 = vpop.f32.mrb[0].mxu0
            %v1326 = vpop.f32.mrb[0].mxu0
            %1327 = vdwg.mxu0
            %v1328 = vld [vmem:[%s17] sm:$0x1]
            %v1329 = vsel %vm1187, %v1323, 0.0
            %v1330 = vrot.slane %v1329, 4
            %v1331 = vadd.f32 %v1329, %v1330
            %v1332 = vrot.slane %v1331, 2
            %v1333 = vadd.f32 %v1331, %v1332
            %v1334 = vrot.slane %v1333, 1
            %v1335 = vadd.f32 %v1333, %v1334
            %v1336 = vmul.f32 %v1335, %v1195
            %v1337 = vsub.f32 %v1323, %v1336
            %v1338 = vmul.f32 %v1337, %v1337
            %v1339 = vsel %vm1187, %v1338, 0.0
            %v1340 = vrot.slane %v1339, 4
            %v1341 = vadd.f32 %v1339, %v1340
            %v1342 = vrot.slane %v1341, 2
            %v1343 = vadd.f32 %v1341, %v1342
            %v1344 = vrot.slane %v1343, 1
            %v1345 = vadd.f32 %v1343, %v1344
            %v1346 = vmul.f32 %v1345, %v1195
            %v1347 = vadd.f32 %v1346, 1e-05
            %v1348 = vrsqrt.pop %v1347
            %v1349 = vmul.f32 %v1337, %v1348
            %v1351 = vlaneseq
            %v1352 = vshrl.u32 %v1351, 7
            %v1353 = vsub.s32 0, %v1352
            %v1354 = vrot.slane %v1328, %v1353
            %v1356 = vadd.f32 %v1349, %v1354
            %v1357 = vld [vmem:[#allocation13] sm:$0xff]
            %v1358 = vmul.f32 %v1356, 0.5
            %v1359 = vmul.f32 %v1358, 1.442695
            %v1360 = vpow.pop %v1359
            %v1361 = vmul.f32 %v1357, %v1360
            %v1362 = vadd.f32 %v1216, %v1361
            %v1363 = vsel %vm1187, %v1362, -inf
            %1364 = vmax.xlane.f32.xlu0 %v1363
            %v1365 = vpop.xlane.xlu0 %1364
            %v1366 = vsub.f32 %v1362, %v1365
            %v1367 = vmul.f32 %v1366, 1.442695
            %v1368 = vpow.pop %v1367
            %v1369 = vsel %vm1187, %v1368, 0.0
            %1370 = vadd.xlane.f32.xlu0 %v1369
            %v1371 = vpop.xlane.xlu0 %1370
            %v1372 = vrcp.pop %v1371
            %v1373 = vmul.f32 %v1368, %v1372
            %1374 = vst.msk [vmem:[#allocation3] sm:$0xff] %vm1187, %v1373
            %v1375 = vmul.f32 %v1356, 1.442695
            %v1376 = vpow.pop %v1375
            %v1377 = vld [vmem:[%s10] sm:$0x1]
            %v1379 = vlaneseq
            %v1380 = vshrl.u32 %v1379, 7
            %v1381 = vsub.s32 0, %v1380
            %v1382 = vrot.slane %v1377, %v1381
            %v1384 = vsub.f32 %v1216, %v1382
            %v1385 = vld [vmem:[%s11] sm:$0x1]
            %v1387 = vlaneseq
            %v1388 = vshrl.u32 %v1387, 7
            %v1389 = vsub.s32 0, %v1388
            %v1390 = vrot.slane %v1385, %v1389
            %v1392 = vmul.f32 %v1376, %v1390
            %v1393 = vmul.f32 %v1384, %v1384
            %v1394 = vmul.f32 %v1393, %v1390
            %v1395 = vadd.f32 %v1392, %v1394
            %v1396 = vld [vmem:[%s12] sm:$0x1]
            %v1398 = vlaneseq
            %v1399 = vshrl.u32 %v1398, 7
            %v1400 = vsub.s32 0, %v1399
            %v1401 = vrot.slane %v1396, %v1400
            %v1403 = vadd.f32 %v1395, %v1401
            %v1404 = vsub.f32 %v1403, %v1356
            %v1405 = vsel %vm1187, %v1404, 0.0
            %1406 = vadd.xlane.f32.xlu0 %v1405
            %v1407 = vpop.xlane.xlu0 %1406
            %v1408 = vsub.f32 %v1407, 16.0
            %v1409 = vmul.f32 %v1408, 0.5
            %v1410 = vrot.slane %v1409, 4
            %v1411 = vadd.f32 %v1409, %v1410
            %v1412 = vrot.slane %v1411, 2
            %v1413 = vadd.f32 %v1411, %v1412
            %v1414 = vrot.slane %v1413, 1
            %v1415 = vadd.f32 %v1413, %v1414
            %v1416 = vmul.f32 %v1415, 0.125
            %vm1417 = vcmask 0
            %1418 = vst.msk [vmem:[#allocation9] sm:$0x1] %vm1417, %v1416
            %vm1419 = vcmask 7168
            %1420 = vst.msk [vmem:[#allocation5] sm:$0xff] %vm1419, -inf
            %1421 = vst.msk [vmem:[#allocation6] sm:$0xff] %vm1419, 0.0
            %1422 = vst.msk [vmem:[#allocation7] sm:$0xff] %vm1419, 0.0
            %1423 = vst.msk [vmem:[#allocation8] sm:$0xff] %vm1419, 0.0
          $region169: #{tpu_custom_call.1} parent=164 // pred_fallthru
            _
          %v1424 = vld [vmem:[%s13] sm:$0xff]
          %v1425 = vld [vmem:[%s13 + $0x8] sm:$0xff]
          %v1426 = vmul.f32 %v1424, %v1424
          %v1427 = vmul.f32 %v1425, %v1425
          %vm1428 = vcmask 261120
          %v1429 = vsel %vm1428, %v1426, 0.0
          %1430 = vadd.xlane.f32.xlu0 %v1429
          %v1431 = vpop.xlane.xlu0 %1430
          %v1432 = vsel %vm1428, %v1427, 0.0
          %1433 = vadd.xlane.f32.xlu0 %v1432
          %v1434 = vpop.xlane.xlu0 %1433
          %v1435 = vpack.c.bf16 %v1425, %v1424
          %v1436 = vld [vmem:[%s728] sm:$0xf]
          %v1437 = vld [vmem:[%s728 + $0x4] sm:$0xf]
          %v1438 = vld [vmem:[%s728 + $0x8] sm:$0xf]
          %v1439 = vld [vmem:[%s728 + $0xc] sm:$0xf]
          %v1444 = vunpack.c.l.b16 %v1436
          %v1445 = vunpack.c.l.b16 %v1437
          %v1446 = vunpack.c.l.b16 %v1438
          %v1447 = vunpack.c.l.b16 %v1439
          %v1448 = vpack.c.b16 %v1445, %v1444
          %v1449 = vpack.c.b16 %v1447, %v1446
          %v1453 = vsel %vm1428, %v1435, 0
          %1455 = vmatprep.subr.bf16.mxu0 0
          %1456 = vmatpush1.bf16.msra.mxu0 %v1448
          %1457 = vmatprep.subr.bf16.mxu0 0
          %1458 = vmatpush1.bf16.msra.mxu0 %v1449
          %1459 = vmatprep.subr.bf16.mxu0 0
          %1460 = vmatpush1.bf16.msra.mxu0 0
          %1461 = vmatprep.subr.bf16.mxu0 0
          %1462 = vmatpush1.bf16.msra.mxu0 0
          %1463 = vmatprep.subr.bf16.mxu0 0
          %1464 = vmatpush1.bf16.msra.mxu0 0
          %1465 = vmatprep.subr.bf16.mxu0 0
          %1466 = vmatpush1.bf16.msra.mxu0 0
          %1467 = vmatprep.subr.bf16.mxu0 0
          %1468 = vmatpush1.bf16.msra.mxu0 0
          %1469 = vmatprep.subr.bf16.mxu0 0
          %1470 = vmatpush1.bf16.msra.mxu0 0
          %1471 = vmatprep.subr.bf16.mxu0 0
          %1472 = vmatpush1.bf16.msra.mxu0 0
          %1473 = vmatprep.subr.bf16.mxu0 0
          %1474 = vmatpush1.bf16.msra.mxu0 0
          %1475 = vmatprep.subr.bf16.mxu0 0
          %1476 = vmatpush1.bf16.msra.mxu0 0
          %1477 = vmatprep.subr.bf16.mxu0 0
          %1478 = vmatpush1.bf16.msra.mxu0 0
          %1479 = vmatprep.subr.bf16.mxu0 0
          %1480 = vmatpush1.bf16.msra.mxu0 0
          %1481 = vmatprep.subr.bf16.mxu0 0
          %1482 = vmatpush1.bf16.msra.mxu0 0
          %1483 = vmatprep.subr.bf16.mxu0 0
          %1484 = vmatpush1.bf16.msra.mxu0 0
          %1485 = vmatprep.subr.bf16.mxu0 0
          %1486 = vmatpush1.bf16.msra.mxu0 0
          %1487 = vmatprep.mubr.bf16.mxu0 0
          %1488 = vmatmul.mubr.bf16.gmra.mrb[0].mxu0 %v1453
          %v1489 = vpop.f32.mrb[0].mxu0
          %v1490 = vadd.f32 0.0, %v1489
          %v1491 = vpop.f32.mrb[0].mxu0
          %v1492 = vpop.f32.mrb[0].mxu0
          %v1493 = vadd.f32 0.0, %v1492
          %v1494 = vpop.f32.mrb[0].mxu0
          %1495 = vdwg.mxu0
          %v1496 = vld [vmem:[%s801] sm:$0x1]
          %v1498 = vlaneseq
          %v1499 = vshrl.u32 %v1498, 7
          %v1500 = vsub.s32 0, %v1499
          %v1501 = vrot.slane %v1496, %v1500
          %v1503 = vadd.f32 %v1431, %v1501
          %v1504 = vadd.f32 %v1434, %v1501
          %v1505 = vmul.f32 %v1490, 2.0
          %v1506 = vmul.f32 %v1493, 2.0
          %v1507 = vsub.f32 %v1503, %v1505
          %v1508 = vsub.f32 %v1504, %v1506
          %s1509 = smul.u32 %s40, 128
          %s1510 = sshra.s32 %s1509, 7
          %s1511 = sand.u32 %s1509, 127
          %s1512 = smul.addr %s1510, 8
          %s1513 = scalar_lea.vmem [#allocation4], %s1512
          %1514 = vst [vmem:[%s1513] sm:$0xff] %v1507
          %1515 = vst [vmem:[%s1513 + $0x20] sm:$0xff] %v1508
          %v1516 = vsub.f32 0.0, %v1507
          %v1517 = vsub.f32 0.0, %v1508
          %v1518 = vmul.f32 %v1516, 5.0
          %v1519 = vmul.f32 %v1517, 5.0
          %v1520 = vmax.f32 %v1518, %v1519
          %v1521 = vrot.slane %v1520, 4
          %v1522 = vmax.f32 %v1520, %v1521
          %v1523 = vrot.slane %v1522, 2
          %v1524 = vmax.f32 %v1522, %v1523
          %v1525 = vrot.slane %v1524, 1
          %v1526 = vmax.f32 %v1524, %v1525
          %v1527 = vsub.f32 %v1518, %v1526
          %v1528 = vsub.f32 %v1519, %v1526
          %v1529 = vmul.f32 %v1527, 1.442695
          %v1530 = vpow.pop %v1529
          %v1531 = vmul.f32 %v1528, 1.442695
          %v1532 = vpow.pop %v1531
          %v1533 = vadd.f32 %v1530, %v1532
          %v1534 = vrot.slane %v1533, 4
          %v1535 = vadd.f32 %v1533, %v1534
          %v1536 = vrot.slane %v1535, 2
          %v1537 = vadd.f32 %v1535, %v1536
          %v1538 = vrot.slane %v1537, 1
          %v1539 = vadd.f32 %v1537, %v1538
          %v1540 = vrcp.pop %v1539
          %v1541 = vmul.f32 %v1530, %v1540
          %v1542 = vmul.f32 %v1532, %v1540
          %v1543 = vld [vmem:[#allocation3] sm:$0xff]
          %v1544 = vpack.c.bf16 %v1543, %v1543
          %v1545 = vpack.c.bf16 %v1542, %v1541
          %vm1546 = vcmask 130048
          %v1548 = vsel %vm1546, %v1544, 0
          %1550 = vmatprep.subr.bf16.mxu0 0
          %1551 = vmatpush1.bf16.msra.mxu0 %v1545
          %1552 = vmatprep.subr.bf16.mxu0 0
          %1553 = vmatpush1.bf16.msra.mxu0 0
          %1554 = vmatprep.subr.bf16.mxu0 0
          %1555 = vmatpush1.bf16.msra.mxu0 0
          %1556 = vmatprep.subr.bf16.mxu0 0
          %1557 = vmatpush1.bf16.msra.mxu0 0
          %1558 = vmatprep.subr.bf16.mxu0 0
          %1559 = vmatpush1.bf16.msra.mxu0 0
          %1560 = vmatprep.subr.bf16.mxu0 0
          %1561 = vmatpush1.bf16.msra.mxu0 0
          %1562 = vmatprep.subr.bf16.mxu0 0
          %1563 = vmatpush1.bf16.msra.mxu0 0
          %1564 = vmatprep.subr.bf16.mxu0 0
          %1565 = vmatpush1.bf16.msra.mxu0 0
          %1566 = vmatprep.subr.bf16.mxu0 0
          %1567 = vmatpush1.bf16.msra.mxu0 0
          %1568 = vmatprep.subr.bf16.mxu0 0
          %1569 = vmatpush1.bf16.msra.mxu0 0
          %1570 = vmatprep.subr.bf16.mxu0 0
          %1571 = vmatpush1.bf16.msra.mxu0 0
          %1572 = vmatprep.subr.bf16.mxu0 0
          %1573 = vmatpush1.bf16.msra.mxu0 0
          %1574 = vmatprep.subr.bf16.mxu0 0
          %1575 = vmatpush1.bf16.msra.mxu0 0
          %1576 = vmatprep.subr.bf16.mxu0 0
          %1577 = vmatpush1.bf16.msra.mxu0 0
          %1578 = vmatprep.subr.bf16.mxu0 0
          %1579 = vmatpush1.bf16.msra.mxu0 0
          %1580 = vmatprep.subr.bf16.mxu0 0
          %1581 = vmatpush1.bf16.msra.mxu0 0
          %1582 = vmatprep.mubr.bf16.mxu0 0
          %1583 = vmatmul.mubr.bf16.gmra.mrb[0].mxu0 %v1548
          %v1584 = vpop.f32.mrb[0].mxu0
          %v1585 = vadd.f32 0.0, %v1584
          %v1586 = vpop.f32.mrb[0].mxu0
          %v1587 = vpop.f32.mrb[0].mxu0
          %v1588 = vpop.f32.mrb[0].mxu0
          %1589 = vdwg.mxu0
          %v1590 = vld [vmem:[%s806] sm:$0x1]
          %v1591 = vrot.slane %v1585, 4
          %v1592 = vadd.f32 %v1585, %v1591
          %v1593 = vrot.slane %v1592, 2
          %v1594 = vadd.f32 %v1592, %v1593
          %v1595 = vrot.slane %v1594, 1
          %v1596 = vadd.f32 %v1594, %v1595
          %v1597 = vrcp.pop 8.0
          %v1598 = vmul.f32 %v1596, %v1597
          %v1599 = vsub.f32 %v1585, %v1598
          %v1600 = vmul.f32 %v1599, %v1599
          %v1601 = vrot.slane %v1600, 4
          %v1602 = vadd.f32 %v1600, %v1601
          %v1603 = vrot.slane %v1602, 2
          %v1604 = vadd.f32 %v1602, %v1603
          %v1605 = vrot.slane %v1604, 1
          %v1606 = vadd.f32 %v1604, %v1605
          %v1607 = vmul.f32 %v1606, %v1597
          %v1608 = vadd.f32 %v1607, 1e-05
          %v1609 = vrsqrt.pop %v1608
          %v1610 = vmul.f32 %v1599, %v1609
          %v1612 = vlaneseq
          %v1613 = vshrl.u32 %v1612, 7
          %v1614 = vsub.s32 0, %v1613
          %v1615 = vrot.slane %v1590, %v1614
          %v1617 = vadd.f32 %v1610, %v1615
          %v1618 = vld [vmem:[%s703] sm:$0xff]
          %1619 = vmax.xlane.f32.xlu0 %v1617
          %v1620 = vpop.xlane.xlu0 %1619
          %v1621 = vld [vmem:[#allocation5] sm:$0xff]
          %v1622 = vmax.f32 %v1621, %v1620
          %v1623 = vld [vmem:[#allocation6] sm:$0xff]
          %v1624 = vsub.f32 %v1621, %v1622
          %v1625 = vmul.f32 %v1624, 1.442695
          %v1626 = vpow.pop %v1625
          %v1627 = vmul.f32 %v1623, %v1626
          %1629 = vset.pattern.permute.xlu0 0
          %1630 = vperm.xlu0 %1629, %v1622
          %v1631 = vpop.permute.xlu0 %1630
          %v1633 = vsub.f32 %v1617, %v1631
          %v1634 = vmul.f32 %v1633, 1.442695
          %v1635 = vpow.pop %v1634
          %1636 = vadd.xlane.f32.xlu0 %v1635
          %v1637 = vpop.xlane.xlu0 %1636
          %v1638 = vadd.f32 %v1627, %v1637
          %vm1639 = vcmask 7168
          %1640 = vst.msk [vmem:[#allocation6] sm:$0xff] %vm1639, %v1638
          %1641 = vst.msk [vmem:[#allocation5] sm:$0xff] %vm1639, %v1622
          %v1642 = vld [vmem:[#allocation7] sm:$0xff]
          %v1643 = vmul.f32 %v1618, %v1617
          %1644 = vadd.xlane.f32.xlu0 %v1643
          %v1645 = vpop.xlane.xlu0 %1644
          %v1646 = vadd.f32 %v1642, %v1645
          %1647 = vst.msk [vmem:[#allocation7] sm:$0xff] %vm1639, %v1646
          %v1648 = vld [vmem:[#allocation8] sm:$0xff]
          %1649 = vadd.xlane.f32.xlu0 %v1618
          %v1650 = vpop.xlane.xlu0 %1649
          %v1651 = vadd.f32 %v1648, %v1650
          %1652 = vst.msk [vmem:[#allocation8] sm:$0xff] %vm1639, %v1651
          %p1653 = scmp.eq.s32.totalorder %s40, 3
          // Predicated region
          $region170: #{tpu_custom_call.1} parent=164 // pred_check
            %p1654 = pneg %p1653
          $region171: #{tpu_custom_call.1} parent=164 // pred_check_branch
            %1656 = sbr.rel (%p1654) target = $region173
          $region172: #{tpu_custom_call.1} parent=164 // pred_region
            %v1657 = vld [vmem:[#allocation5] sm:$0xff]
            %v1658 = vld [vmem:[#allocation6] sm:$0xff]
            %v1659 = vlog2.pop %v1658
            %v1660 = vmul.f32 %v1659, 0.6931472
            %v1661 = vadd.f32 %v1657, %v1660
            %v1662 = vld [vmem:[#allocation8] sm:$0xff]
            %v1663 = vmul.f32 %v1662, %v1661
            %v1664 = vld [vmem:[#allocation7] sm:$0xff]
            %v1665 = vsub.f32 %v1663, %v1664
            %v1666 = vsel %vm1639, %v1665, 0.0
            %v1667 = vrot.slane %v1666, 4
            %v1668 = vadd.f32 %v1666, %v1667
            %v1669 = vrot.slane %v1668, 2
            %v1670 = vadd.f32 %v1668, %v1669
            %v1671 = vrot.slane %v1670, 1
            %v1672 = vadd.f32 %v1670, %v1671
            %v1673 = vmul.f32 %v1672, 0.125
            %v1674 = vld [vmem:[#allocation9] sm:$0x1]
            %v1675 = vadd.f32 %v1673, %v1674
            %v1676 = vld [vmem:[#allocation4] sm:$0xff]
            %v1677 = vld [vmem:[#allocation4 + $0x8] sm:$0xff]
            %v1678 = vld [vmem:[#allocation4 + $0x10] sm:$0xff]
            %v1679 = vld [vmem:[#allocation4 + $0x18] sm:$0xff]
            %v1680 = vld [vmem:[#allocation4 + $0x20] sm:$0xff]
            %v1681 = vld [vmem:[#allocation4 + $0x28] sm:$0xff]
            %v1682 = vld [vmem:[#allocation4 + $0x30] sm:$0xff]
            %v1683 = vld [vmem:[#allocation4 + $0x38] sm:$0xff]
            %v1684 = vsub.f32 0.0, %v1676
            %v1685 = vsub.f32 0.0, %v1677
            %v1686 = vsub.f32 0.0, %v1678
            %v1687 = vsub.f32 0.0, %v1679
            %v1688 = vsub.f32 0.0, %v1680
            %v1689 = vsub.f32 0.0, %v1681
            %v1690 = vsub.f32 0.0, %v1682
            %v1691 = vsub.f32 0.0, %v1683
            %v1692 = vmul.f32 %v1684, 20.0
            %v1693 = vmul.f32 %v1685, 20.0
            %v1694 = vmul.f32 %v1686, 20.0
            %v1695 = vmul.f32 %v1687, 20.0
            %v1696 = vmul.f32 %v1688, 20.0
            %v1697 = vmul.f32 %v1689, 20.0
            %v1698 = vmul.f32 %v1690, 20.0
            %v1699 = vmul.f32 %v1691, 20.0
            %v1700 = vmul.f32 %v1692, 1.442695
            %v1701 = vpow.pop %v1700
            %v1702 = vmul.f32 %v1693, 1.442695
            %v1703 = vpow.pop %v1702
            %v1704 = vmul.f32 %v1694, 1.442695
            %v1705 = vpow.pop %v1704
            %v1706 = vmul.f32 %v1695, 1.442695
            %v1707 = vpow.pop %v1706
            %v1708 = vmul.f32 %v1696, 1.442695
            %v1709 = vpow.pop %v1708
            %v1710 = vmul.f32 %v1697, 1.442695
            %v1711 = vpow.pop %v1710
            %v1712 = vmul.f32 %v1698, 1.442695
            %v1713 = vpow.pop %v1712
            %v1714 = vmul.f32 %v1699, 1.442695
            %v1715 = vpow.pop %v1714
            loop: start=0, step=1, limit=10
            $region174: #{tpu_custom_call.1} parent=172 // loop_pre_header
              _
            $region175: #{tpu_custom_call.1} parent=172 // loop_header
              %s1717 = sphi 0, %s1721
              %p1718 = scmp.ge.s32.totalorder %s1717, 10
              %v1722 = vphi 0.0625, %v2086
              %v1723 = vphi 0.0625, %v2087
              %v1724 = vphi 0.001953125, %v2060
              %v1725 = vphi 0.001953125, %v2061
              %v1726 = vphi 0.001953125, %v2062
              %v1727 = vphi 0.001953125, %v2063
            $region176: #{tpu_custom_call.1} parent=172 // loop_header_branch
              %1720 = sbr.rel (%p1718) target = $region180
            $region177: #{tpu_custom_call.1} parent=172 // loop_body
              %v1728 = vmul.f32 %v1701, %v1722
              %v1729 = vmul.f32 %v1703, %v1722
              %v1730 = vmul.f32 %v1705, %v1722
              %v1731 = vmul.f32 %v1707, %v1722
              %v1732 = vmul.f32 %v1709, %v1723
              %v1733 = vmul.f32 %v1711, %v1723
              %v1734 = vmul.f32 %v1713, %v1723
              %v1735 = vmul.f32 %v1715, %v1723
              %v1736 = vadd.f32 %v1728, %v1732
              %v1737 = vrot.slane %v1736, 4
              %v1738 = vadd.f32 %v1736, %v1737
              %v1739 = vrot.slane %v1738, 2
              %v1740 = vadd.f32 %v1738, %v1739
              %v1741 = vrot.slane %v1740, 1
              %v1742 = vadd.f32 %v1740, %v1741
              %v1743 = vadd.f32 %v1729, %v1733
              %v1744 = vrot.slane %v1743, 4
              %v1745 = vadd.f32 %v1743, %v1744
              %v1746 = vrot.slane %v1745, 2
              %v1747 = vadd.f32 %v1745, %v1746
              %v1748 = vrot.slane %v1747, 1
              %v1749 = vadd.f32 %v1747, %v1748
              %v1750 = vadd.f32 %v1730, %v1734
              %v1751 = vrot.slane %v1750, 4
              %v1752 = vadd.f32 %v1750, %v1751
              %v1753 = vrot.slane %v1752, 2
              %v1754 = vadd.f32 %v1752, %v1753
              %v1755 = vrot.slane %v1754, 1
              %v1756 = vadd.f32 %v1754, %v1755
              %v1757 = vadd.f32 %v1731, %v1735
              %v1758 = vrot.slane %v1757, 4
              %v1759 = vadd.f32 %v1757, %v1758
              %v1760 = vrot.slane %v1759, 2
              %v1761 = vadd.f32 %v1759, %v1760
              %v1762 = vrot.slane %v1761, 1
              %v1763 = vadd.f32 %v1761, %v1762
              %v1764 = vadd.f32 %v1742, 1e-16
              %v1765 = vadd.f32 %v1749, 1e-16
              %v1766 = vadd.f32 %v1756, 1e-16
              %v1767 = vadd.f32 %v1763, 1e-16
              %v1768 = vrcp.pop %v1764
              %v1769 = vrcp.pop %v1765
              %v1770 = vrcp.pop %v1766
              %v1771 = vrcp.pop %v1767
              %v1772 = vmul.f32 %v1768, 0.001953125
              %v1773 = vmul.f32 %v1769, 0.001953125
              %v1774 = vmul.f32 %v1770, 0.001953125
              %v1775 = vmul.f32 %v1771, 0.001953125
              %v1776 = vmul.f32 %v1701, %v1772
              %v1777 = vmul.f32 %v1703, %v1773
              %v1778 = vmul.f32 %v1705, %v1774
              %v1779 = vmul.f32 %v1707, %v1775
              %v1780 = vmul.f32 %v1709, %v1772
              %v1781 = vmul.f32 %v1711, %v1773
              %v1782 = vmul.f32 %v1713, %v1774
              %v1783 = vmul.f32 %v1715, %v1775
              %v1784 = vadd.f32 %v1776, %v1777
              %v1785 = vadd.f32 %v1784, %v1778
              %v1786 = vadd.f32 %v1785, %v1779
              %1787 = vadd.xlane.f32.xlu0 %v1786
              %v1788 = vpop.xlane.xlu0 %1787
              %v1789 = vadd.f32 %v1780, %v1781
              %v1790 = vadd.f32 %v1789, %v1782
              %v1791 = vadd.f32 %v1790, %v1783
              %1792 = vadd.xlane.f32.xlu0 %v1791
              %v1793 = vpop.xlane.xlu0 %1792
              %v1794 = vadd.f32 %v1788, 1e-16
              %v1795 = vadd.f32 %v1793, 1e-16
              %v1796 = vrcp.pop %v1794
              %v1797 = vrcp.pop %v1795
              %v1798 = vmul.f32 %v1796, 0.0625
              %v1799 = vmul.f32 %v1797, 0.0625
              %v1800 = vmul.f32 %v1701, %v1798
              %v1801 = vmul.f32 %v1703, %v1798
              %v1802 = vmul.f32 %v1705, %v1798
              %v1803 = vmul.f32 %v1707, %v1798
              %v1804 = vmul.f32 %v1709, %v1799
              %v1805 = vmul.f32 %v1711, %v1799
              %v1806 = vmul.f32 %v1713, %v1799
              %v1807 = vmul.f32 %v1715, %v1799
              %v1808 = vadd.f32 %v1800, %v1804
              %v1809 = vrot.slane %v1808, 4
              %v1810 = vadd.f32 %v1808, %v1809
              %v1811 = vrot.slane %v1810, 2
              %v1812 = vadd.f32 %v1810, %v1811
              %v1813 = vrot.slane %v1812, 1
              %v1814 = vadd.f32 %v1812, %v1813
              %v1815 = vadd.f32 %v1801, %v1805
              %v1816 = vrot.slane %v1815, 4
              %v1817 = vadd.f32 %v1815, %v1816
              %v1818 = vrot.slane %v1817, 2
              %v1819 = vadd.f32 %v1817, %v1818
              %v1820 = vrot.slane %v1819, 1
              %v1821 = vadd.f32 %v1819, %v1820
              %v1822 = vadd.f32 %v1802, %v1806
              %v1823 = vrot.slane %v1822, 4
              %v1824 = vadd.f32 %v1822, %v1823
              %v1825 = vrot.slane %v1824, 2
              %v1826 = vadd.f32 %v1824, %v1825
              %v1827 = vrot.slane %v1826, 1
              %v1828 = vadd.f32 %v1826, %v1827
              %v1829 = vadd.f32 %v1803, %v1807
              %v1830 = vrot.slane %v1829, 4
              %v1831 = vadd.f32 %v1829, %v1830
              %v1832 = vrot.slane %v1831, 2
              %v1833 = vadd.f32 %v1831, %v1832
              %v1834 = vrot.slane %v1833, 1
              %v1835 = vadd.f32 %v1833, %v1834
              %v1836 = vadd.f32 %v1814, 1e-16
              %v1837 = vadd.f32 %v1821, 1e-16
              %v1838 = vadd.f32 %v1828, 1e-16
              %v1839 = vadd.f32 %v1835, 1e-16
              %v1840 = vrcp.pop %v1836
              %v1841 = vrcp.pop %v1837
              %v1842 = vrcp.pop %v1838
              %v1843 = vrcp.pop %v1839
              %v1844 = vmul.f32 %v1840, 0.001953125
              %v1845 = vmul.f32 %v1841, 0.001953125
              %v1846 = vmul.f32 %v1842, 0.001953125
              %v1847 = vmul.f32 %v1843, 0.001953125
              %v1848 = vmul.f32 %v1701, %v1844
              %v1849 = vmul.f32 %v1703, %v1845
              %v1850 = vmul.f32 %v1705, %v1846
              %v1851 = vmul.f32 %v1707, %v1847
              %v1852 = vmul.f32 %v1709, %v1844
              %v1853 = vmul.f32 %v1711, %v1845
              %v1854 = vmul.f32 %v1713, %v1846
              %v1855 = vmul.f32 %v1715, %v1847
              %v1856 = vadd.f32 %v1848, %v1849
              %v1857 = vadd.f32 %v1856, %v1850
              %v1858 = vadd.f32 %v1857, %v1851
              %1859 = vadd.xlane.f32.xlu0 %v1858
              %v1860 = vpop.xlane.xlu0 %1859
              %v1861 = vadd.f32 %v1852, %v1853
              %v1862 = vadd.f32 %v1861, %v1854
              %v1863 = vadd.f32 %v1862, %v1855
              %1864 = vadd.xlane.f32.xlu0 %v1863
              %v1865 = vpop.xlane.xlu0 %1864
              %v1866 = vadd.f32 %v1860, 1e-16
              %v1867 = vadd.f32 %v1865, 1e-16
              %v1868 = vrcp.pop %v1866
              %v1869 = vrcp.pop %v1867
              %v1870 = vmul.f32 %v1868, 0.0625
              %v1871 = vmul.f32 %v1869, 0.0625
              %v1872 = vmul.f32 %v1701, %v1870
              %v1873 = vmul.f32 %v1703, %v1870
              %v1874 = vmul.f32 %v1705, %v1870
              %v1875 = vmul.f32 %v1707, %v1870
              %v1876 = vmul.f32 %v1709, %v1871
              %v1877 = vmul.f32 %v1711, %v1871
              %v1878 = vmul.f32 %v1713, %v1871
              %v1879 = vmul.f32 %v1715, %v1871
              %v1880 = vadd.f32 %v1872, %v1876
              %v1881 = vrot.slane %v1880, 4
              %v1882 = vadd.f32 %v1880, %v1881
              %v1883 = vrot.slane %v1882, 2
              %v1884 = vadd.f32 %v1882, %v1883
              %v1885 = vrot.slane %v1884, 1
              %v1886 = vadd.f32 %v1884, %v1885
              %v1887 = vadd.f32 %v1873, %v1877
              %v1888 = vrot.slane %v1887, 4
              %v1889 = vadd.f32 %v1887, %v1888
              %v1890 = vrot.slane %v1889, 2
              %v1891 = vadd.f32 %v1889, %v1890
              %v1892 = vrot.slane %v1891, 1
              %v1893 = vadd.f32 %v1891, %v1892
              %v1894 = vadd.f32 %v1874, %v1878
              %v1895 = vrot.slane %v1894, 4
              %v1896 = vadd.f32 %v1894, %v1895
              %v1897 = vrot.slane %v1896, 2
              %v1898 = vadd.f32 %v1896, %v1897
              %v1899 = vrot.slane %v1898, 1
              %v1900 = vadd.f32 %v1898, %v1899
              %v1901 = vadd.f32 %v1875, %v1879
              %v1902 = vrot.slane %v1901, 4
              %v1903 = vadd.f32 %v1901, %v1902
              %v1904 = vrot.slane %v1903, 2
              %v1905 = vadd.f32 %v1903, %v1904
              %v1906 = vrot.slane %v1905, 1
              %v1907 = vadd.f32 %v1905, %v1906
              %v1908 = vadd.f32 %v1886, 1e-16
              %v1909 = vadd.f32 %v1893, 1e-16
              %v1910 = vadd.f32 %v1900, 1e-16
              %v1911 = vadd.f32 %v1907, 1e-16
              %v1912 = vrcp.pop %v1908
              %v1913 = vrcp.pop %v1909
              %v1914 = vrcp.pop %v1910
              %v1915 = vrcp.pop %v1911
              %v1916 = vmul.f32 %v1912, 0.001953125
              %v1917 = vmul.f32 %v1913, 0.001953125
              %v1918 = vmul.f32 %v1914, 0.001953125
              %v1919 = vmul.f32 %v1915, 0.001953125
              %v1920 = vmul.f32 %v1701, %v1916
              %v1921 = vmul.f32 %v1703, %v1917
              %v1922 = vmul.f32 %v1705, %v1918
              %v1923 = vmul.f32 %v1707, %v1919
              %v1924 = vmul.f32 %v1709, %v1916
              %v1925 = vmul.f32 %v1711, %v1917
              %v1926 = vmul.f32 %v1713, %v1918
              %v1927 = vmul.f32 %v1715, %v1919
              %v1928 = vadd.f32 %v1920, %v1921
              %v1929 = vadd.f32 %v1928, %v1922
              %v1930 = vadd.f32 %v1929, %v1923
              %1931 = vadd.xlane.f32.xlu0 %v1930
              %v1932 = vpop.xlane.xlu0 %1931
              %v1933 = vadd.f32 %v1924, %v1925
              %v1934 = vadd.f32 %v1933, %v1926
              %v1935 = vadd.f32 %v1934, %v1927
              %1936 = vadd.xlane.f32.xlu0 %v1935
              %v1937 = vpop.xlane.xlu0 %1936
              %v1938 = vadd.f32 %v1932, 1e-16
              %v1939 = vadd.f32 %v1937, 1e-16
              %v1940 = vrcp.pop %v1938
              %v1941 = vrcp.pop %v1939
              %v1942 = vmul.f32 %v1940, 0.0625
              %v1943 = vmul.f32 %v1941, 0.0625
              %v1944 = vmul.f32 %v1701, %v1942
              %v1945 = vmul.f32 %v1703, %v1942
              %v1946 = vmul.f32 %v1705, %v1942
              %v1947 = vmul.f32 %v1707, %v1942
              %v1948 = vmul.f32 %v1709, %v1943
              %v1949 = vmul.f32 %v1711, %v1943
              %v1950 = vmul.f32 %v1713, %v1943
              %v1951 = vmul.f32 %v1715, %v1943
              %v1952 = vadd.f32 %v1944, %v1948
              %v1953 = vrot.slane %v1952, 4
              %v1954 = vadd.f32 %v1952, %v1953
              %v1955 = vrot.slane %v1954, 2
              %v1956 = vadd.f32 %v1954, %v1955
              %v1957 = vrot.slane %v1956, 1
              %v1958 = vadd.f32 %v1956, %v1957
              %v1959 = vadd.f32 %v1945, %v1949
              %v1960 = vrot.slane %v1959, 4
              %v1961 = vadd.f32 %v1959, %v1960
              %v1962 = vrot.slane %v1961, 2
              %v1963 = vadd.f32 %v1961, %v1962
              %v1964 = vrot.slane %v1963, 1
              %v1965 = vadd.f32 %v1963, %v1964
              %v1966 = vadd.f32 %v1946, %v1950
              %v1967 = vrot.slane %v1966, 4
              %v1968 = vadd.f32 %v1966, %v1967
              %v1969 = vrot.slane %v1968, 2
              %v1970 = vadd.f32 %v1968, %v1969
              %v1971 = vrot.slane %v1970, 1
              %v1972 = vadd.f32 %v1970, %v1971
              %v1973 = vadd.f32 %v1947, %v1951
              %v1974 = vrot.slane %v1973, 4
              %v1975 = vadd.f32 %v1973, %v1974
              %v1976 = vrot.slane %v1975, 2
              %v1977 = vadd.f32 %v1975, %v1976
              %v1978 = vrot.slane %v1977, 1
              %v1979 = vadd.f32 %v1977, %v1978
              %v1980 = vadd.f32 %v1958, 1e-16
              %v1981 = vadd.f32 %v1965, 1e-16
              %v1982 = vadd.f32 %v1972, 1e-16
              %v1983 = vadd.f32 %v1979, 1e-16
              %v1984 = vrcp.pop %v1980
              %v1985 = vrcp.pop %v1981
              %v1986 = vrcp.pop %v1982
              %v1987 = vrcp.pop %v1983
              %v1988 = vmul.f32 %v1984, 0.001953125
              %v1989 = vmul.f32 %v1985, 0.001953125
              %v1990 = vmul.f32 %v1986, 0.001953125
              %v1991 = vmul.f32 %v1987, 0.001953125
              %v1992 = vmul.f32 %v1701, %v1988
              %v1993 = vmul.f32 %v1703, %v1989
              %v1994 = vmul.f32 %v1705, %v1990
              %v1995 = vmul.f32 %v1707, %v1991
              %v1996 = vmul.f32 %v1709, %v1988
              %v1997 = vmul.f32 %v1711, %v1989
              %v1998 = vmul.f32 %v1713, %v1990
              %v1999 = vmul.f32 %v1715, %v1991
              %v2000 = vadd.f32 %v1992, %v1993
              %v2001 = vadd.f32 %v2000, %v1994
              %v2002 = vadd.f32 %v2001, %v1995
              %2003 = vadd.xlane.f32.xlu0 %v2002
              %v2004 = vpop.xlane.xlu0 %2003
              %v2005 = vadd.f32 %v1996, %v1997
              %v2006 = vadd.f32 %v2005, %v1998
              %v2007 = vadd.f32 %v2006, %v1999
              %2008 = vadd.xlane.f32.xlu0 %v2007
              %v2009 = vpop.xlane.xlu0 %2008
              %v2010 = vadd.f32 %v2004, 1e-16
              %v2011 = vadd.f32 %v2009, 1e-16
              %v2012 = vrcp.pop %v2010
              %v2013 = vrcp.pop %v2011
              %v2014 = vmul.f32 %v2012, 0.0625
              %v2015 = vmul.f32 %v2013, 0.0625
              %v2016 = vmul.f32 %v1701, %v2014
              %v2017 = vmul.f32 %v1703, %v2014
              %v2018 = vmul.f32 %v1705, %v2014
              %v2019 = vmul.f32 %v1707, %v2014
              %v2020 = vmul.f32 %v1709, %v2015
              %v2021 = vmul.f32 %v1711, %v2015
              %v2022 = vmul.f32 %v1713, %v2015
              %v2023 = vmul.f32 %v1715, %v2015
              %v2024 = vadd.f32 %v2016, %v2020
              %v2025 = vrot.slane %v2024, 4
              %v2026 = vadd.f32 %v2024, %v2025
              %v2027 = vrot.slane %v2026, 2
              %v2028 = vadd.f32 %v2026, %v2027
              %v2029 = vrot.slane %v2028, 1
              %v2030 = vadd.f32 %v2028, %v2029
              %v2031 = vadd.f32 %v2017, %v2021
              %v2032 = vrot.slane %v2031, 4
              %v2033 = vadd.f32 %v2031, %v2032
              %v2034 = vrot.slane %v2033, 2
              %v2035 = vadd.f32 %v2033, %v2034
              %v2036 = vrot.slane %v2035, 1
              %v2037 = vadd.f32 %v2035, %v2036
              %v2038 = vadd.f32 %v2018, %v2022
              %v2039 = vrot.slane %v2038, 4
              %v2040 = vadd.f32 %v2038, %v2039
              %v2041 = vrot.slane %v2040, 2
              %v2042 = vadd.f32 %v2040, %v2041
              %v2043 = vrot.slane %v2042, 1
              %v2044 = vadd.f32 %v2042, %v2043
              %v2045 = vadd.f32 %v2019, %v2023
              %v2046 = vrot.slane %v2045, 4
              %v2047 = vadd.f32 %v2045, %v2046
              %v2048 = vrot.slane %v2047, 2
              %v2049 = vadd.f32 %v2047, %v2048
              %v2050 = vrot.slane %v2049, 1
              %v2051 = vadd.f32 %v2049, %v2050
              %v2052 = vadd.f32 %v2030, 1e-16
              %v2053 = vadd.f32 %v2037, 1e-16
              %v2054 = vadd.f32 %v2044, 1e-16
              %v2055 = vadd.f32 %v2051, 1e-16
              %v2056 = vrcp.pop %v2052
              %v2057 = vrcp.pop %v2053
              %v2058 = vrcp.pop %v2054
              %v2059 = vrcp.pop %v2055
              %v2060 = vmul.f32 %v2056, 0.001953125
              %v2061 = vmul.f32 %v2057, 0.001953125
              %v2062 = vmul.f32 %v2058, 0.001953125
              %v2063 = vmul.f32 %v2059, 0.001953125
              %v2064 = vmul.f32 %v1701, %v2060
              %v2065 = vmul.f32 %v1703, %v2061
              %v2066 = vmul.f32 %v1705, %v2062
              %v2067 = vmul.f32 %v1707, %v2063
              %v2068 = vmul.f32 %v1709, %v2060
              %v2069 = vmul.f32 %v1711, %v2061
              %v2070 = vmul.f32 %v1713, %v2062
              %v2071 = vmul.f32 %v1715, %v2063
              %v2072 = vadd.f32 %v2064, %v2065
              %v2073 = vadd.f32 %v2072, %v2066
              %v2074 = vadd.f32 %v2073, %v2067
              %2075 = vadd.xlane.f32.xlu0 %v2074
              %v2076 = vpop.xlane.xlu0 %2075
              %v2077 = vadd.f32 %v2068, %v2069
              %v2078 = vadd.f32 %v2077, %v2070
              %v2079 = vadd.f32 %v2078, %v2071
              %2080 = vadd.xlane.f32.xlu0 %v2079
              %v2081 = vpop.xlane.xlu0 %2080
              %v2082 = vadd.f32 %v2076, 1e-16
              %v2083 = vadd.f32 %v2081, 1e-16
              %v2084 = vrcp.pop %v2082
              %v2085 = vrcp.pop %v2083
              %v2086 = vmul.f32 %v2084, 0.0625
              %v2087 = vmul.f32 %v2085, 0.0625
            $region178: #{tpu_custom_call.1} parent=172 // loop_footer
              %s1721 = sadd.s32 1, %s1717
            $region179: #{tpu_custom_call.1} parent=172 // loop_footer_branch
              %1716 = sbr.rel target = $region175
            $region180: #{tpu_custom_call.1} parent=172 // loop_exit
              _
            %v2088 = vmul.f32 %v1722, %v1701
            %v2089 = vmul.f32 %v1722, %v1703
            %v2090 = vmul.f32 %v1722, %v1705
            %v2091 = vmul.f32 %v1722, %v1707
            %v2092 = vmul.f32 %v1723, %v1709
            %v2093 = vmul.f32 %v1723, %v1711
            %v2094 = vmul.f32 %v1723, %v1713
            %v2095 = vmul.f32 %v1723, %v1715
            %v2096 = vmul.f32 %v1724, %v1676
            %v2097 = vmul.f32 %v1725, %v1677
            %v2098 = vmul.f32 %v1726, %v1678
            %v2099 = vmul.f32 %v1727, %v1679
            %v2100 = vmul.f32 %v1724, %v1680
            %v2101 = vmul.f32 %v1725, %v1681
            %v2102 = vmul.f32 %v1726, %v1682
            %v2103 = vmul.f32 %v1727, %v1683
            %v2104 = vmul.f32 %v2088, %v2096
            %v2105 = vmul.f32 %v2089, %v2097
            %v2106 = vmul.f32 %v2090, %v2098
            %v2107 = vmul.f32 %v2091, %v2099
            %v2108 = vmul.f32 %v2092, %v2100
            %v2109 = vmul.f32 %v2093, %v2101
            %v2110 = vmul.f32 %v2094, %v2102
            %v2111 = vmul.f32 %v2095, %v2103
            %v2112 = vadd.f32 %v2104, %v2105
            %v2113 = vadd.f32 %v2112, %v2106
            %v2114 = vadd.f32 %v2113, %v2107
            %2115 = vadd.xlane.f32.xlu0 %v2114
            %v2116 = vpop.xlane.xlu0 %2115
            %v2117 = vadd.f32 %v2108, %v2109
            %v2118 = vadd.f32 %v2117, %v2110
            %v2119 = vadd.f32 %v2118, %v2111
            %2120 = vadd.xlane.f32.xlu0 %v2119
            %v2121 = vpop.xlane.xlu0 %2120
            %v2122 = vadd.f32 %v2116, %v2121
            %v2123 = vrot.slane %v2122, 4
            %v2124 = vadd.f32 %v2122, %v2123
            %v2125 = vrot.slane %v2124, 2
            %v2126 = vadd.f32 %v2124, %v2125
            %v2127 = vrot.slane %v2126, 1
            %v2128 = vadd.f32 %v2126, %v2127
            %v2129 = vmul.f32 %v2128, 250.0
            %v2130 = vadd.f32 %v1675, %v2129
            %v2131 = vlaneseq
            %v2132 = vand.u32 %v2131, 127
            %vm2133 = vcmp.eq.s32.totalorder %v2132, 0
            %v2134 = vsel %vm2133, 1, 0
            %v2135 = vcvt.s32.f32 %v2134
            %2137 = vset.pattern.permute.xlu0 0
            %2138 = vperm.xlu0 %2137, %v2130
            %v2139 = vpop.permute.xlu0 %2138
            %v2141 = vmul.f32 %v2139, %v2135
            %vm2142 = vcmp.eq.s32.totalorder %v2132, 1
            %v2143 = vsel %vm2142, 1, 0
            %v2144 = vcvt.s32.f32 %v2143
            %2146 = vset.pattern.permute.xlu0 0
            %2147 = vperm.xlu0 %2146, %v1675
            %v2148 = vpop.permute.xlu0 %2147
            %v2150 = vmul.f32 %v2148, %v2144
            %v2151 = vadd.f32 %v2141, %v2150
            %vm2152 = vcmp.eq.s32.totalorder %v2132, 2
            %v2153 = vsel %vm2152, 1, 0
            %v2154 = vcvt.s32.f32 %v2153
            %v2155 = vmul.f32 %v2129, %v2154
            %v2156 = vadd.f32 %v2151, %v2155
            %vm2157 = vcmp.eq.s32.totalorder %v2132, 3
            %v2158 = vsel %vm2157, 1, 0
            %v2159 = vcvt.s32.f32 %v2158
            %2161 = vset.pattern.permute.xlu0 0
            %2162 = vperm.xlu0 %2161, %v1674
            %v2163 = vpop.permute.xlu0 %2162
            %v2165 = vlaneseq
            %v2166 = vshrl.u32 %v2165, 7
            %v2167 = vsub.s32 0, %v2166
            %v2168 = vrot.slane %v2163, %v2167
            %v2169 = vmul.f32 %v2168, %v2159
            %v2170 = vadd.f32 %v2156, %v2169
            %vm2171 = vcmask 24576
            %2172 = vst.msk [vmem:[#allocation18] sm:$0x1] %vm2171, %v2170
          $region173: #{tpu_custom_call.1} parent=164 // pred_fallthru
            _
        $region165: #{tpu_custom_call.1} parent=132 // pred_fallthru
          _
        // Predicated region
        $region181: #{tpu_custom_call.1} parent=132 // pred_check
          %p2173 = pneg %p494
        $region182: #{tpu_custom_call.1} parent=132 // pred_check_branch
          %2175 = sbr.rel (%p2173) target = $region184
        $region183: #{tpu_custom_call.1} parent=132 // pred_region
          %s2177 = ssub.s32 16, 16
          %2178 = vsyncadd [#allocation12], %s2177
          %s2180 = sshll.u32 [#allocation18], 4
          %s2181 = int_to_ptr.vmem [resolvable:$true] %s2180
          %2183 = dma.vmem_to_hbm [thread:$0]  %s2181, 16, %s19, [#allocation12]
        $region184: #{tpu_custom_call.1} parent=132 // pred_fallthru
          _
        // Predicated region
        $region185: #{tpu_custom_call.1} parent=132 // pred_check
          %p2184 = pneg %p494
        $region186: #{tpu_custom_call.1} parent=132 // pred_check_branch
          %2186 = sbr.rel (%p2184) target = $region188
        $region187: #{tpu_custom_call.1} parent=132 // pred_region
          %2187 = dma.done [#allocation12], 16
        $region188: #{tpu_custom_call.1} parent=132 // pred_fallthru
          _
      $region133: #{tpu_custom_call.1} parent=5 // pred_fallthru
        _
      %p2188 = scmp.le.s32.totalorder 2, %s30
      // Predicated region
      $region189: #{tpu_custom_call.1} parent=5 // pred_check
        %p2189 = pneg %p2188
      $region190: #{tpu_custom_call.1} parent=5 // pred_check_branch
        %2191 = sbr.rel (%p2189) target = $region192
      $region191: #{tpu_custom_call.1} parent=5 // pred_region
        %s2192 = ssub.s32 %s30, 2
      $region192: #{tpu_custom_call.1} parent=5 // pred_fallthru
        _
    $region6: #{tpu_custom_call.1} parent=1 // loop_footer
      %s34 = sadd.s32 1, %s30
    $region7: #{tpu_custom_call.1} parent=1 // loop_footer_branch
      %29 = sbr.rel target = $region3
    $region8: #{tpu_custom_call.1} parent=1 // loop_exit
      _
    %2193 = vsyncpa [#allocation11], 1
    %s2194 = scalar_lea.sflag [#allocation11], 1
    %2195 = vsyncpa %s2194, 1
    %2196 = vsyncpa [#allocation14], 1
    %2197 = vsyncpa [#allocation12], 1
    %s2198 = scalar_lea.sflag [#allocation12], 1
    %2199 = vsyncpa %s2198, 1

</llo_original>
